<compile_context>
chip_gen: v6e
topology: v6e:2x2x1
jax: 0.10.0
libtpu: 0.0.40
codegen_flags: <defaults>
</compile_context>

<pallas_src>
import math
from functools import partial

import jax
import jax.numpy as jnp
from jax.experimental import pallas as pl
from jax.experimental.pallas import tpu as pltpu


LN_EPS = 1e-5


def _layernorm(h, gamma, beta, eps=LN_EPS):
    """Row-wise LayerNorm with affine params, all in f32."""
    mu = jnp.mean(h, axis=-1, keepdims=True)
    var = jnp.mean((h - mu) ** 2, axis=-1, keepdims=True)
    return (h - mu) * jax.lax.rsqrt(var + eps) * gamma + beta


# ----------------------- fully fused PoseViT kernel ------------------------- #

def _make_pose_vit_kernel(n_heads, d_model, pool):
    dh = d_model // n_heads
    scale = 1.0 / math.sqrt(dh)

    def kernel(x_ref, pw_ref, pb_ref, pos_ref, cls_ref,
               wqkv_ref, bqkv_ref, wo_ref, bo_ref,
               g1_ref, be1_ref, w1_ref, bf1_ref, w2_ref, bf2_ref,
               g2_ref, be2_ref, o_ref, act_ref):
        layer = pl.program_id(1)
        n_layers = pl.num_programs(1)

        # --- layer 0: fused PositionalEmbedding (proj + pos + cls prepend) ---
        @pl.when(layer == 0)
        def _():
            proj = jnp.dot(x_ref[...], pw_ref[...],
                           preferred_element_type=jnp.float32)
            proj = proj + pb_ref[...] + pos_ref[...]
            act_ref[...] = jnp.concatenate(
                [cls_ref[...].astype(jnp.float32), proj], axis=0)

        x = act_ref[...]                                           # (L1, D) f32

        # --- fused QKV projection (single MXU matmul, lane dim = 3D) ---
        qkv = jnp.dot(x, wqkv_ref[...], preferred_element_type=jnp.float32)
        qkv = qkv + bqkv_ref[...]                                  # (L1, 3D)
        q = qkv[:, 0:d_model]
        k = qkv[:, d_model:2 * d_model]
        v = qkv[:, 2 * d_model:3 * d_model]

        # --- multi-head attention; out-projection folded per head:
        #     sa = sum_h softmax(q_h k_h^T / sqrt(dh)) v_h @ Wo[h*dh:(h+1)*dh]
        wo = wo_ref[...]                                           # (D, D)
        sa = jnp.zeros(x.shape, jnp.float32)
        for h in range(n_heads):                                   # static unroll
            sl = slice(h * dh, (h + 1) * dh)
            s = jax.lax.dot_general(
                q[:, sl] * scale, k[:, sl],
                (((1,), (1,)), ((), ())),
                preferred_element_type=jnp.float32)                # (L1, L1)
            s = s - jnp.max(s, axis=-1, keepdims=True)
            p = jnp.exp(s)
            p = p * pl.reciprocal(jnp.sum(p, axis=-1, keepdims=True),
                                  approx=True)
            ctx_h = jnp.dot(p, v[:, sl],
                            preferred_element_type=jnp.float32)    # (L1, dh)
            sa = sa + jnp.dot(ctx_h, wo[sl, :],
                              preferred_element_type=jnp.float32)  # (L1, D)
        sa = sa + bo_ref[...]

        # --- post-norm residual 1 ---
        h1 = _layernorm(x + sa, g1_ref[...], be1_ref[...])

        # --- feed-forward (relu), fused ---
        ff = jnp.dot(h1, w1_ref[...], preferred_element_type=jnp.float32)
        ff = jnp.maximum(ff + bf1_ref[...], 0.0)
        ff = jnp.dot(ff, w2_ref[...], preferred_element_type=jnp.float32)
        ff = ff + bf2_ref[...]

        # --- post-norm residual 2 ---
        h2 = _layernorm(h1 + ff, g2_ref[...], be2_ref[...])

        # carry activation to the next layer iteration in VMEM
        act_ref[...] = h2

        # --- final layer: fold the pooling into the kernel ---
        @pl.when(layer == n_layers - 1)
        def _():
            if pool == "clf_token":
                o_ref[...] = h2[0:1, :].astype(o_ref.dtype)        # cls row
            elif pool == "mean":
                o_ref[...] = jnp.mean(h2, axis=0,
                                      keepdims=True).astype(o_ref.dtype)
            else:
                o_ref[...] = h2.astype(o_ref.dtype)

    return kernel


# ------------------------------- model forward ------------------------------ #

def pose_vit_forward(x, params, n_heads, pool="clf_token"):
    B, L, Cin = x.shape
    D = params["proj_w"].shape[1]
    F = params["linear1_w"].shape[2]
    n_layers = params["in_proj_w"].shape[0]
    L1 = L + 1

    pooled = pool in ("clf_token", "mean")
    if pooled:
        out_shape = jax.ShapeDtypeStruct((B, 1, D), x.dtype)
        out_spec = pl.BlockSpec((None, 1, D), lambda b, l: (b, 0, 0))
    else:
        out_shape = jax.ShapeDtypeStruct((B, L1, D), x.dtype)
        out_spec = pl.BlockSpec((None, L1, D), lambda b, l: (b, 0, 0))

    c2 = lambda b, l: (0, 0)        # shared 2-D params (constant block)
    c3 = lambda b, l: (0, 0, 0)     # shared 3-D params (constant block)
    w3 = lambda b, l: (l, 0, 0)     # per-layer stacked weights (pipelined on l)

    out = pl.pallas_call(
        _make_pose_vit_kernel(n_heads, D, pool),
        out_shape=out_shape,
        grid=(B, n_layers),
        in_specs=[
            pl.BlockSpec((None, L, Cin), lambda b, l: (b, 0, 0)),  # x[b]
            pl.BlockSpec((Cin, D),       c2),                      # proj_w
            pl.BlockSpec((1, D),         c2),                      # proj_b
            pl.BlockSpec((None, L, D),   c3),                      # pos
            pl.BlockSpec((None, 1, D),   c3),                      # cls
            pl.BlockSpec((None, D, 3 * D), w3),                    # in_proj_w
            pl.BlockSpec((None, 1, 3 * D), w3),                    # in_proj_b
            pl.BlockSpec((None, D, D),     w3),                    # out_proj_w
            pl.BlockSpec((None, 1, D),     w3),                    # out_proj_b
            pl.BlockSpec((None, 1, D),     w3),                    # norm1 gamma
            pl.BlockSpec((None, 1, D),     w3),                    # norm1 beta
            pl.BlockSpec((None, D, F),     w3),                    # linear1_w
            pl.BlockSpec((None, 1, F),     w3),                    # linear1_b
            pl.BlockSpec((None, F, D),     w3),                    # linear2_w
            pl.BlockSpec((None, 1, D),     w3),                    # linear2_b
            pl.BlockSpec((None, 1, D),     w3),                    # norm2 gamma
            pl.BlockSpec((None, 1, D),     w3),                    # norm2 beta
        ],
        out_specs=out_spec,
        scratch_shapes=[pltpu.VMEM((L1, D), jnp.float32)],         # activation
        compiler_params=pltpu.CompilerParams(
            dimension_semantics=("parallel", "arbitrary")),
    )(x, params["proj_w"], params["proj_b"], params["pos"], params["cls"],
      params["in_proj_w"], params["in_proj_b"],
      params["out_proj_w"], params["out_proj_b"],
      params["norm1_g"], params["norm1_b"],
      params["linear1_w"], params["linear1_b"],
      params["linear2_w"], params["linear2_b"],
      params["norm2_g"], params["norm2_b"])

    if pooled:
        return out[:, 0]                                           # (B, D)
    return out                                                     # (B, L1, D)


# --------------------------- deterministic params --------------------------- #
# Weights are created directly in the pre-transposed (in_features, out_features)
# layout (equivalent to transposing torch (out, in) weights ONCE at load time);
# biases as (1, N); LN affine params as (1, D).  Per-layer weights are stacked
# along a leading (n_layers, ...) axis so the fused kernel can stream them.

def init_params(key, in_channels, d_model, seq_len, n_layers, dim_ff):
    def nrm(k, shape, scale=0.05):
        return scale * jax.random.normal(k, shape, dtype=jnp.float32)

    keys = jax.random.split(key, 4 + n_layers)
    params = {
        "proj_w": nrm(keys[0], (in_channels, d_model)),
        "proj_b": nrm(keys[1], (1, d_model)),
        "pos":    nrm(keys[2], (1, seq_len, d_model)),
        "cls":    nrm(keys[3], (1, 1, d_model)),
    }
    stacks = {name: [] for name in (
        "in_proj_w", "in_proj_b", "out_proj_w", "out_proj_b",
        "norm1_g", "norm1_b", "linear1_w", "linear1_b",
        "linear2_w", "linear2_b", "norm2_g", "norm2_b")}
    for li in range(n_layers):
        lk = jax.random.split(keys[4 + li], 8)
        stacks["in_proj_w"].append(nrm(lk[0], (d_model, 3 * d_model)))
        stacks["in_proj_b"].append(nrm(lk[1], (1, 3 * d_model)))
        stacks["out_proj_w"].append(nrm(lk[2], (d_model, d_model)))
        stacks["out_proj_b"].append(nrm(lk[3], (1, d_model)))
        stacks["norm1_g"].append(jnp.ones((1, d_model), jnp.float32))
        stacks["norm1_b"].append(jnp.zeros((1, d_model), jnp.float32))
        stacks["linear1_w"].append(nrm(lk[4], (d_model, dim_ff)))
        stacks["linear1_b"].append(nrm(lk[5], (1, dim_ff)))
        stacks["linear2_w"].append(nrm(lk[6], (dim_ff, d_model)))
        stacks["linear2_b"].append(nrm(lk[7], (1, d_model)))
        stacks["norm2_g"].append(jnp.ones((1, d_model), jnp.float32))
        stacks["norm2_b"].append(jnp.zeros((1, d_model), jnp.float32))
    for name, lst in stacks.items():
        params[name] = jnp.stack(lst, axis=0)
    return params


# ----------------------------------- main ----------------------------------- #

if __name__ == "__main__":
    # Small config consistent with PoseViT(in_channels, out_channels, seq_len,
    # n_layers, n_heads, pool='clf_token')
    B, L, C_IN = 2, 8, 12
    D_MODEL, N_LAYERS, N_HEADS, DIM_FF = 32, 2, 4, 64

    key = jax.random.PRNGKey(0)
    k_x, k_p = jax.random.split(key)
    x = jax.random.normal(k_x, (B, L, C_IN), dtype=jnp.float32)
    params = init_params(k_p, C_IN, D_MODEL, L, N_LAYERS, DIM_FF)

    fwd = jax.jit(partial(pose_vit_forward, n_heads=N_HEADS, pool="clf_token"))
    out = jax.block_until_ready(fwd(x, params))
    assert out.shape == (B, D_MODEL), out.shape
    print("KERNEL_OK")
</pallas_src>

<mosaic_0001>
module attributes {stable_mosaic.version = 11 : i64} {
  func.func @kernel(%arg0: i32, %arg1: i32, %arg2: memref<1x8x12xf32, #tpu.memory_space<vmem>>, %arg3: memref<12x32xf32, #tpu.memory_space<vmem>>, %arg4: memref<1x32xf32, #tpu.memory_space<vmem>>, %arg5: memref<1x8x32xf32, #tpu.memory_space<vmem>>, %arg6: memref<1x1x32xf32, #tpu.memory_space<vmem>>, %arg7: memref<1x32x96xf32, #tpu.memory_space<vmem>>, %arg8: memref<1x1x96xf32, #tpu.memory_space<vmem>>, %arg9: memref<1x32x32xf32, #tpu.memory_space<vmem>>, %arg10: memref<1x1x32xf32, #tpu.memory_space<vmem>>, %arg11: memref<1x1x32xf32, #tpu.memory_space<vmem>>, %arg12: memref<1x1x32xf32, #tpu.memory_space<vmem>>, %arg13: memref<1x32x64xf32, #tpu.memory_space<vmem>>, %arg14: memref<1x1x64xf32, #tpu.memory_space<vmem>>, %arg15: memref<1x64x32xf32, #tpu.memory_space<vmem>>, %arg16: memref<1x1x32xf32, #tpu.memory_space<vmem>>, %arg17: memref<1x1x32xf32, #tpu.memory_space<vmem>>, %arg18: memref<1x1x32xf32, #tpu.memory_space<vmem>>, %arg19: memref<1x1x32xf32, #tpu.memory_space<vmem>>, %arg20: memref<9x32xf32, #tpu.memory_space<vmem>>) attributes {dimension_semantics = [#tpu.dimension_semantics<parallel>, #tpu.dimension_semantics<arbitrary>], iteration_bounds = array<i64: 2, 2>, scalar_prefetch = 0 : i64, scratch_operands = 1 : i64, tpu.core_type = #tpu.core_type<tc>, window_params = [{transform_indices = @transform_0, window_bounds = array<i64: 1, 8, 12>}, {pipeline_mode = #tpu.pipeline_mode<synchronous>, transform_indices = @transform_1, window_bounds = array<i64: 12, 32>}, {pipeline_mode = #tpu.pipeline_mode<synchronous>, transform_indices = @transform_2, window_bounds = array<i64: 1, 32>}, {pipeline_mode = #tpu.pipeline_mode<synchronous>, transform_indices = @transform_3, window_bounds = array<i64: 1, 8, 32>}, {pipeline_mode = #tpu.pipeline_mode<synchronous>, transform_indices = @transform_4, window_bounds = array<i64: 1, 1, 32>}, {transform_indices = @transform_5, window_bounds = array<i64: 1, 32, 96>}, {transform_indices = @transform_6, window_bounds = array<i64: 1, 1, 96>}, {transform_indices = @transform_7, window_bounds = array<i64: 1, 32, 32>}, {transform_indices = @transform_8, window_bounds = array<i64: 1, 1, 32>}, {transform_indices = @transform_9, window_bounds = array<i64: 1, 1, 32>}, {transform_indices = @transform_10, window_bounds = array<i64: 1, 1, 32>}, {transform_indices = @transform_11, window_bounds = array<i64: 1, 32, 64>}, {transform_indices = @transform_12, window_bounds = array<i64: 1, 1, 64>}, {transform_indices = @transform_13, window_bounds = array<i64: 1, 64, 32>}, {transform_indices = @transform_14, window_bounds = array<i64: 1, 1, 32>}, {transform_indices = @transform_15, window_bounds = array<i64: 1, 1, 32>}, {transform_indices = @transform_16, window_bounds = array<i64: 1, 1, 32>}, {transform_indices = @transform_17, window_bounds = array<i64: 1, 1, 32>}]} {
    %c0_i32 = arith.constant 0 : i32
    %0 = arith.cmpi eq, %arg1, %c0_i32 : i32
    %1 = arith.extui %0 : i1 to i32
    %c0_i32_0 = arith.constant 0 : i32
    %2 = arith.cmpi ne, %1, %c0_i32_0 : i32
    scf.if %2 {
      %c0_79 = arith.constant 0 : index
      %c0_80 = arith.constant 0 : index
      %c0_81 = arith.constant 0 : index
      %175 = vector.load %arg2[%c0_79, %c0_80, %c0_81] : memref<1x8x12xf32, #tpu.memory_space<vmem>>, vector<1x8x12xf32>
      %176 = vector.shape_cast %175 : vector<1x8x12xf32> to vector<8x12xf32>
      %c0_82 = arith.constant 0 : index
      %c0_83 = arith.constant 0 : index
      %177 = vector.load %arg3[%c0_82, %c0_83] : memref<12x32xf32, #tpu.memory_space<vmem>>, vector<12x32xf32>
      %cst_84 = arith.constant dense<0.000000e+00> : vector<8x32xf32>
      %178 = tpu.matmul %176, %177, %cst_84 {dimension_numbers = #tpu.dot_dimension_numbers<[1], [0], [0], [1], [0, 0, 1, 1], [], []>} : vector<8x12xf32>, vector<12x32xf32>, vector<8x32xf32> -> vector<8x32xf32>
      %c0_85 = arith.constant 0 : index
      %c0_86 = arith.constant 0 : index
      %179 = vector.load %arg4[%c0_85, %c0_86] : memref<1x32xf32, #tpu.memory_space<vmem>>, vector<1x32xf32>
      %180 = vector.broadcast %179 : vector<1x32xf32> to vector<8x32xf32>
      %181 = arith.addf %178, %180 : vector<8x32xf32>
      %c0_87 = arith.constant 0 : index
      %c0_88 = arith.constant 0 : index
      %c0_89 = arith.constant 0 : index
      %182 = vector.load %arg5[%c0_87, %c0_88, %c0_89] : memref<1x8x32xf32, #tpu.memory_space<vmem>>, vector<1x8x32xf32>
      %183 = vector.shape_cast %182 : vector<1x8x32xf32> to vector<8x32xf32>
      %184 = arith.addf %181, %183 : vector<8x32xf32>
      %c0_90 = arith.constant 0 : index
      %c0_91 = arith.constant 0 : index
      %c0_92 = arith.constant 0 : index
      %185 = vector.load %arg6[%c0_90, %c0_91, %c0_92] : memref<1x1x32xf32, #tpu.memory_space<vmem>>, vector<1x1x32xf32>
      %186 = vector.shape_cast %185 : vector<1x1x32xf32> to vector<1x32xf32>
      %187 = tpu.concatenate %186, %184 in 0 : vector<1x32xf32>, vector<8x32xf32> -> vector<9x32xf32>
      %c0_93 = arith.constant 0 : index
      %c0_94 = arith.constant 0 : index
      %188 = vector.load %arg20[%c0_93, %c0_94] : memref<9x32xf32, #tpu.memory_space<vmem>>, vector<9x32xf32>
      tpu.vector_store %arg20[%c0_93, %c0_94], %187 {strides = array<i32>} : memref<9x32xf32, #tpu.memory_space<vmem>>, vector<9x32xf32>,
    } else {
    }
    %c0 = arith.constant 0 : index
    %c0_1 = arith.constant 0 : index
    %3 = vector.load %arg20[%c0, %c0_1] : memref<9x32xf32, #tpu.memory_space<vmem>>, vector<9x32xf32>
    %c0_2 = arith.constant 0 : index
    %c0_3 = arith.constant 0 : index
    %c0_4 = arith.constant 0 : index
    %4 = vector.load %arg7[%c0_2, %c0_3, %c0_4] : memref<1x32x96xf32, #tpu.memory_space<vmem>>, vector<1x32x96xf32>
    %5 = vector.shape_cast %4 : vector<1x32x96xf32> to vector<32x96xf32>
    %cst = arith.constant dense<0.000000e+00> : vector<9x96xf32>
    %6 = tpu.matmul %3, %5, %cst {dimension_numbers = #tpu.dot_dimension_numbers<[1], [0], [0], [1], [0, 0, 1, 1], [], []>} : vector<9x32xf32>, vector<32x96xf32>, vector<9x96xf32> -> vector<9x96xf32>
    %c0_5 = arith.constant 0 : index
    %c0_6 = arith.constant 0 : index
    %c0_7 = arith.constant 0 : index
    %7 = vector.load %arg8[%c0_5, %c0_6, %c0_7] : memref<1x1x96xf32, #tpu.memory_space<vmem>>, vector<1x1x96xf32>
    %8 = vector.shape_cast %7 : vector<1x1x96xf32> to vector<1x96xf32>
    %9 = vector.broadcast %8 : vector<1x96xf32> to vector<9x96xf32>
    %10 = arith.addf %6, %9 : vector<9x96xf32>
    %11 = vector.extract_strided_slice %10 {offsets = [0, 0], sizes = [9, 32], strides = [1, 1]} : vector<9x96xf32> to vector<9x32xf32>
    %12 = vector.extract_strided_slice %10 {offsets = [0, 32], sizes = [9, 32], strides = [1, 1]} : vector<9x96xf32> to vector<9x32xf32>
    %13 = vector.extract_strided_slice %10 {offsets = [0, 64], sizes = [9, 32], strides = [1, 1]} : vector<9x96xf32> to vector<9x32xf32>
    %c0_8 = arith.constant 0 : index
    %c0_9 = arith.constant 0 : index
    %c0_10 = arith.constant 0 : index
    %14 = vector.load %arg9[%c0_8, %c0_9, %c0_10] : memref<1x32x32xf32, #tpu.memory_space<vmem>>, vector<1x32x32xf32>
    %15 = vector.shape_cast %14 : vector<1x32x32xf32> to vector<32x32xf32>
    %cst_11 = arith.constant 0.000000e+00 : f32
    %16 = vector.broadcast %cst_11 : f32 to vector<9x32xf32>
    %17 = vector.extract_strided_slice %11 {offsets = [0, 0], sizes = [9, 8], strides = [1, 1]} : vector<9x32xf32> to vector<9x8xf32>
    %cst_12 = arith.constant 0.353553385 : f32
    %18 = vector.broadcast %cst_12 : f32 to vector<9x8xf32>
    %19 = arith.mulf %17, %18 : vector<9x8xf32>
    %20 = vector.extract_strided_slice %12 {offsets = [0, 0], sizes = [9, 8], strides = [1, 1]} : vector<9x32xf32> to vector<9x8xf32>
    %cst_13 = arith.constant dense<0.000000e+00> : vector<9x9xf32>
    %21 = tpu.matmul %19, %20, %cst_13 {dimension_numbers = #tpu.dot_dimension_numbers<[1], [1], [0], [0], [0, 0, 1, 0], [], []>} : vector<9x8xf32>, vector<9x8xf32>, vector<9x9xf32> -> vector<9x9xf32>
    %cst_14 = arith.constant dense<0xFF800000> : vector<9xf32>
    %22 = vector.multi_reduction <maximumf>, %21, %cst_14 [1] : vector<9x9xf32> to vector<9xf32>
    %23 = vector.shape_cast %22 : vector<9xf32> to vector<9x1xf32>
    %24 = vector.broadcast %23 : vector<9x1xf32> to vector<9x9xf32>
    %25 = arith.subf %21, %24 : vector<9x9xf32>
    %26 = math.exp %25 : vector<9x9xf32>
    %cst_15 = arith.constant dense<0.000000e+00> : vector<9xf32>
    %27 = vector.multi_reduction <add>, %26, %cst_15 [1] : vector<9x9xf32> to vector<9xf32>
    %28 = vector.shape_cast %27 : vector<9xf32> to vector<9x1xf32>
    %29 = tpu.reciprocal %28 {approx = true} : vector<9x1xf32> -> vector<9x1xf32>
    %30 = vector.broadcast %29 : vector<9x1xf32> to vector<9x9xf32>
    %31 = arith.mulf %26, %30 : vector<9x9xf32>
    %32 = vector.extract_strided_slice %13 {offsets = [0, 0], sizes = [9, 8], strides = [1, 1]} : vector<9x32xf32> to vector<9x8xf32>
    %cst_16 = arith.constant dense<0.000000e+00> : vector<9x8xf32>
    %33 = tpu.matmul %31, %32, %cst_16 {dimension_numbers = #tpu.dot_dimension_numbers<[1], [0], [0], [1], [0, 0, 1, 1], [], []>} : vector<9x9xf32>, vector<9x8xf32>, vector<9x8xf32> -> vector<9x8xf32>
    %34 = vector.extract_strided_slice %15 {offsets = [0, 0], sizes = [8, 32], strides = [1, 1]} : vector<32x32xf32> to vector<8x32xf32>
    %cst_17 = arith.constant dense<0.000000e+00> : vector<9x32xf32>
    %35 = tpu.matmul %33, %34, %cst_17 {dimension_numbers = #tpu.dot_dimension_numbers<[1], [0], [0], [1], [0, 0, 1, 1], [], []>} : vector<9x8xf32>, vector<8x32xf32>, vector<9x32xf32> -> vector<9x32xf32>
    %36 = arith.addf %16, %35 : vector<9x32xf32>
    %37 = vector.extract_strided_slice %11 {offsets = [0, 8], sizes = [9, 8], strides = [1, 1]} : vector<9x32xf32> to vector<9x8xf32>
    %cst_18 = arith.constant 0.353553385 : f32
    %38 = vector.broadcast %cst_18 : f32 to vector<9x8xf32>
    %39 = arith.mulf %37, %38 : vector<9x8xf32>
    %40 = vector.extract_strided_slice %12 {offsets = [0, 8], sizes = [9, 8], strides = [1, 1]} : vector<9x32xf32> to vector<9x8xf32>
    %cst_19 = arith.constant dense<0.000000e+00> : vector<9x9xf32>
    %41 = tpu.matmul %39, %40, %cst_19 {dimension_numbers = #tpu.dot_dimension_numbers<[1], [1], [0], [0], [0, 0, 1, 0], [], []>} : vector<9x8xf32>, vector<9x8xf32>, vector<9x9xf32> -> vector<9x9xf32>
    %cst_20 = arith.constant dense<0xFF800000> : vector<9xf32>
    %42 = vector.multi_reduction <maximumf>, %41, %cst_20 [1] : vector<9x9xf32> to vector<9xf32>
    %43 = vector.shape_cast %42 : vector<9xf32> to vector<9x1xf32>
    %44 = vector.broadcast %43 : vector<9x1xf32> to vector<9x9xf32>
    %45 = arith.subf %41, %44 : vector<9x9xf32>
    %46 = math.exp %45 : vector<9x9xf32>
    %cst_21 = arith.constant dense<0.000000e+00> : vector<9xf32>
    %47 = vector.multi_reduction <add>, %46, %cst_21 [1] : vector<9x9xf32> to vector<9xf32>
    %48 = vector.shape_cast %47 : vector<9xf32> to vector<9x1xf32>
    %49 = tpu.reciprocal %48 {approx = true} : vector<9x1xf32> -> vector<9x1xf32>
    %50 = vector.broadcast %49 : vector<9x1xf32> to vector<9x9xf32>
    %51 = arith.mulf %46, %50 : vector<9x9xf32>
    %52 = vector.extract_strided_slice %13 {offsets = [0, 8], sizes = [9, 8], strides = [1, 1]} : vector<9x32xf32> to vector<9x8xf32>
    %cst_22 = arith.constant dense<0.000000e+00> : vector<9x8xf32>
    %53 = tpu.matmul %51, %52, %cst_22 {dimension_numbers = #tpu.dot_dimension_numbers<[1], [0], [0], [1], [0, 0, 1, 1], [], []>} : vector<9x9xf32>, vector<9x8xf32>, vector<9x8xf32> -> vector<9x8xf32>
    %54 = vector.extract_strided_slice %15 {offsets = [8, 0], sizes = [8, 32], strides = [1, 1]} : vector<32x32xf32> to vector<8x32xf32>
    %cst_23 = arith.constant dense<0.000000e+00> : vector<9x32xf32>
    %55 = tpu.matmul %53, %54, %cst_23 {dimension_numbers = #tpu.dot_dimension_numbers<[1], [0], [0], [1], [0, 0, 1, 1], [], []>} : vector<9x8xf32>, vector<8x32xf32>, vector<9x32xf32> -> vector<9x32xf32>
    %56 = arith.addf %36, %55 : vector<9x32xf32>
    %57 = vector.extract_strided_slice %11 {offsets = [0, 16], sizes = [9, 8], strides = [1, 1]} : vector<9x32xf32> to vector<9x8xf32>
    %cst_24 = arith.constant 0.353553385 : f32
    %58 = vector.broadcast %cst_24 : f32 to vector<9x8xf32>
    %59 = arith.mulf %57, %58 : vector<9x8xf32>
    %60 = vector.extract_strided_slice %12 {offsets = [0, 16], sizes = [9, 8], strides = [1, 1]} : vector<9x32xf32> to vector<9x8xf32>
    %cst_25 = arith.constant dense<0.000000e+00> : vector<9x9xf32>
    %61 = tpu.matmul %59, %60, %cst_25 {dimension_numbers = #tpu.dot_dimension_numbers<[1], [1], [0], [0], [0, 0, 1, 0], [], []>} : vector<9x8xf32>, vector<9x8xf32>, vector<9x9xf32> -> vector<9x9xf32>
    %cst_26 = arith.constant dense<0xFF800000> : vector<9xf32>
    %62 = vector.multi_reduction <maximumf>, %61, %cst_26 [1] : vector<9x9xf32> to vector<9xf32>
    %63 = vector.shape_cast %62 : vector<9xf32> to vector<9x1xf32>
    %64 = vector.broadcast %63 : vector<9x1xf32> to vector<9x9xf32>
    %65 = arith.subf %61, %64 : vector<9x9xf32>
    %66 = math.exp %65 : vector<9x9xf32>
    %cst_27 = arith.constant dense<0.000000e+00> : vector<9xf32>
    %67 = vector.multi_reduction <add>, %66, %cst_27 [1] : vector<9x9xf32> to vector<9xf32>
    %68 = vector.shape_cast %67 : vector<9xf32> to vector<9x1xf32>
    %69 = tpu.reciprocal %68 {approx = true} : vector<9x1xf32> -> vector<9x1xf32>
    %70 = vector.broadcast %69 : vector<9x1xf32> to vector<9x9xf32>
    %71 = arith.mulf %66, %70 : vector<9x9xf32>
    %72 = vector.extract_strided_slice %13 {offsets = [0, 16], sizes = [9, 8], strides = [1, 1]} : vector<9x32xf32> to vector<9x8xf32>
    %cst_28 = arith.constant dense<0.000000e+00> : vector<9x8xf32>
    %73 = tpu.matmul %71, %72, %cst_28 {dimension_numbers = #tpu.dot_dimension_numbers<[1], [0], [0], [1], [0, 0, 1, 1], [], []>} : vector<9x9xf32>, vector<9x8xf32>, vector<9x8xf32> -> vector<9x8xf32>
    %74 = vector.extract_strided_slice %15 {offsets = [16, 0], sizes = [8, 32], strides = [1, 1]} : vector<32x32xf32> to vector<8x32xf32>
    %cst_29 = arith.constant dense<0.000000e+00> : vector<9x32xf32>
    %75 = tpu.matmul %73, %74, %cst_29 {dimension_numbers = #tpu.dot_dimension_numbers<[1], [0], [0], [1], [0, 0, 1, 1], [], []>} : vector<9x8xf32>, vector<8x32xf32>, vector<9x32xf32> -> vector<9x32xf32>
    %76 = arith.addf %56, %75 : vector<9x32xf32>
    %77 = vector.extract_strided_slice %11 {offsets = [0, 24], sizes = [9, 8], strides = [1, 1]} : vector<9x32xf32> to vector<9x8xf32>
    %cst_30 = arith.constant 0.353553385 : f32
    %78 = vector.broadcast %cst_30 : f32 to vector<9x8xf32>
    %79 = arith.mulf %77, %78 : vector<9x8xf32>
    %80 = vector.extract_strided_slice %12 {offsets = [0, 24], sizes = [9, 8], strides = [1, 1]} : vector<9x32xf32> to vector<9x8xf32>
    %cst_31 = arith.constant dense<0.000000e+00> : vector<9x9xf32>
    %81 = tpu.matmul %79, %80, %cst_31 {dimension_numbers = #tpu.dot_dimension_numbers<[1], [1], [0], [0], [0, 0, 1, 0], [], []>} : vector<9x8xf32>, vector<9x8xf32>, vector<9x9xf32> -> vector<9x9xf32>
    %cst_32 = arith.constant dense<0xFF800000> : vector<9xf32>
    %82 = vector.multi_reduction <maximumf>, %81, %cst_32 [1] : vector<9x9xf32> to vector<9xf32>
    %83 = vector.shape_cast %82 : vector<9xf32> to vector<9x1xf32>
    %84 = vector.broadcast %83 : vector<9x1xf32> to vector<9x9xf32>
    %85 = arith.subf %81, %84 : vector<9x9xf32>
    %86 = math.exp %85 : vector<9x9xf32>
    %cst_33 = arith.constant dense<0.000000e+00> : vector<9xf32>
    %87 = vector.multi_reduction <add>, %86, %cst_33 [1] : vector<9x9xf32> to vector<9xf32>
    %88 = vector.shape_cast %87 : vector<9xf32> to vector<9x1xf32>
    %89 = tpu.reciprocal %88 {approx = true} : vector<9x1xf32> -> vector<9x1xf32>
    %90 = vector.broadcast %89 : vector<9x1xf32> to vector<9x9xf32>
    %91 = arith.mulf %86, %90 : vector<9x9xf32>
    %92 = vector.extract_strided_slice %13 {offsets = [0, 24], sizes = [9, 8], strides = [1, 1]} : vector<9x32xf32> to vector<9x8xf32>
    %cst_34 = arith.constant dense<0.000000e+00> : vector<9x8xf32>
    %93 = tpu.matmul %91, %92, %cst_34 {dimension_numbers = #tpu.dot_dimension_numbers<[1], [0], [0], [1], [0, 0, 1, 1], [], []>} : vector<9x9xf32>, vector<9x8xf32>, vector<9x8xf32> -> vector<9x8xf32>
    %94 = vector.extract_strided_slice %15 {offsets = [24, 0], sizes = [8, 32], strides = [1, 1]} : vector<32x32xf32> to vector<8x32xf32>
    %cst_35 = arith.constant dense<0.000000e+00> : vector<9x32xf32>
    %95 = tpu.matmul %93, %94, %cst_35 {dimension_numbers = #tpu.dot_dimension_numbers<[1], [0], [0], [1], [0, 0, 1, 1], [], []>} : vector<9x8xf32>, vector<8x32xf32>, vector<9x32xf32> -> vector<9x32xf32>
    %96 = arith.addf %76, %95 : vector<9x32xf32>
    %c0_36 = arith.constant 0 : index
    %c0_37 = arith.constant 0 : index
    %c0_38 = arith.constant 0 : index
    %97 = vector.load %arg10[%c0_36, %c0_37, %c0_38] : memref<1x1x32xf32, #tpu.memory_space<vmem>>, vector<1x1x32xf32>
    %98 = vector.shape_cast %97 : vector<1x1x32xf32> to vector<1x32xf32>
    %99 = vector.broadcast %98 : vector<1x32xf32> to vector<9x32xf32>
    %100 = arith.addf %96, %99 : vector<9x32xf32>
    %101 = arith.addf %3, %100 : vector<9x32xf32>
    %c0_39 = arith.constant 0 : index
    %c0_40 = arith.constant 0 : index
    %c0_41 = arith.constant 0 : index
    %102 = vector.load %arg11[%c0_39, %c0_40, %c0_41] : memref<1x1x32xf32, #tpu.memory_space<vmem>>, vector<1x1x32xf32>
    %103 = vector.shape_cast %102 : vector<1x1x32xf32> to vector<1x32xf32>
    %c0_42 = arith.constant 0 : index
    %c0_43 = arith.constant 0 : index
    %c0_44 = arith.constant 0 : index
    %104 = vector.load %arg12[%c0_42, %c0_43, %c0_44] : memref<1x1x32xf32, #tpu.memory_space<vmem>>, vector<1x1x32xf32>
    %105 = vector.shape_cast %104 : vector<1x1x32xf32> to vector<1x32xf32>
    %cst_45 = arith.constant dense<0.000000e+00> : vector<9xf32>
    %106 = vector.multi_reduction <add>, %101, %cst_45 [1] : vector<9x32xf32> to vector<9xf32>
    %107 = vector.shape_cast %106 : vector<9xf32> to vector<9x1xf32>
    %cst_46 = arith.constant 3.200000e+01 : f32
    %108 = vector.broadcast %cst_46 : f32 to vector<9x1xf32>
    %109 = arith.divf %107, %108 : vector<9x1xf32>
    %110 = vector.broadcast %109 : vector<9x1xf32> to vector<9x32xf32>
    %111 = arith.subf %101, %110 : vector<9x32xf32>
    %112 = arith.mulf %111, %111 : vector<9x32xf32>
    %cst_47 = arith.constant dense<0.000000e+00> : vector<9xf32>
    %113 = vector.multi_reduction <add>, %112, %cst_47 [1] : vector<9x32xf32> to vector<9xf32>
    %114 = vector.shape_cast %113 : vector<9xf32> to vector<9x1xf32>
    %cst_48 = arith.constant 3.200000e+01 : f32
    %115 = vector.broadcast %cst_48 : f32 to vector<9x1xf32>
    %116 = arith.divf %114, %115 : vector<9x1xf32>
    %117 = vector.broadcast %109 : vector<9x1xf32> to vector<9x32xf32>
    %118 = arith.subf %101, %117 : vector<9x32xf32>
    %cst_49 = arith.constant 9.99999974E-6 : f32
    %119 = vector.broadcast %cst_49 : f32 to vector<9x1xf32>
    %120 = arith.addf %116, %119 : vector<9x1xf32>
    %121 = math.rsqrt %120 : vector<9x1xf32>
    %122 = vector.broadcast %121 : vector<9x1xf32> to vector<9x32xf32>
    %123 = arith.mulf %118, %122 : vector<9x32xf32>
    %124 = vector.broadcast %103 : vector<1x32xf32> to vector<9x32xf32>
    %125 = arith.mulf %123, %124 : vector<9x32xf32>
    %126 = vector.broadcast %105 : vector<1x32xf32> to vector<9x32xf32>
    %127 = arith.addf %125, %126 : vector<9x32xf32>
    %c0_50 = arith.constant 0 : index
    %c0_51 = arith.constant 0 : index
    %c0_52 = arith.constant 0 : index
    %128 = vector.load %arg13[%c0_50, %c0_51, %c0_52] : memref<1x32x64xf32, #tpu.memory_space<vmem>>, vector<1x32x64xf32>
    %129 = vector.shape_cast %128 : vector<1x32x64xf32> to vector<32x64xf32>
    %cst_53 = arith.constant dense<0.000000e+00> : vector<9x64xf32>
    %130 = tpu.matmul %127, %129, %cst_53 {dimension_numbers = #tpu.dot_dimension_numbers<[1], [0], [0], [1], [0, 0, 1, 1], [], []>} : vector<9x32xf32>, vector<32x64xf32>, vector<9x64xf32> -> vector<9x64xf32>
    %c0_54 = arith.constant 0 : index
    %c0_55 = arith.constant 0 : index
    %c0_56 = arith.constant 0 : index
    %131 = vector.load %arg14[%c0_54, %c0_55, %c0_56] : memref<1x1x64xf32, #tpu.memory_space<vmem>>, vector<1x1x64xf32>
    %132 = vector.shape_cast %131 : vector<1x1x64xf32> to vector<1x64xf32>
    %133 = vector.broadcast %132 : vector<1x64xf32> to vector<9x64xf32>
    %134 = arith.addf %130, %133 : vector<9x64xf32>
    %cst_57 = arith.constant 0.000000e+00 : f32
    %135 = vector.broadcast %cst_57 : f32 to vector<9x64xf32>
    %136 = arith.maximumf %134, %135 : vector<9x64xf32>
    %c0_58 = arith.constant 0 : index
    %c0_59 = arith.constant 0 : index
    %c0_60 = arith.constant 0 : index
    %137 = vector.load %arg15[%c0_58, %c0_59, %c0_60] : memref<1x64x32xf32, #tpu.memory_space<vmem>>, vector<1x64x32xf32>
    %138 = vector.shape_cast %137 : vector<1x64x32xf32> to vector<64x32xf32>
    %cst_61 = arith.constant dense<0.000000e+00> : vector<9x32xf32>
    %139 = tpu.matmul %136, %138, %cst_61 {dimension_numbers = #tpu.dot_dimension_numbers<[1], [0], [0], [1], [0, 0, 1, 1], [], []>} : vector<9x64xf32>, vector<64x32xf32>, vector<9x32xf32> -> vector<9x32xf32>
    %c0_62 = arith.constant 0 : index
    %c0_63 = arith.constant 0 : index
    %c0_64 = arith.constant 0 : index
    %140 = vector.load %arg16[%c0_62, %c0_63, %c0_64] : memref<1x1x32xf32, #tpu.memory_space<vmem>>, vector<1x1x32xf32>
    %141 = vector.shape_cast %140 : vector<1x1x32xf32> to vector<1x32xf32>
    %142 = vector.broadcast %141 : vector<1x32xf32> to vector<9x32xf32>
    %143 = arith.addf %139, %142 : vector<9x32xf32>
    %144 = arith.addf %127, %143 : vector<9x32xf32>
    %c0_65 = arith.constant 0 : index
    %c0_66 = arith.constant 0 : index
    %c0_67 = arith.constant 0 : index
    %145 = vector.load %arg17[%c0_65, %c0_66, %c0_67] : memref<1x1x32xf32, #tpu.memory_space<vmem>>, vector<1x1x32xf32>
    %146 = vector.shape_cast %145 : vector<1x1x32xf32> to vector<1x32xf32>
    %c0_68 = arith.constant 0 : index
    %c0_69 = arith.constant 0 : index
    %c0_70 = arith.constant 0 : index
    %147 = vector.load %arg18[%c0_68, %c0_69, %c0_70] : memref<1x1x32xf32, #tpu.memory_space<vmem>>, vector<1x1x32xf32>
    %148 = vector.shape_cast %147 : vector<1x1x32xf32> to vector<1x32xf32>
    %cst_71 = arith.constant dense<0.000000e+00> : vector<9xf32>
    %149 = vector.multi_reduction <add>, %144, %cst_71 [1] : vector<9x32xf32> to vector<9xf32>
    %150 = vector.shape_cast %149 : vector<9xf32> to vector<9x1xf32>
    %cst_72 = arith.constant 3.200000e+01 : f32
    %151 = vector.broadcast %cst_72 : f32 to vector<9x1xf32>
    %152 = arith.divf %150, %151 : vector<9x1xf32>
    %153 = vector.broadcast %152 : vector<9x1xf32> to vector<9x32xf32>
    %154 = arith.subf %144, %153 : vector<9x32xf32>
    %155 = arith.mulf %154, %154 : vector<9x32xf32>
    %cst_73 = arith.constant dense<0.000000e+00> : vector<9xf32>
    %156 = vector.multi_reduction <add>, %155, %cst_73 [1] : vector<9x32xf32> to vector<9xf32>
    %157 = vector.shape_cast %156 : vector<9xf32> to vector<9x1xf32>
    %cst_74 = arith.constant 3.200000e+01 : f32
    %158 = vector.broadcast %cst_74 : f32 to vector<9x1xf32>
    %159 = arith.divf %157, %158 : vector<9x1xf32>
    %160 = vector.broadcast %152 : vector<9x1xf32> to vector<9x32xf32>
    %161 = arith.subf %144, %160 : vector<9x32xf32>
    %cst_75 = arith.constant 9.99999974E-6 : f32
    %162 = vector.broadcast %cst_75 : f32 to vector<9x1xf32>
    %163 = arith.addf %159, %162 : vector<9x1xf32>
    %164 = math.rsqrt %163 : vector<9x1xf32>
    %165 = vector.broadcast %164 : vector<9x1xf32> to vector<9x32xf32>
    %166 = arith.mulf %161, %165 : vector<9x32xf32>
    %167 = vector.broadcast %146 : vector<1x32xf32> to vector<9x32xf32>
    %168 = arith.mulf %166, %167 : vector<9x32xf32>
    %169 = vector.broadcast %148 : vector<1x32xf32> to vector<9x32xf32>
    %170 = arith.addf %168, %169 : vector<9x32xf32>
    %c0_76 = arith.constant 0 : index
    %c0_77 = arith.constant 0 : index
    %171 = vector.load %arg20[%c0_76, %c0_77] : memref<9x32xf32, #tpu.memory_space<vmem>>, vector<9x32xf32>
    tpu.vector_store %arg20[%c0_76, %c0_77], %170 {strides = array<i32>} : memref<9x32xf32, #tpu.memory_space<vmem>>, vector<9x32xf32>,
    %c1_i32 = arith.constant 1 : i32
    %172 = arith.cmpi eq, %arg1, %c1_i32 : i32
    %173 = arith.extui %172 : i1 to i32
    %c0_i32_78 = arith.constant 0 : i32
    %174 = arith.cmpi ne, %173, %c0_i32_78 : i32
    scf.if %174 {
      %175 = vector.extract_strided_slice %170 {offsets = [0, 0], sizes = [1, 32], strides = [1, 1]} : vector<9x32xf32> to vector<1x32xf32>
      %c0_79 = arith.constant 0 : index
      %c0_80 = arith.constant 0 : index
      %c0_81 = arith.constant 0 : index
      %176 = vector.load %arg19[%c0_79, %c0_80, %c0_81] : memref<1x1x32xf32, #tpu.memory_space<vmem>>, vector<1x1x32xf32>
      %177 = vector.shape_cast %176 : vector<1x1x32xf32> to vector<1x32xf32>
      %178 = vector.shape_cast %175 : vector<1x32xf32> to vector<1x1x32xf32>
      tpu.vector_store %arg19[%c0_79, %c0_80, %c0_81], %178 {strides = array<i32>} : memref<1x1x32xf32, #tpu.memory_space<vmem>>, vector<1x1x32xf32>,
    } else {
    }
    return
  }
  func.func @transform_0(%arg0: i32, %arg1: i32) -> (i32, i32, i32) {
    %c0_i32 = arith.constant 0 : i32
    %c0_i32_0 = arith.constant 0 : i32
    %c0_i32_1 = arith.constant 0 : i32
    return %arg0, %c0_i32, %c0_i32_0 : i32, i32, i32
  }
  func.func @transform_1(%arg0: i32, %arg1: i32) -> (i32, i32) {
    %c0_i32 = arith.constant 0 : i32
    %c0_i32_0 = arith.constant 0 : i32
    %c0_i32_1 = arith.constant 0 : i32
    return %c0_i32, %c0_i32_0 : i32, i32
  }
  func.func @transform_2(%arg0: i32, %arg1: i32) -> (i32, i32) {
    %c0_i32 = arith.constant 0 : i32
    %c0_i32_0 = arith.constant 0 : i32
    %c0_i32_1 = arith.constant 0 : i32
    return %c0_i32, %c0_i32_0 : i32, i32
  }
  func.func @transform_3(%arg0: i32, %arg1: i32) -> (i32, i32, i32) {
    %c0_i32 = arith.constant 0 : i32
    %c0_i32_0 = arith.constant 0 : i32
    %c0_i32_1 = arith.constant 0 : i32
    %c0_i32_2 = arith.constant 0 : i32
    return %c0_i32, %c0_i32_0, %c0_i32_1 : i32, i32, i32
  }
  func.func @transform_4(%arg0: i32, %arg1: i32) -> (i32, i32, i32) {
    %c0_i32 = arith.constant 0 : i32
    %c0_i32_0 = arith.constant 0 : i32
    %c0_i32_1 = arith.constant 0 : i32
    %c0_i32_2 = arith.constant 0 : i32
    return %c0_i32, %c0_i32_0, %c0_i32_1 : i32, i32, i32
  }
  func.func @transform_5(%arg0: i32, %arg1: i32) -> (i32, i32, i32) {
    %c0_i32 = arith.constant 0 : i32
    %c0_i32_0 = arith.constant 0 : i32
    %c0_i32_1 = arith.constant 0 : i32
    return %arg1, %c0_i32, %c0_i32_0 : i32, i32, i32
  }
  func.func @transform_6(%arg0: i32, %arg1: i32) -> (i32, i32, i32) {
    %c0_i32 = arith.constant 0 : i32
    %c0_i32_0 = arith.constant 0 : i32
    %c0_i32_1 = arith.constant 0 : i32
    return %arg1, %c0_i32, %c0_i32_0 : i32, i32, i32
  }
  func.func @transform_7(%arg0: i32, %arg1: i32) -> (i32, i32, i32) {
    %c0_i32 = arith.constant 0 : i32
    %c0_i32_0 = arith.constant 0 : i32
    %c0_i32_1 = arith.constant 0 : i32
    return %arg1, %c0_i32, %c0_i32_0 : i32, i32, i32
  }
  func.func @transform_8(%arg0: i32, %arg1: i32) -> (i32, i32, i32) {
    %c0_i32 = arith.constant 0 : i32
    %c0_i32_0 = arith.constant 0 : i32
    %c0_i32_1 = arith.constant 0 : i32
    return %arg1, %c0_i32, %c0_i32_0 : i32, i32, i32
  }
  func.func @transform_9(%arg0: i32, %arg1: i32) -> (i32, i32, i32) {
    %c0_i32 = arith.constant 0 : i32
    %c0_i32_0 = arith.constant 0 : i32
    %c0_i32_1 = arith.constant 0 : i32
    return %arg1, %c0_i32, %c0_i32_0 : i32, i32, i32
  }
  func.func @transform_10(%arg0: i32, %arg1: i32) -> (i32, i32, i32) {
    %c0_i32 = arith.constant 0 : i32
    %c0_i32_0 = arith.constant 0 : i32
    %c0_i32_1 = arith.constant 0 : i32
    return %arg1, %c0_i32, %c0_i32_0 : i32, i32, i32
  }
  func.func @transform_11(%arg0: i32, %arg1: i32) -> (i32, i32, i32) {
    %c0_i32 = arith.constant 0 : i32
    %c0_i32_0 = arith.constant 0 : i32
    %c0_i32_1 = arith.constant 0 : i32
    return %arg1, %c0_i32, %c0_i32_0 : i32, i32, i32
  }
  func.func @transform_12(%arg0: i32, %arg1: i32) -> (i32, i32, i32) {
    %c0_i32 = arith.constant 0 : i32
    %c0_i32_0 = arith.constant 0 : i32
    %c0_i32_1 = arith.constant 0 : i32
    return %arg1, %c0_i32, %c0_i32_0 : i32, i32, i32
  }
  func.func @transform_13(%arg0: i32, %arg1: i32) -> (i32, i32, i32) {
    %c0_i32 = arith.constant 0 : i32
    %c0_i32_0 = arith.constant 0 : i32
    %c0_i32_1 = arith.constant 0 : i32
    return %arg1, %c0_i32, %c0_i32_0 : i32, i32, i32
  }
  func.func @transform_14(%arg0: i32, %arg1: i32) -> (i32, i32, i32) {
    %c0_i32 = arith.constant 0 : i32
    %c0_i32_0 = arith.constant 0 : i32
    %c0_i32_1 = arith.constant 0 : i32
    return %arg1, %c0_i32, %c0_i32_0 : i32, i32, i32
  }
  func.func @transform_15(%arg0: i32, %arg1: i32) -> (i32, i32, i32) {
    %c0_i32 = arith.constant 0 : i32
    %c0_i32_0 = arith.constant 0 : i32
    %c0_i32_1 = arith.constant 0 : i32
    return %arg1, %c0_i32, %c0_i32_0 : i32, i32, i32
  }
  func.func @transform_16(%arg0: i32, %arg1: i32) -> (i32, i32, i32) {
    %c0_i32 = arith.constant 0 : i32
    %c0_i32_0 = arith.constant 0 : i32
    %c0_i32_1 = arith.constant 0 : i32
    return %arg1, %c0_i32, %c0_i32_0 : i32, i32, i32
  }
  func.func @transform_17(%arg0: i32, %arg1: i32) -> (i32, i32, i32) {
    %c0_i32 = arith.constant 0 : i32
    %c0_i32_0 = arith.constant 0 : i32
    %c0_i32_1 = arith.constant 0 : i32
    return %arg0, %c0_i32, %c0_i32_0 : i32, i32, i32
  }
}

</mosaic_0001>

<llo_original>
// kernel: pose_vit_forward.1
$region0: #{pose_vit_forward.1}
  #allocation0 [shape = 'u32[]', space=smem, size = 0x4, offset = 0x4, fixed_abs, tag = 'smem constant byte address 0x4 - core index']
  #allocation1 [shape = 'u32[144,128]{1,0:T(1,128)}', space=vmem, size = 0x12000, scoped, tag = 'internal scratch']
  #allocation2 [shape = 'f32[9,32]{1,0:T(8,128)}', space=vmem, size = 0x2000, scoped, tag = 'scratch operand']
  %s0 = inlined_call_operand.hbm [shape: f32[2,8,12], index: 0, kind: input, shape index: {}]
  %s1 = inlined_call_operand.vmem [shape: f32[12,32], index: 1, kind: input, shape index: {}]
  %s2 = inlined_call_operand.vmem [shape: f32[1,32], index: 2, kind: input, shape index: {}]
  %s3 = inlined_call_operand.vmem [shape: f32[1,8,32], index: 3, kind: input, shape index: {}]
  %s4 = inlined_call_operand.hbm [shape: f32[1,1,32], index: 4, kind: input, shape index: {}]
  %s5 = inlined_call_operand.vmem [shape: f32[2,32,96], index: 5, kind: input, shape index: {}]
  %s6 = inlined_call_operand.hbm [shape: f32[2,1,96], index: 6, kind: input, shape index: {}]
  %s7 = inlined_call_operand.vmem [shape: f32[2,32,32], index: 7, kind: input, shape index: {}]
  %s8 = inlined_call_operand.hbm [shape: f32[2,1,32], index: 8, kind: input, shape index: {}]
  %s9 = inlined_call_operand.hbm [shape: f32[2,1,32], index: 9, kind: input, shape index: {}]
  %s10 = inlined_call_operand.hbm [shape: f32[2,1,32], index: 10, kind: input, shape index: {}]
  %s11 = inlined_call_operand.vmem [shape: f32[2,32,64], index: 11, kind: input, shape index: {}]
  %s12 = inlined_call_operand.hbm [shape: f32[2,1,64], index: 12, kind: input, shape index: {}]
  %s13 = inlined_call_operand.vmem [shape: f32[2,64,32], index: 13, kind: input, shape index: {}]
  %s14 = inlined_call_operand.hbm [shape: f32[2,1,32], index: 14, kind: input, shape index: {}]
  %s15 = inlined_call_operand.hbm [shape: f32[2,1,32], index: 15, kind: input, shape index: {}]
  %s16 = inlined_call_operand.hbm [shape: f32[2,1,32], index: 16, kind: input, shape index: {}]
  %s17 = inlined_call_operand.hbm [shape: f32[2,1,32], index: 17, kind: output, shape index: {}]
  %s18 = sld [smem:[#allocation0]]
  $region149: #{pose_vit_forward.1} parent=0
    _
  %s20 = ssub.s32 1, %s18
  %s21 = scalar_select 0, %s20, %s18
  $region1: #{pose_vit_forward.1} parent=0
    #allocation3 [shape = 'u8[8192]{0}', space=vmem, size = 0x2000, scoped, tag = 'input window, operand 0']
    #allocation4 [shape = 's32[2]{0}', space=sflag, size = 0x8, scoped, tag = 'scoped memory for pose_vit_forward.1']
    #allocation5 [shape = 's32[2]{0}', space=sflag, size = 0x8, scoped, tag = 'scoped memory for pose_vit_forward.1']
    #allocation6 [shape = 'u8[512]{0}', space=vmem, size = 0x400, scoped, tag = 'input window, operand 4, single buffered']
    #allocation7 [shape = 's32[1]{0}', space=sflag, size = 0x4, scoped, tag = 'scoped memory for pose_vit_forward.1']
    #allocation8 [shape = 'u8[1024]{0}', space=vmem, size = 0x400, scoped, tag = 'input window, operand 6']
    #allocation9 [shape = 'u8[1024]{0}', space=vmem, size = 0x400, scoped, tag = 'input window, operand 8']
    #allocation10 [shape = 'u8[1024]{0}', space=vmem, size = 0x400, scoped, tag = 'input window, operand 9']
    #allocation11 [shape = 'u8[1024]{0}', space=vmem, size = 0x400, scoped, tag = 'input window, operand 10']
    #allocation12 [shape = 'u8[1024]{0}', space=vmem, size = 0x400, scoped, tag = 'input window, operand 12']
    #allocation13 [shape = 'u8[1024]{0}', space=vmem, size = 0x400, scoped, tag = 'input window, operand 14']
    #allocation14 [shape = 'u8[1024]{0}', space=vmem, size = 0x400, scoped, tag = 'input window, operand 15']
    #allocation15 [shape = 'u8[1024]{0}', space=vmem, size = 0x400, scoped, tag = 'input window, operand 16']
    #allocation16 [shape = 'u8[1024]{0}', space=vmem, size = 0x400, scoped, tag = 'output window, operand 0']
    %22 = vsyncpa [#allocation4], 0
    %s23 = scalar_lea.sflag [#allocation4], 1
    %24 = vsyncpa %s23, 0
    %25 = vsyncpa [#allocation7], 0
    %26 = vsyncpa [#allocation5], 0
    %s27 = scalar_lea.sflag [#allocation5], 1
    %28 = vsyncpa %s27, 0
    loop: start=0, step=1, limit=6
    $region2: #{pose_vit_forward.1} parent=1 // loop_pre_header
      _
    $region3: #{pose_vit_forward.1} parent=1 // loop_header
      %s30 = sphi 0, %s34
      %p31 = scmp.ge.s32.totalorder %s30, 6
      %s37 = sphi 0, %s49
      %s38 = sphi 0, %s45
      %s39 = sphi 0, %s37
      %s40 = sphi 0, %s38
      %s41 = sphi 0, %s39
      %s42 = sphi 0, %s40
      %s52 = sphi 0, %s54
      %s55 = sphi 0, %s52
      %s56 = sphi 0, %s55
      %s72 = sphi 0, %s56
      %s76 = sphi 0, %s76
      %s78 = sphi 0, %s76
      %s79 = sphi 0, %s78
      %s93 = sphi 0, %s79
      %s97 = sphi 0, %s97
      %s99 = sphi 0, %s97
      %s100 = sphi 0, %s99
      %s114 = sphi 0, %s100
      %s118 = sphi 0, %s118
      %s120 = sphi 0, %s118
      %s121 = sphi 0, %s120
      %s135 = sphi 0, %s121
      %s139 = sphi 0, %s139
      %s141 = sphi 0, %s139
      %s142 = sphi 0, %s141
      %s156 = sphi 0, %s142
      %s162 = sphi 0, %s164
      %s165 = sphi 0, %s162
      %s166 = sphi 0, %s165
      %s182 = sphi 0, %s166
      %s188 = sphi 0, %s190
      %s191 = sphi 0, %s188
      %s192 = sphi 0, %s191
      %s208 = sphi 0, %s192
      %s214 = sphi 0, %s216
      %s217 = sphi 0, %s214
      %s218 = sphi 0, %s217
      %s234 = sphi 0, %s218
      %s240 = sphi 0, %s242
      %s243 = sphi 0, %s240
      %s244 = sphi 0, %s243
      %s260 = sphi 0, %s244
      %s266 = sphi 0, %s268
      %s269 = sphi 0, %s266
      %s270 = sphi 0, %s269
      %s286 = sphi 0, %s270
      %s292 = sphi 0, %s294
      %s295 = sphi 0, %s292
      %s296 = sphi 0, %s295
      %s312 = sphi 0, %s296
      %s318 = sphi 0, %s320
      %s321 = sphi 0, %s318
      %s322 = sphi 0, %s321
      %s338 = sphi 0, %s322
      %s344 = sphi 0, %s346
      %s347 = sphi 0, %s344
      %s348 = sphi 0, %s347
      %s364 = sphi 0, %s348
      %s370 = sphi 0, %s372
      %s373 = sphi 0, %s370
      %s374 = sphi 0, %s373
      %s390 = sphi 0, %s374
      %s396 = sphi 0, %s398
      %s399 = sphi 0, %s396
      %s400 = sphi 0, %s399
      %s416 = sphi 0, %s400
      %s422 = sphi 0, %s424
      %s425 = sphi 0, %s422
      %s426 = sphi 0, %s425
      %s442 = sphi 0, %s426
      %s448 = sphi 0, %s450
      %s451 = sphi 0, %s448
      %s452 = sphi 0, %s451
      %s468 = sphi 0, %s452
      %s474 = sphi 0, %s476
      %s477 = sphi 0, %s474
      %s478 = sphi 0, %s477
      %s494 = sphi 0, %s478
    $region4: #{pose_vit_forward.1} parent=1 // loop_header_branch
      %33 = sbr.rel (%p31) target = $region8
    $region5: #{pose_vit_forward.1} parent=1 // loop_body
      %s35 = ssub.s32 %s30, 1
      %s36 = ssub.s32 %s30, 2
      %s43 = sadd.s32 1, %s38
      %p44 = scmp.ge.s32.totalorder %s43, 2
      %s45 = scalar_select %p44, 0, %s43
      %s46 = sadd.s32 1, %s37
      %s47 = scalar_select %p44, %s46, %s37
      %p48 = scmp.ge.s32.totalorder %s47, 2
      %s49 = scalar_select %p48, 0, %s47
      %s50 = ssub.s32 %s37, %s49
      %p51 = scmp.eq.s32.totalorder %s50, 0
      %s53 = sadd.s32 %s52, 1
      %s54 = scalar_select %p51, %s52, %s53
      %p57 = pneg %p51
      %p58 = scmp.eq.s32.totalorder %s30, 3
      %p59 = por %p57, %p58
      %p60 = scmp.ne.s32.totalorder %s52, %s55
      %p61 = scmp.eq.s32.totalorder %s30, 0
      %p62 = por %p60, %p61
      %p63 = scmp.ne.s32.totalorder %s52, %s55
      %p64 = scmp.eq.s32.totalorder %s35, 3
      %p65 = por %p63, %p64
      %p66 = scmp.ne.s32.totalorder %s55, %s56
      %p67 = scmp.eq.s32.totalorder %s35, 0
      %p68 = por %p66, %p67
      %p69 = scmp.ne.s32.totalorder %s55, %s56
      %p70 = scmp.eq.s32.totalorder %s36, 3
      %p71 = por %p69, %p70
      %p73 = scmp.ne.s32.totalorder %s56, %s72
      %p74 = scmp.eq.s32.totalorder %s36, 0
      %p75 = por %p73, %p74
      %s77 = sadd.s32 %s76, 1
      %p80 = scmp.eq.s32.totalorder %s30, 3
      %p81 = scmp.ne.s32.totalorder %s76, %s78
      %p82 = scmp.eq.s32.totalorder %s30, 0
      %p83 = por %p81, %p82
      %p84 = scmp.ne.s32.totalorder %s76, %s78
      %p85 = scmp.eq.s32.totalorder %s35, 3
      %p86 = por %p84, %p85
      %p87 = scmp.ne.s32.totalorder %s78, %s79
      %p88 = scmp.eq.s32.totalorder %s35, 0
      %p89 = por %p87, %p88
      %p90 = scmp.ne.s32.totalorder %s78, %s79
      %p91 = scmp.eq.s32.totalorder %s36, 3
      %p92 = por %p90, %p91
      %p94 = scmp.ne.s32.totalorder %s79, %s93
      %p95 = scmp.eq.s32.totalorder %s36, 0
      %p96 = por %p94, %p95
      %s98 = sadd.s32 %s97, 1
      %p101 = scmp.eq.s32.totalorder %s30, 3
      %p102 = scmp.ne.s32.totalorder %s97, %s99
      %p103 = scmp.eq.s32.totalorder %s30, 0
      %p104 = por %p102, %p103
      %p105 = scmp.ne.s32.totalorder %s97, %s99
      %p106 = scmp.eq.s32.totalorder %s35, 3
      %p107 = por %p105, %p106
      %p108 = scmp.ne.s32.totalorder %s99, %s100
      %p109 = scmp.eq.s32.totalorder %s35, 0
      %p110 = por %p108, %p109
      %p111 = scmp.ne.s32.totalorder %s99, %s100
      %p112 = scmp.eq.s32.totalorder %s36, 3
      %p113 = por %p111, %p112
      %p115 = scmp.ne.s32.totalorder %s100, %s114
      %p116 = scmp.eq.s32.totalorder %s36, 0
      %p117 = por %p115, %p116
      %s119 = sadd.s32 %s118, 1
      %p122 = scmp.eq.s32.totalorder %s30, 3
      %p123 = scmp.ne.s32.totalorder %s118, %s120
      %p124 = scmp.eq.s32.totalorder %s30, 0
      %p125 = por %p123, %p124
      %p126 = scmp.ne.s32.totalorder %s118, %s120
      %p127 = scmp.eq.s32.totalorder %s35, 3
      %p128 = por %p126, %p127
      %p129 = scmp.ne.s32.totalorder %s120, %s121
      %p130 = scmp.eq.s32.totalorder %s35, 0
      %p131 = por %p129, %p130
      %p132 = scmp.ne.s32.totalorder %s120, %s121
      %p133 = scmp.eq.s32.totalorder %s36, 3
      %p134 = por %p132, %p133
      %p136 = scmp.ne.s32.totalorder %s121, %s135
      %p137 = scmp.eq.s32.totalorder %s36, 0
      %p138 = por %p136, %p137
      %s140 = sadd.s32 %s139, 1
      %p143 = scmp.eq.s32.totalorder %s30, 3
      %p144 = scmp.ne.s32.totalorder %s139, %s141
      %p145 = scmp.eq.s32.totalorder %s30, 0
      %p146 = por %p144, %p145
      %p147 = scmp.ne.s32.totalorder %s139, %s141
      %p148 = scmp.eq.s32.totalorder %s35, 3
      %p149 = por %p147, %p148
      %p150 = scmp.ne.s32.totalorder %s141, %s142
      %p151 = scmp.eq.s32.totalorder %s35, 0
      %p152 = por %p150, %p151
      %p153 = scmp.ne.s32.totalorder %s141, %s142
      %p154 = scmp.eq.s32.totalorder %s36, 3
      %p155 = por %p153, %p154
      %p157 = scmp.ne.s32.totalorder %s142, %s156
      %p158 = scmp.eq.s32.totalorder %s36, 0
      %p159 = por %p157, %p158
      %s160 = ssub.s32 %s38, %s45
      %p161 = scmp.eq.s32.totalorder %s160, 0
      %s163 = sadd.s32 %s162, 1
      %s164 = scalar_select %p161, %s162, %s163
      %p167 = pneg %p161
      %p168 = scmp.eq.s32.totalorder %s30, 3
      %p169 = por %p167, %p168
      %p170 = scmp.ne.s32.totalorder %s162, %s165
      %p171 = scmp.eq.s32.totalorder %s30, 0
      %p172 = por %p170, %p171
      %p173 = scmp.ne.s32.totalorder %s162, %s165
      %p174 = scmp.eq.s32.totalorder %s35, 3
      %p175 = por %p173, %p174
      %p176 = scmp.ne.s32.totalorder %s165, %s166
      %p177 = scmp.eq.s32.totalorder %s35, 0
      %p178 = por %p176, %p177
      %p179 = scmp.ne.s32.totalorder %s165, %s166
      %p180 = scmp.eq.s32.totalorder %s36, 3
      %p181 = por %p179, %p180
      %p183 = scmp.ne.s32.totalorder %s166, %s182
      %p184 = scmp.eq.s32.totalorder %s36, 0
      %p185 = por %p183, %p184
      %s186 = ssub.s32 %s38, %s45
      %p187 = scmp.eq.s32.totalorder %s186, 0
      %s189 = sadd.s32 %s188, 1
      %s190 = scalar_select %p187, %s188, %s189
      %p193 = pneg %p187
      %p194 = scmp.eq.s32.totalorder %s30, 3
      %p195 = por %p193, %p194
      %p196 = scmp.ne.s32.totalorder %s188, %s191
      %p197 = scmp.eq.s32.totalorder %s30, 0
      %p198 = por %p196, %p197
      %p199 = scmp.ne.s32.totalorder %s188, %s191
      %p200 = scmp.eq.s32.totalorder %s35, 3
      %p201 = por %p199, %p200
      %p202 = scmp.ne.s32.totalorder %s191, %s192
      %p203 = scmp.eq.s32.totalorder %s35, 0
      %p204 = por %p202, %p203
      %p205 = scmp.ne.s32.totalorder %s191, %s192
      %p206 = scmp.eq.s32.totalorder %s36, 3
      %p207 = por %p205, %p206
      %p209 = scmp.ne.s32.totalorder %s192, %s208
      %p210 = scmp.eq.s32.totalorder %s36, 0
      %p211 = por %p209, %p210
      %s212 = ssub.s32 %s38, %s45
      %p213 = scmp.eq.s32.totalorder %s212, 0
      %s215 = sadd.s32 %s214, 1
      %s216 = scalar_select %p213, %s214, %s215
      %p219 = pneg %p213
      %p220 = scmp.eq.s32.totalorder %s30, 3
      %p221 = por %p219, %p220
      %p222 = scmp.ne.s32.totalorder %s214, %s217
      %p223 = scmp.eq.s32.totalorder %s30, 0
      %p224 = por %p222, %p223
      %p225 = scmp.ne.s32.totalorder %s214, %s217
      %p226 = scmp.eq.s32.totalorder %s35, 3
      %p227 = por %p225, %p226
      %p228 = scmp.ne.s32.totalorder %s217, %s218
      %p229 = scmp.eq.s32.totalorder %s35, 0
      %p230 = por %p228, %p229
      %p231 = scmp.ne.s32.totalorder %s217, %s218
      %p232 = scmp.eq.s32.totalorder %s36, 3
      %p233 = por %p231, %p232
      %p235 = scmp.ne.s32.totalorder %s218, %s234
      %p236 = scmp.eq.s32.totalorder %s36, 0
      %p237 = por %p235, %p236
      %s238 = ssub.s32 %s38, %s45
      %p239 = scmp.eq.s32.totalorder %s238, 0
      %s241 = sadd.s32 %s240, 1
      %s242 = scalar_select %p239, %s240, %s241
      %p245 = pneg %p239
      %p246 = scmp.eq.s32.totalorder %s30, 3
      %p247 = por %p245, %p246
      %p248 = scmp.ne.s32.totalorder %s240, %s243
      %p249 = scmp.eq.s32.totalorder %s30, 0
      %p250 = por %p248, %p249
      %p251 = scmp.ne.s32.totalorder %s240, %s243
      %p252 = scmp.eq.s32.totalorder %s35, 3
      %p253 = por %p251, %p252
      %p254 = scmp.ne.s32.totalorder %s243, %s244
      %p255 = scmp.eq.s32.totalorder %s35, 0
      %p256 = por %p254, %p255
      %p257 = scmp.ne.s32.totalorder %s243, %s244
      %p258 = scmp.eq.s32.totalorder %s36, 3
      %p259 = por %p257, %p258
      %p261 = scmp.ne.s32.totalorder %s244, %s260
      %p262 = scmp.eq.s32.totalorder %s36, 0
      %p263 = por %p261, %p262
      %s264 = ssub.s32 %s38, %s45
      %p265 = scmp.eq.s32.totalorder %s264, 0
      %s267 = sadd.s32 %s266, 1
      %s268 = scalar_select %p265, %s266, %s267
      %p271 = pneg %p265
      %p272 = scmp.eq.s32.totalorder %s30, 3
      %p273 = por %p271, %p272
      %p274 = scmp.ne.s32.totalorder %s266, %s269
      %p275 = scmp.eq.s32.totalorder %s30, 0
      %p276 = por %p274, %p275
      %p277 = scmp.ne.s32.totalorder %s266, %s269
      %p278 = scmp.eq.s32.totalorder %s35, 3
      %p279 = por %p277, %p278
      %p280 = scmp.ne.s32.totalorder %s269, %s270
      %p281 = scmp.eq.s32.totalorder %s35, 0
      %p282 = por %p280, %p281
      %p283 = scmp.ne.s32.totalorder %s269, %s270
      %p284 = scmp.eq.s32.totalorder %s36, 3
      %p285 = por %p283, %p284
      %p287 = scmp.ne.s32.totalorder %s270, %s286
      %p288 = scmp.eq.s32.totalorder %s36, 0
      %p289 = por %p287, %p288
      %s290 = ssub.s32 %s38, %s45
      %p291 = scmp.eq.s32.totalorder %s290, 0
      %s293 = sadd.s32 %s292, 1
      %s294 = scalar_select %p291, %s292, %s293
      %p297 = pneg %p291
      %p298 = scmp.eq.s32.totalorder %s30, 3
      %p299 = por %p297, %p298
      %p300 = scmp.ne.s32.totalorder %s292, %s295
      %p301 = scmp.eq.s32.totalorder %s30, 0
      %p302 = por %p300, %p301
      %p303 = scmp.ne.s32.totalorder %s292, %s295
      %p304 = scmp.eq.s32.totalorder %s35, 3
      %p305 = por %p303, %p304
      %p306 = scmp.ne.s32.totalorder %s295, %s296
      %p307 = scmp.eq.s32.totalorder %s35, 0
      %p308 = por %p306, %p307
      %p309 = scmp.ne.s32.totalorder %s295, %s296
      %p310 = scmp.eq.s32.totalorder %s36, 3
      %p311 = por %p309, %p310
      %p313 = scmp.ne.s32.totalorder %s296, %s312
      %p314 = scmp.eq.s32.totalorder %s36, 0
      %p315 = por %p313, %p314
      %s316 = ssub.s32 %s38, %s45
      %p317 = scmp.eq.s32.totalorder %s316, 0
      %s319 = sadd.s32 %s318, 1
      %s320 = scalar_select %p317, %s318, %s319
      %p323 = pneg %p317
      %p324 = scmp.eq.s32.totalorder %s30, 3
      %p325 = por %p323, %p324
      %p326 = scmp.ne.s32.totalorder %s318, %s321
      %p327 = scmp.eq.s32.totalorder %s30, 0
      %p328 = por %p326, %p327
      %p329 = scmp.ne.s32.totalorder %s318, %s321
      %p330 = scmp.eq.s32.totalorder %s35, 3
      %p331 = por %p329, %p330
      %p332 = scmp.ne.s32.totalorder %s321, %s322
      %p333 = scmp.eq.s32.totalorder %s35, 0
      %p334 = por %p332, %p333
      %p335 = scmp.ne.s32.totalorder %s321, %s322
      %p336 = scmp.eq.s32.totalorder %s36, 3
      %p337 = por %p335, %p336
      %p339 = scmp.ne.s32.totalorder %s322, %s338
      %p340 = scmp.eq.s32.totalorder %s36, 0
      %p341 = por %p339, %p340
      %s342 = ssub.s32 %s38, %s45
      %p343 = scmp.eq.s32.totalorder %s342, 0
      %s345 = sadd.s32 %s344, 1
      %s346 = scalar_select %p343, %s344, %s345
      %p349 = pneg %p343
      %p350 = scmp.eq.s32.totalorder %s30, 3
      %p351 = por %p349, %p350
      %p352 = scmp.ne.s32.totalorder %s344, %s347
      %p353 = scmp.eq.s32.totalorder %s30, 0
      %p354 = por %p352, %p353
      %p355 = scmp.ne.s32.totalorder %s344, %s347
      %p356 = scmp.eq.s32.totalorder %s35, 3
      %p357 = por %p355, %p356
      %p358 = scmp.ne.s32.totalorder %s347, %s348
      %p359 = scmp.eq.s32.totalorder %s35, 0
      %p360 = por %p358, %p359
      %p361 = scmp.ne.s32.totalorder %s347, %s348
      %p362 = scmp.eq.s32.totalorder %s36, 3
      %p363 = por %p361, %p362
      %p365 = scmp.ne.s32.totalorder %s348, %s364
      %p366 = scmp.eq.s32.totalorder %s36, 0
      %p367 = por %p365, %p366
      %s368 = ssub.s32 %s38, %s45
      %p369 = scmp.eq.s32.totalorder %s368, 0
      %s371 = sadd.s32 %s370, 1
      %s372 = scalar_select %p369, %s370, %s371
      %p375 = pneg %p369
      %p376 = scmp.eq.s32.totalorder %s30, 3
      %p377 = por %p375, %p376
      %p378 = scmp.ne.s32.totalorder %s370, %s373
      %p379 = scmp.eq.s32.totalorder %s30, 0
      %p380 = por %p378, %p379
      %p381 = scmp.ne.s32.totalorder %s370, %s373
      %p382 = scmp.eq.s32.totalorder %s35, 3
      %p383 = por %p381, %p382
      %p384 = scmp.ne.s32.totalorder %s373, %s374
      %p385 = scmp.eq.s32.totalorder %s35, 0
      %p386 = por %p384, %p385
      %p387 = scmp.ne.s32.totalorder %s373, %s374
      %p388 = scmp.eq.s32.totalorder %s36, 3
      %p389 = por %p387, %p388
      %p391 = scmp.ne.s32.totalorder %s374, %s390
      %p392 = scmp.eq.s32.totalorder %s36, 0
      %p393 = por %p391, %p392
      %s394 = ssub.s32 %s38, %s45
      %p395 = scmp.eq.s32.totalorder %s394, 0
      %s397 = sadd.s32 %s396, 1
      %s398 = scalar_select %p395, %s396, %s397
      %p401 = pneg %p395
      %p402 = scmp.eq.s32.totalorder %s30, 3
      %p403 = por %p401, %p402
      %p404 = scmp.ne.s32.totalorder %s396, %s399
      %p405 = scmp.eq.s32.totalorder %s30, 0
      %p406 = por %p404, %p405
      %p407 = scmp.ne.s32.totalorder %s396, %s399
      %p408 = scmp.eq.s32.totalorder %s35, 3
      %p409 = por %p407, %p408
      %p410 = scmp.ne.s32.totalorder %s399, %s400
      %p411 = scmp.eq.s32.totalorder %s35, 0
      %p412 = por %p410, %p411
      %p413 = scmp.ne.s32.totalorder %s399, %s400
      %p414 = scmp.eq.s32.totalorder %s36, 3
      %p415 = por %p413, %p414
      %p417 = scmp.ne.s32.totalorder %s400, %s416
      %p418 = scmp.eq.s32.totalorder %s36, 0
      %p419 = por %p417, %p418
      %s420 = ssub.s32 %s38, %s45
      %p421 = scmp.eq.s32.totalorder %s420, 0
      %s423 = sadd.s32 %s422, 1
      %s424 = scalar_select %p421, %s422, %s423
      %p427 = pneg %p421
      %p428 = scmp.eq.s32.totalorder %s30, 3
      %p429 = por %p427, %p428
      %p430 = scmp.ne.s32.totalorder %s422, %s425
      %p431 = scmp.eq.s32.totalorder %s30, 0
      %p432 = por %p430, %p431
      %p433 = scmp.ne.s32.totalorder %s422, %s425
      %p434 = scmp.eq.s32.totalorder %s35, 3
      %p435 = por %p433, %p434
      %p436 = scmp.ne.s32.totalorder %s425, %s426
      %p437 = scmp.eq.s32.totalorder %s35, 0
      %p438 = por %p436, %p437
      %p439 = scmp.ne.s32.totalorder %s425, %s426
      %p440 = scmp.eq.s32.totalorder %s36, 3
      %p441 = por %p439, %p440
      %p443 = scmp.ne.s32.totalorder %s426, %s442
      %p444 = scmp.eq.s32.totalorder %s36, 0
      %p445 = por %p443, %p444
      %s446 = ssub.s32 %s38, %s45
      %p447 = scmp.eq.s32.totalorder %s446, 0
      %s449 = sadd.s32 %s448, 1
      %s450 = scalar_select %p447, %s448, %s449
      %p453 = pneg %p447
      %p454 = scmp.eq.s32.totalorder %s30, 3
      %p455 = por %p453, %p454
      %p456 = scmp.ne.s32.totalorder %s448, %s451
      %p457 = scmp.eq.s32.totalorder %s30, 0
      %p458 = por %p456, %p457
      %p459 = scmp.ne.s32.totalorder %s448, %s451
      %p460 = scmp.eq.s32.totalorder %s35, 3
      %p461 = por %p459, %p460
      %p462 = scmp.ne.s32.totalorder %s451, %s452
      %p463 = scmp.eq.s32.totalorder %s35, 0
      %p464 = por %p462, %p463
      %p465 = scmp.ne.s32.totalorder %s451, %s452
      %p466 = scmp.eq.s32.totalorder %s36, 3
      %p467 = por %p465, %p466
      %p469 = scmp.ne.s32.totalorder %s452, %s468
      %p470 = scmp.eq.s32.totalorder %s36, 0
      %p471 = por %p469, %p470
      %s472 = ssub.s32 %s37, %s49
      %p473 = scmp.eq.s32.totalorder %s472, 0
      %s475 = sadd.s32 %s474, 1
      %s476 = scalar_select %p473, %s474, %s475
      %p479 = pneg %p473
      %p480 = scmp.eq.s32.totalorder %s30, 3
      %p481 = por %p479, %p480
      %p482 = scmp.ne.s32.totalorder %s474, %s477
      %p483 = scmp.eq.s32.totalorder %s30, 0
      %p484 = por %p482, %p483
      %p485 = scmp.ne.s32.totalorder %s474, %s477
      %p486 = scmp.eq.s32.totalorder %s35, 3
      %p487 = por %p485, %p486
      %p488 = scmp.ne.s32.totalorder %s477, %s478
      %p489 = scmp.eq.s32.totalorder %s35, 0
      %p490 = por %p488, %p489
      %p491 = scmp.ne.s32.totalorder %s477, %s478
      %p492 = scmp.eq.s32.totalorder %s36, 3
      %p493 = por %p491, %p492
      %p495 = scmp.ne.s32.totalorder %s478, %s494
      %p496 = scmp.eq.s32.totalorder %s36, 0
      %p497 = por %p495, %p496
      %p498 = scmp.le.s32.totalorder 1, %s30
      %p499 = scmp.lt.s32.totalorder %s30, 5
      %p500 = pnand %p498, %p499
      %p501 = pneg %p500
      // Predicated region
      $region9: #{pose_vit_forward.1} parent=5 // pred_check
        _
      $region10: #{pose_vit_forward.1} parent=5 // pred_check_branch
        %503 = sbr.rel (%p500) target = $region12
      $region11: #{pose_vit_forward.1} parent=5 // pred_region
        %s504 = ssub.s32 %s30, 1
        // Predicated region
        $region13: #{pose_vit_forward.1} parent=11 // pred_check
          %p505 = pneg %p89
        $region14: #{pose_vit_forward.1} parent=11 // pred_check_branch
          %507 = sbr.rel (%p505) target = $region16
        $region15: #{pose_vit_forward.1} parent=11 // pred_region
          _
        $region16: #{pose_vit_forward.1} parent=11 // pred_fallthru
          _
        // Predicated region
        $region17: #{pose_vit_forward.1} parent=11 // pred_check
          %p508 = pneg %p110
        $region18: #{pose_vit_forward.1} parent=11 // pred_check_branch
          %510 = sbr.rel (%p508) target = $region20
        $region19: #{pose_vit_forward.1} parent=11 // pred_region
          _
        $region20: #{pose_vit_forward.1} parent=11 // pred_fallthru
          _
        // Predicated region
        $region21: #{pose_vit_forward.1} parent=11 // pred_check
          %p511 = pneg %p131
        $region22: #{pose_vit_forward.1} parent=11 // pred_check_branch
          %513 = sbr.rel (%p511) target = $region24
        $region23: #{pose_vit_forward.1} parent=11 // pred_region
          _
        $region24: #{pose_vit_forward.1} parent=11 // pred_fallthru
          _
        // Predicated region
        $region25: #{pose_vit_forward.1} parent=11 // pred_check
          %p514 = pneg %p152
        $region26: #{pose_vit_forward.1} parent=11 // pred_check_branch
          %516 = sbr.rel (%p514) target = $region28
        $region27: #{pose_vit_forward.1} parent=11 // pred_region
          %s518 = ssub.s32 16, 16
          %519 = vsyncadd [#allocation7], %s518
          %s521 = sshll.u32 [#allocation6], 4
          %s522 = int_to_ptr.vmem [resolvable:$true] %s521
          %524 = dma.hbm_to_vmem [thread:$0]  %s4, 16, %s522, [#allocation7]
        $region28: #{pose_vit_forward.1} parent=11 // pred_fallthru
          _
      $region12: #{pose_vit_forward.1} parent=5 // pred_fallthru
        _
      %p525 = scmp.lt.s32.totalorder %s30, 4
      // Predicated region
      $region29: #{pose_vit_forward.1} parent=5 // pred_check
        %p526 = pneg %p525
      $region30: #{pose_vit_forward.1} parent=5 // pred_check_branch
        %528 = sbr.rel (%p526) target = $region32
      $region31: #{pose_vit_forward.1} parent=5 // pred_region
        // Predicated region
        $region33: #{pose_vit_forward.1} parent=31 // pred_check
          %p529 = pneg %p62
        $region34: #{pose_vit_forward.1} parent=31 // pred_check_branch
          %531 = sbr.rel (%p529) target = $region36
        $region35: #{pose_vit_forward.1} parent=31 // pred_region
          %s532 = sand.u32 %s30, 1
          %s533 = scalar_lea.sflag [#allocation4], %s532
          %s534 = sand.u32 %s52, 1
          %s535 = smul.addr %s534, 8
          %s536 = scalar_lea.vmem [#allocation3], %s535
          %s538 = ssub.s32 128, 128
          %539 = vsyncadd %s533, %s538
          %s540 = smul.addr %s37, 128
          %s541 = scalar_lea.hbm %s0, %s540
          %s543 = sshll.u32 %s536, 4
          %s544 = int_to_ptr.vmem [resolvable:$true] %s543
          %546 = dma.hbm_to_vmem [thread:$0]  %s541, 128, %s544, %s533
        $region36: #{pose_vit_forward.1} parent=31 // pred_fallthru
          _
        // Predicated region
        $region37: #{pose_vit_forward.1} parent=31 // pred_check
          %p547 = pneg %p172
        $region38: #{pose_vit_forward.1} parent=31 // pred_check_branch
          %549 = sbr.rel (%p547) target = $region40
        $region39: #{pose_vit_forward.1} parent=31 // pred_region
          %p550 = scmp.lt.s32.totalorder %s38, 1
          %s551 = scalar_select %p550, %s38, 1
          %s552 = smul.addr %s551, 4
          %s553 = smul.addr %s552, 8
          %s554 = scalar_lea.vmem %s5, %s553
        $region40: #{pose_vit_forward.1} parent=31 // pred_fallthru
          _
        // Predicated region
        $region41: #{pose_vit_forward.1} parent=31 // pred_check
          %p555 = pneg %p198
        $region42: #{pose_vit_forward.1} parent=31 // pred_check_branch
          %557 = sbr.rel (%p555) target = $region44
        $region43: #{pose_vit_forward.1} parent=31 // pred_region
          %s558 = sand.u32 %s30, 1
          %s559 = scalar_lea.sflag [#allocation4], %s558
          %s560 = sand.u32 %s188, 1
          %s561 = scalar_lea.vmem [#allocation8], %s560
          %s563 = ssub.s32 16, 16
          %564 = vsyncadd %s559, %s563
          %s565 = smul.addr %s38, 16
          %s566 = scalar_lea.hbm %s6, %s565
          %s568 = sshll.u32 %s561, 4
          %s569 = int_to_ptr.vmem [resolvable:$true] %s568
          %571 = dma.hbm_to_vmem [thread:$0]  %s566, 16, %s569, %s559
        $region44: #{pose_vit_forward.1} parent=31 // pred_fallthru
          _
        // Predicated region
        $region45: #{pose_vit_forward.1} parent=31 // pred_check
          %p572 = pneg %p224
        $region46: #{pose_vit_forward.1} parent=31 // pred_check_branch
          %574 = sbr.rel (%p572) target = $region48
        $region47: #{pose_vit_forward.1} parent=31 // pred_region
          %p575 = scmp.lt.s32.totalorder %s38, 1
          %s576 = scalar_select %p575, %s38, 1
          %s577 = smul.addr %s576, 4
          %s578 = smul.addr %s577, 8
          %s579 = scalar_lea.vmem %s7, %s578
        $region48: #{pose_vit_forward.1} parent=31 // pred_fallthru
          _
        // Predicated region
        $region49: #{pose_vit_forward.1} parent=31 // pred_check
          %p580 = pneg %p250
        $region50: #{pose_vit_forward.1} parent=31 // pred_check_branch
          %582 = sbr.rel (%p580) target = $region52
        $region51: #{pose_vit_forward.1} parent=31 // pred_region
          %s583 = sand.u32 %s30, 1
          %s584 = scalar_lea.sflag [#allocation4], %s583
          %s585 = sand.u32 %s240, 1
          %s586 = scalar_lea.vmem [#allocation9], %s585
          %s588 = ssub.s32 16, 16
          %589 = vsyncadd %s584, %s588
          %s590 = smul.addr %s38, 16
          %s591 = scalar_lea.hbm %s8, %s590
          %s593 = sshll.u32 %s586, 4
          %s594 = int_to_ptr.vmem [resolvable:$true] %s593
          %596 = dma.hbm_to_vmem [thread:$0]  %s591, 16, %s594, %s584
        $region52: #{pose_vit_forward.1} parent=31 // pred_fallthru
          _
        // Predicated region
        $region53: #{pose_vit_forward.1} parent=31 // pred_check
          %p597 = pneg %p276
        $region54: #{pose_vit_forward.1} parent=31 // pred_check_branch
          %599 = sbr.rel (%p597) target = $region56
        $region55: #{pose_vit_forward.1} parent=31 // pred_region
          %s600 = sand.u32 %s30, 1
          %s601 = scalar_lea.sflag [#allocation4], %s600
          %s602 = sand.u32 %s266, 1
          %s603 = scalar_lea.vmem [#allocation10], %s602
          %s605 = ssub.s32 16, 16
          %606 = vsyncadd %s601, %s605
          %s607 = smul.addr %s38, 16
          %s608 = scalar_lea.hbm %s9, %s607
          %s610 = sshll.u32 %s603, 4
          %s611 = int_to_ptr.vmem [resolvable:$true] %s610
          %613 = dma.hbm_to_vmem [thread:$0]  %s608, 16, %s611, %s601
        $region56: #{pose_vit_forward.1} parent=31 // pred_fallthru
          _
        // Predicated region
        $region57: #{pose_vit_forward.1} parent=31 // pred_check
          %p614 = pneg %p302
        $region58: #{pose_vit_forward.1} parent=31 // pred_check_branch
          %616 = sbr.rel (%p614) target = $region60
        $region59: #{pose_vit_forward.1} parent=31 // pred_region
          %s617 = sand.u32 %s30, 1
          %s618 = scalar_lea.sflag [#allocation4], %s617
          %s619 = sand.u32 %s292, 1
          %s620 = scalar_lea.vmem [#allocation11], %s619
          %s622 = ssub.s32 16, 16
          %623 = vsyncadd %s618, %s622
          %s624 = smul.addr %s38, 16
          %s625 = scalar_lea.hbm %s10, %s624
          %s627 = sshll.u32 %s620, 4
          %s628 = int_to_ptr.vmem [resolvable:$true] %s627
          %630 = dma.hbm_to_vmem [thread:$0]  %s625, 16, %s628, %s618
        $region60: #{pose_vit_forward.1} parent=31 // pred_fallthru
          _
        // Predicated region
        $region61: #{pose_vit_forward.1} parent=31 // pred_check
          %p631 = pneg %p328
        $region62: #{pose_vit_forward.1} parent=31 // pred_check_branch
          %633 = sbr.rel (%p631) target = $region64
        $region63: #{pose_vit_forward.1} parent=31 // pred_region
          %p634 = scmp.lt.s32.totalorder %s38, 1
          %s635 = scalar_select %p634, %s38, 1
          %s636 = smul.addr %s635, 4
          %s637 = smul.addr %s636, 8
          %s638 = scalar_lea.vmem %s11, %s637
        $region64: #{pose_vit_forward.1} parent=31 // pred_fallthru
          _
        // Predicated region
        $region65: #{pose_vit_forward.1} parent=31 // pred_check
          %p639 = pneg %p354
        $region66: #{pose_vit_forward.1} parent=31 // pred_check_branch
          %641 = sbr.rel (%p639) target = $region68
        $region67: #{pose_vit_forward.1} parent=31 // pred_region
          %s642 = sand.u32 %s30, 1
          %s643 = scalar_lea.sflag [#allocation4], %s642
          %s644 = sand.u32 %s344, 1
          %s645 = scalar_lea.vmem [#allocation12], %s644
          %s647 = ssub.s32 16, 16
          %648 = vsyncadd %s643, %s647
          %s649 = smul.addr %s38, 16
          %s650 = scalar_lea.hbm %s12, %s649
          %s652 = sshll.u32 %s645, 4
          %s653 = int_to_ptr.vmem [resolvable:$true] %s652
          %655 = dma.hbm_to_vmem [thread:$0]  %s650, 16, %s653, %s643
        $region68: #{pose_vit_forward.1} parent=31 // pred_fallthru
          _
        // Predicated region
        $region69: #{pose_vit_forward.1} parent=31 // pred_check
          %p656 = pneg %p380
        $region70: #{pose_vit_forward.1} parent=31 // pred_check_branch
          %658 = sbr.rel (%p656) target = $region72
        $region71: #{pose_vit_forward.1} parent=31 // pred_region
          %p659 = scmp.lt.s32.totalorder %s38, 1
          %s660 = scalar_select %p659, %s38, 1
          %s661 = smul.addr %s660, 8
          %s662 = smul.addr %s661, 8
          %s663 = scalar_lea.vmem %s13, %s662
        $region72: #{pose_vit_forward.1} parent=31 // pred_fallthru
          _
        // Predicated region
        $region73: #{pose_vit_forward.1} parent=31 // pred_check
          %p664 = pneg %p406
        $region74: #{pose_vit_forward.1} parent=31 // pred_check_branch
          %666 = sbr.rel (%p664) target = $region76
        $region75: #{pose_vit_forward.1} parent=31 // pred_region
          %s667 = sand.u32 %s30, 1
          %s668 = scalar_lea.sflag [#allocation4], %s667
          %s669 = sand.u32 %s396, 1
          %s670 = scalar_lea.vmem [#allocation13], %s669
          %s672 = ssub.s32 16, 16
          %673 = vsyncadd %s668, %s672
          %s674 = smul.addr %s38, 16
          %s675 = scalar_lea.hbm %s14, %s674
          %s677 = sshll.u32 %s670, 4
          %s678 = int_to_ptr.vmem [resolvable:$true] %s677
          %680 = dma.hbm_to_vmem [thread:$0]  %s675, 16, %s678, %s668
        $region76: #{pose_vit_forward.1} parent=31 // pred_fallthru
          _
        // Predicated region
        $region77: #{pose_vit_forward.1} parent=31 // pred_check
          %p681 = pneg %p432
        $region78: #{pose_vit_forward.1} parent=31 // pred_check_branch
          %683 = sbr.rel (%p681) target = $region80
        $region79: #{pose_vit_forward.1} parent=31 // pred_region
          %s684 = sand.u32 %s30, 1
          %s685 = scalar_lea.sflag [#allocation4], %s684
          %s686 = sand.u32 %s422, 1
          %s687 = scalar_lea.vmem [#allocation14], %s686
          %s689 = ssub.s32 16, 16
          %690 = vsyncadd %s685, %s689
          %s691 = smul.addr %s38, 16
          %s692 = scalar_lea.hbm %s15, %s691
          %s694 = sshll.u32 %s687, 4
          %s695 = int_to_ptr.vmem [resolvable:$true] %s694
          %697 = dma.hbm_to_vmem [thread:$0]  %s692, 16, %s695, %s685
        $region80: #{pose_vit_forward.1} parent=31 // pred_fallthru
          _
        // Predicated region
        $region81: #{pose_vit_forward.1} parent=31 // pred_check
          %p698 = pneg %p458
        $region82: #{pose_vit_forward.1} parent=31 // pred_check_branch
          %700 = sbr.rel (%p698) target = $region84
        $region83: #{pose_vit_forward.1} parent=31 // pred_region
          %s701 = sand.u32 %s30, 1
          %s702 = scalar_lea.sflag [#allocation4], %s701
          %s703 = sand.u32 %s448, 1
          %s704 = scalar_lea.vmem [#allocation15], %s703
          %s706 = ssub.s32 16, 16
          %707 = vsyncadd %s702, %s706
          %s708 = smul.addr %s38, 16
          %s709 = scalar_lea.hbm %s16, %s708
          %s711 = sshll.u32 %s704, 4
          %s712 = int_to_ptr.vmem [resolvable:$true] %s711
          %714 = dma.hbm_to_vmem [thread:$0]  %s709, 16, %s712, %s702
        $region84: #{pose_vit_forward.1} parent=31 // pred_fallthru
          _
      $region32: #{pose_vit_forward.1} parent=5 // pred_fallthru
        _
      %p715 = scmp.le.s32.totalorder 1, %s30
      %p716 = scmp.lt.s32.totalorder %s30, 5
      %p717 = pnand %p715, %p716
      %p718 = pneg %p717
      // Predicated region
      $region85: #{pose_vit_forward.1} parent=5 // pred_check
        _
      $region86: #{pose_vit_forward.1} parent=5 // pred_check_branch
        %720 = sbr.rel (%p717) target = $region88
      $region87: #{pose_vit_forward.1} parent=5 // pred_region
        %s721 = ssub.s32 %s30, 1
        %s722 = sand.u32 %s35, 1
        %s723 = scalar_lea.sflag [#allocation4], %s722
        %s724 = sand.u32 %s55, 1
        %s725 = smul.addr %s724, 8
        %s726 = scalar_lea.vmem [#allocation3], %s725
        // Predicated region
        $region89: #{pose_vit_forward.1} parent=87 // pred_check
          %p727 = pneg %p68
        $region90: #{pose_vit_forward.1} parent=87 // pred_check_branch
          %729 = sbr.rel (%p727) target = $region92
        $region91: #{pose_vit_forward.1} parent=87 // pred_region
          %730 = dma.done %s723, 128
        $region92: #{pose_vit_forward.1} parent=87 // pred_fallthru
          _
        // Predicated region
        $region93: #{pose_vit_forward.1} parent=87 // pred_check
          %p731 = pneg %p152
        $region94: #{pose_vit_forward.1} parent=87 // pred_check_branch
          %733 = sbr.rel (%p731) target = $region96
        $region95: #{pose_vit_forward.1} parent=87 // pred_region
          %734 = dma.done [#allocation7], 16
        $region96: #{pose_vit_forward.1} parent=87 // pred_fallthru
          _
        %s735 = sand.u32 %s35, 1
        %s736 = scalar_lea.sflag [#allocation4], %s735
        %s737 = sand.u32 %s191, 1
        %s738 = scalar_lea.vmem [#allocation8], %s737
        // Predicated region
        $region97: #{pose_vit_forward.1} parent=87 // pred_check
          %p739 = pneg %p204
        $region98: #{pose_vit_forward.1} parent=87 // pred_check_branch
          %741 = sbr.rel (%p739) target = $region100
        $region99: #{pose_vit_forward.1} parent=87 // pred_region
          %742 = dma.done %s736, 16
        $region100: #{pose_vit_forward.1} parent=87 // pred_fallthru
          _
        %s743 = sand.u32 %s35, 1
        %s744 = scalar_lea.sflag [#allocation4], %s743
        %s745 = sand.u32 %s243, 1
        %s746 = scalar_lea.vmem [#allocation9], %s745
        // Predicated region
        $region101: #{pose_vit_forward.1} parent=87 // pred_check
          %p747 = pneg %p256
        $region102: #{pose_vit_forward.1} parent=87 // pred_check_branch
          %749 = sbr.rel (%p747) target = $region104
        $region103: #{pose_vit_forward.1} parent=87 // pred_region
          %750 = dma.done %s744, 16
        $region104: #{pose_vit_forward.1} parent=87 // pred_fallthru
          _
        %s751 = sand.u32 %s35, 1
        %s752 = scalar_lea.sflag [#allocation4], %s751
        %s753 = sand.u32 %s269, 1
        %s754 = scalar_lea.vmem [#allocation10], %s753
        // Predicated region
        $region105: #{pose_vit_forward.1} parent=87 // pred_check
          %p755 = pneg %p282
        $region106: #{pose_vit_forward.1} parent=87 // pred_check_branch
          %757 = sbr.rel (%p755) target = $region108
        $region107: #{pose_vit_forward.1} parent=87 // pred_region
          %758 = dma.done %s752, 16
        $region108: #{pose_vit_forward.1} parent=87 // pred_fallthru
          _
        %s759 = sand.u32 %s35, 1
        %s760 = scalar_lea.sflag [#allocation4], %s759
        %s761 = sand.u32 %s295, 1
        %s762 = scalar_lea.vmem [#allocation11], %s761
        // Predicated region
        $region109: #{pose_vit_forward.1} parent=87 // pred_check
          %p763 = pneg %p308
        $region110: #{pose_vit_forward.1} parent=87 // pred_check_branch
          %765 = sbr.rel (%p763) target = $region112
        $region111: #{pose_vit_forward.1} parent=87 // pred_region
          %766 = dma.done %s760, 16
        $region112: #{pose_vit_forward.1} parent=87 // pred_fallthru
          _
        %s767 = sand.u32 %s35, 1
        %s768 = scalar_lea.sflag [#allocation4], %s767
        %s769 = sand.u32 %s347, 1
        %s770 = scalar_lea.vmem [#allocation12], %s769
        // Predicated region
        $region113: #{pose_vit_forward.1} parent=87 // pred_check
          %p771 = pneg %p360
        $region114: #{pose_vit_forward.1} parent=87 // pred_check_branch
          %773 = sbr.rel (%p771) target = $region116
        $region115: #{pose_vit_forward.1} parent=87 // pred_region
          %774 = dma.done %s768, 16
        $region116: #{pose_vit_forward.1} parent=87 // pred_fallthru
          _
        %s775 = sand.u32 %s35, 1
        %s776 = scalar_lea.sflag [#allocation4], %s775
        %s777 = sand.u32 %s399, 1
        %s778 = scalar_lea.vmem [#allocation13], %s777
        // Predicated region
        $region117: #{pose_vit_forward.1} parent=87 // pred_check
          %p779 = pneg %p412
        $region118: #{pose_vit_forward.1} parent=87 // pred_check_branch
          %781 = sbr.rel (%p779) target = $region120
        $region119: #{pose_vit_forward.1} parent=87 // pred_region
          %782 = dma.done %s776, 16
        $region120: #{pose_vit_forward.1} parent=87 // pred_fallthru
          _
        %s783 = sand.u32 %s35, 1
        %s784 = scalar_lea.sflag [#allocation4], %s783
        %s785 = sand.u32 %s425, 1
        %s786 = scalar_lea.vmem [#allocation14], %s785
        // Predicated region
        $region121: #{pose_vit_forward.1} parent=87 // pred_check
          %p787 = pneg %p438
        $region122: #{pose_vit_forward.1} parent=87 // pred_check_branch
          %789 = sbr.rel (%p787) target = $region124
        $region123: #{pose_vit_forward.1} parent=87 // pred_region
          %790 = dma.done %s784, 16
        $region124: #{pose_vit_forward.1} parent=87 // pred_fallthru
          _
        %s791 = sand.u32 %s35, 1
        %s792 = scalar_lea.sflag [#allocation4], %s791
        %s793 = sand.u32 %s451, 1
        %s794 = scalar_lea.vmem [#allocation15], %s793
        // Predicated region
        $region125: #{pose_vit_forward.1} parent=87 // pred_check
          %p795 = pneg %p464
        $region126: #{pose_vit_forward.1} parent=87 // pred_check_branch
          %797 = sbr.rel (%p795) target = $region128
        $region127: #{pose_vit_forward.1} parent=87 // pred_region
          %798 = dma.done %s792, 16
        $region128: #{pose_vit_forward.1} parent=87 // pred_fallthru
          _
        %s799 = sand.u32 %s35, 1
        %s800 = scalar_lea.sflag [#allocation4], %s799
        %s801 = sand.u32 %s55, 1
        %s802 = smul.addr %s801, 8
        %s803 = scalar_lea.vmem [#allocation3], %s802
        %p804 = pneg %p68
        %p805 = pneg %p65
        %p806 = pneg %p89
        %p807 = pneg %p86
        %p808 = pneg %p110
        %p809 = pneg %p107
        %p810 = pneg %p131
        %p811 = pneg %p128
        %p812 = pneg %p152
        %p813 = pneg %p149
        %p814 = scmp.lt.s32.totalorder %s40, 1
        %s815 = scalar_select %p814, %s40, 1
        %s816 = smul.addr %s815, 4
        %s817 = smul.addr %s816, 8
        %s818 = scalar_lea.vmem %s5, %s817
        %p819 = pneg %p178
        %p820 = pneg %p175
        %s821 = sand.u32 %s35, 1
        %s822 = scalar_lea.sflag [#allocation4], %s821
        %s823 = sand.u32 %s191, 1
        %s824 = scalar_lea.vmem [#allocation8], %s823
        %p825 = pneg %p204
        %p826 = pneg %p201
        %p827 = scmp.lt.s32.totalorder %s40, 1
        %s828 = scalar_select %p827, %s40, 1
        %s829 = smul.addr %s828, 4
        %s830 = smul.addr %s829, 8
        %s831 = scalar_lea.vmem %s7, %s830
        %p832 = pneg %p230
        %p833 = pneg %p227
        %s834 = sand.u32 %s35, 1
        %s835 = scalar_lea.sflag [#allocation4], %s834
        %s836 = sand.u32 %s243, 1
        %s837 = scalar_lea.vmem [#allocation9], %s836
        %p838 = pneg %p256
        %p839 = pneg %p253
        %s840 = sand.u32 %s35, 1
        %s841 = scalar_lea.sflag [#allocation4], %s840
        %s842 = sand.u32 %s269, 1
        %s843 = scalar_lea.vmem [#allocation10], %s842
        %p844 = pneg %p282
        %p845 = pneg %p279
        %s846 = sand.u32 %s35, 1
        %s847 = scalar_lea.sflag [#allocation4], %s846
        %s848 = sand.u32 %s295, 1
        %s849 = scalar_lea.vmem [#allocation11], %s848
        %p850 = pneg %p308
        %p851 = pneg %p305
        %p852 = scmp.lt.s32.totalorder %s40, 1
        %s853 = scalar_select %p852, %s40, 1
        %s854 = smul.addr %s853, 4
        %s855 = smul.addr %s854, 8
        %s856 = scalar_lea.vmem %s11, %s855
        %p857 = pneg %p334
        %p858 = pneg %p331
        %s859 = sand.u32 %s35, 1
        %s860 = scalar_lea.sflag [#allocation4], %s859
        %s861 = sand.u32 %s347, 1
        %s862 = scalar_lea.vmem [#allocation12], %s861
        %p863 = pneg %p360
        %p864 = pneg %p357
        %p865 = scmp.lt.s32.totalorder %s40, 1
        %s866 = scalar_select %p865, %s40, 1
        %s867 = smul.addr %s866, 8
        %s868 = smul.addr %s867, 8
        %s869 = scalar_lea.vmem %s13, %s868
        %p870 = pneg %p386
        %p871 = pneg %p383
        %s872 = sand.u32 %s35, 1
        %s873 = scalar_lea.sflag [#allocation4], %s872
        %s874 = sand.u32 %s399, 1
        %s875 = scalar_lea.vmem [#allocation13], %s874
        %p876 = pneg %p412
        %p877 = pneg %p409
        %s878 = sand.u32 %s35, 1
        %s879 = scalar_lea.sflag [#allocation4], %s878
        %s880 = sand.u32 %s425, 1
        %s881 = scalar_lea.vmem [#allocation14], %s880
        %p882 = pneg %p438
        %p883 = pneg %p435
        %s884 = sand.u32 %s35, 1
        %s885 = scalar_lea.sflag [#allocation4], %s884
        %s886 = sand.u32 %s451, 1
        %s887 = scalar_lea.vmem [#allocation15], %s886
        %p888 = pneg %p464
        %p889 = pneg %p461
        %p890 = pneg %p490
        %p891 = pneg %p487
        %s892 = sand.u32 %s477, 1
        %s893 = scalar_lea.sflag [#allocation5], %s892
        %s894 = sand.u32 %s477, 1
        %s895 = scalar_lea.vmem [#allocation16], %s894
        %p896 = scmp.lt.s32.totalorder %s40, 1
        %s897 = scalar_select %p896, %s40, 1
        %s898 = smul.addr %s897, 4
        %s899 = smul.addr %s898, 8
        %s900 = scalar_lea.vmem %s5, %s899
        %p901 = scmp.lt.s32.totalorder %s40, 1
        %s902 = scalar_select %p901, %s40, 1
        %s903 = smul.addr %s902, 4
        %s904 = smul.addr %s903, 8
        %s905 = scalar_lea.vmem %s7, %s904
        %p906 = scmp.lt.s32.totalorder %s40, 1
        %s907 = scalar_select %p906, %s40, 1
        %s908 = smul.addr %s907, 4
        %s909 = smul.addr %s908, 8
        %s910 = scalar_lea.vmem %s11, %s909
        %p911 = scmp.lt.s32.totalorder %s40, 1
        %s912 = scalar_select %p911, %s40, 1
        %s913 = smul.addr %s912, 8
        %s914 = smul.addr %s913, 8
        %s915 = scalar_lea.vmem %s13, %s914
        %p916 = scmp.eq.s32.totalorder %s40, 0
        // Predicated region
        $region129: #{pose_vit_forward.1} parent=87 // pred_check
          %p917 = pneg %p916
        $region130: #{pose_vit_forward.1} parent=87 // pred_check_branch
          %919 = sbr.rel (%p917) target = $region132
        $region131: #{pose_vit_forward.1} parent=87 // pred_region
          %v920 = vld [vmem:[%s726] sm:$0xff]
          %v921 = vld [vmem:[%s1] sm:$0xff]
          %v922 = vld [vmem:[%s1 + $0x8] sm:$0xf]
          %v923 = vld [vmem:[%s2] sm:$0x1]
          %v925 = vlaneseq
          %v926 = vshrl.u32 %v925, 7
          %v927 = vsub.s32 0, %v926
          %v928 = vrot.slane %v923, %v927
          %vm930 = vcmask 97280
          %v932 = vsel %vm930, %v920, 0
          %vm934 = vcmask 1043456
          %v936 = vsel %vm934, %v922, 0
          %938 = vmatprep.subr.mxu0 0.0
          %939 = vmatpush1.msra.mxu0 0.0
          %940 = vmatprep.subr.mxu0 0.0
          %941 = vmatpush1.msra.mxu0 0.0
          %942 = vmatprep.subr.mxu0 0.0
          %943 = vmatpush1.msra.mxu0 0.0
          %944 = vmatprep.subr.mxu0 0.0
          %945 = vmatpush1.msra.mxu0 0.0
          %946 = vmatprep.subr.mxu0 0.0
          %947 = vmatpush1.msra.mxu0 0.0
          %948 = vmatprep.subr.mxu0 0.0
          %949 = vmatpush1.msra.mxu0 0.0
          %950 = vmatprep.subr.mxu0 0.0
          %951 = vmatpush1.msra.mxu0 0.0
          %952 = vmatprep.subr.mxu0 0.0
          %953 = vmatpush1.msra.mxu0 0.0
          %954 = vmatprep.subr.mxu0 0.0
          %955 = vmatpush1.msra.mxu0 0.0
          %956 = vmatprep.subr.mxu0 0.0
          %957 = vmatpush1.msra.mxu0 0.0
          %958 = vmatprep.subr.mxu0 0.0
          %959 = vmatpush1.msra.mxu0 0.0
          %960 = vmatprep.subr.mxu0 0.0
          %961 = vmatpush1.msra.mxu0 0.0
          %962 = vmatprep.subr.mxu0 0.0
          %963 = vmatpush1.msra.mxu0 0.0
          %964 = vmatprep.subr.mxu0 0.0
          %965 = vmatpush1.msra.mxu0 0.0
          %966 = vmatprep.subr.mxu0 0.0
          %967 = vmatpush1.msra.mxu0 %v936
          %968 = vmatprep.subr.mxu0 0.0
          %969 = vmatpush1.msra.mxu0 %v921
          %970 = vmatprep.subr.mxu0 0.0
          %971 = vmatpush2.msra.mxu0 0.0
          %972 = vmatprep.subr.mxu0 0.0
          %973 = vmatpush2.msra.mxu0 0.0
          %974 = vmatprep.subr.mxu0 0.0
          %975 = vmatpush2.msra.mxu0 0.0
          %976 = vmatprep.subr.mxu0 0.0
          %977 = vmatpush2.msra.mxu0 0.0
          %978 = vmatprep.subr.mxu0 0.0
          %979 = vmatpush2.msra.mxu0 0.0
          %980 = vmatprep.subr.mxu0 0.0
          %981 = vmatpush2.msra.mxu0 0.0
          %982 = vmatprep.subr.mxu0 0.0
          %983 = vmatpush2.msra.mxu0 0.0
          %984 = vmatprep.subr.mxu0 0.0
          %985 = vmatpush2.msra.mxu0 0.0
          %986 = vmatprep.subr.mxu0 0.0
          %987 = vmatpush2.msra.mxu0 0.0
          %988 = vmatprep.subr.mxu0 0.0
          %989 = vmatpush2.msra.mxu0 0.0
          %990 = vmatprep.subr.mxu0 0.0
          %991 = vmatpush2.msra.mxu0 0.0
          %992 = vmatprep.subr.mxu0 0.0
          %993 = vmatpush2.msra.mxu0 0.0
          %994 = vmatprep.subr.mxu0 0.0
          %995 = vmatpush2.msra.mxu0 0.0
          %996 = vmatprep.subr.mxu0 0.0
          %997 = vmatpush2.msra.mxu0 0.0
          %998 = vmatprep.subr.mxu0 0.0
          %999 = vmatpush2.msra.mxu0 0.0
          %1000 = vmatprep.subr.mxu0 0.0
          %1001 = vmatpush2.msra.mxu0 0.0
          %1002 = vmatprep.mubr.f32.mxu0 0.0
          %1003 = vmatmul.mubr.f32.gmra.mxu0 %v932
          %v1004 = vpop.f32.mrf.mxu0
          %v1005 = vadd.f32 %v928, %v1004
          %v1006 = vpop.f32.mrf.mxu0
          %1007 = vdwg.mxu0
          %v1008 = vld [vmem:[%s3] sm:$0xff]
          %v1009 = vadd.f32 %v1005, %v1008
          %v1010 = vld [vmem:[#allocation6] sm:$0x1]
          %v1012 = vrot.slane %v1009, 7
          %vm1014 = vcmask 1040384
          %v1015 = vsel %vm1014, %v1010, %v1012
          %vm1016 = vcmask 261120
          %1017 = vst.msk [vmem:[#allocation2] sm:$0xff] %vm1016, %v1015
          %vm1018 = vcmask 253952
          %1019 = vst.msk [vmem:[#allocation2 + $0x8] sm:$0x1] %vm1018, %v1012
        $region132: #{pose_vit_forward.1} parent=87 // pred_fallthru
          _
        %v1020 = vld [vmem:[#allocation2] sm:$0xff]
        %v1021 = vld [vmem:[#allocation2 + $0x8] sm:$0x1]
        %v1022 = vld [vmem:[%s900] sm:$0xff]
        %v1023 = vld [vmem:[%s900 + $0x8] sm:$0xff]
        %v1024 = vld [vmem:[%s900 + $0x10] sm:$0xff]
        %v1025 = vld [vmem:[%s900 + $0x18] sm:$0xff]
        %v1026 = vld [vmem:[%s738] sm:$0x1]
        %v1028 = vlaneseq
        %v1029 = vshrl.u32 %v1028, 7
        %v1030 = vsub.s32 0, %v1029
        %v1031 = vrot.slane %v1026, %v1030
        %vm1033 = vcmask 261120
        %v1035 = vsel %vm1033, %v1020, 0
        %v1038 = vsel %vm1033, %v1021, 0
        %1040 = vmatprep.subr.mxu0 0.0
        %1041 = vmatpush1.msra.mxu0 0.0
        %1042 = vmatprep.subr.mxu0 0.0
        %1043 = vmatpush1.msra.mxu0 0.0
        %1044 = vmatprep.subr.mxu0 0.0
        %1045 = vmatpush1.msra.mxu0 0.0
        %1046 = vmatprep.subr.mxu0 0.0
        %1047 = vmatpush1.msra.mxu0 0.0
        %1048 = vmatprep.subr.mxu0 0.0
        %1049 = vmatpush1.msra.mxu0 0.0
        %1050 = vmatprep.subr.mxu0 0.0
        %1051 = vmatpush1.msra.mxu0 0.0
        %1052 = vmatprep.subr.mxu0 0.0
        %1053 = vmatpush1.msra.mxu0 0.0
        %1054 = vmatprep.subr.mxu0 0.0
        %1055 = vmatpush1.msra.mxu0 0.0
        %1056 = vmatprep.subr.mxu0 0.0
        %1057 = vmatpush1.msra.mxu0 0.0
        %1058 = vmatprep.subr.mxu0 0.0
        %1059 = vmatpush1.msra.mxu0 0.0
        %1060 = vmatprep.subr.mxu0 0.0
        %1061 = vmatpush1.msra.mxu0 0.0
        %1062 = vmatprep.subr.mxu0 0.0
        %1063 = vmatpush1.msra.mxu0 0.0
        %1064 = vmatprep.subr.mxu0 0.0
        %1065 = vmatpush1.msra.mxu0 %v1025
        %1066 = vmatprep.subr.mxu0 0.0
        %1067 = vmatpush1.msra.mxu0 %v1024
        %1068 = vmatprep.subr.mxu0 0.0
        %1069 = vmatpush1.msra.mxu0 %v1023
        %1070 = vmatprep.subr.mxu0 0.0
        %1071 = vmatpush1.msra.mxu0 %v1022
        %1072 = vmatprep.subr.mxu0 0.0
        %1073 = vmatpush2.msra.mxu0 0.0
        %1074 = vmatprep.subr.mxu0 0.0
        %1075 = vmatpush2.msra.mxu0 0.0
        %1076 = vmatprep.subr.mxu0 0.0
        %1077 = vmatpush2.msra.mxu0 0.0
        %1078 = vmatprep.subr.mxu0 0.0
        %1079 = vmatpush2.msra.mxu0 0.0
        %1080 = vmatprep.subr.mxu0 0.0
        %1081 = vmatpush2.msra.mxu0 0.0
        %1082 = vmatprep.subr.mxu0 0.0
        %1083 = vmatpush2.msra.mxu0 0.0
        %1084 = vmatprep.subr.mxu0 0.0
        %1085 = vmatpush2.msra.mxu0 0.0
        %1086 = vmatprep.subr.mxu0 0.0
        %1087 = vmatpush2.msra.mxu0 0.0
        %1088 = vmatprep.subr.mxu0 0.0
        %1089 = vmatpush2.msra.mxu0 0.0
        %1090 = vmatprep.subr.mxu0 0.0
        %1091 = vmatpush2.msra.mxu0 0.0
        %1092 = vmatprep.subr.mxu0 0.0
        %1093 = vmatpush2.msra.mxu0 0.0
        %1094 = vmatprep.subr.mxu0 0.0
        %1095 = vmatpush2.msra.mxu0 0.0
        %1096 = vmatprep.subr.mxu0 0.0
        %1097 = vmatpush2.msra.mxu0 0.0
        %1098 = vmatprep.subr.mxu0 0.0
        %1099 = vmatpush2.msra.mxu0 0.0
        %1100 = vmatprep.subr.mxu0 0.0
        %1101 = vmatpush2.msra.mxu0 0.0
        %1102 = vmatprep.subr.mxu0 0.0
        %1103 = vmatpush2.msra.mxu0 0.0
        %1104 = vmatprep.mubr.f32.mxu0 0.0
        %1105 = vmatmul.mubr.f32.gmra.mxu0 %v1035
        %v1106 = vpop.f32.mrf.mxu0
        %v1107 = vadd.f32 %v1031, %v1106
        %v1108 = vpop.f32.mrf.mxu0
        %1109 = vmatprep.mubr.f32.mxu0 0.0
        %1110 = vmatmul.mubr.f32.gmra.mxu0 %v1038
        %v1111 = vpop.f32.mrf.mxu0
        %v1112 = vadd.f32 %v1031, %v1111
        %v1113 = vpop.f32.mrf.mxu0
        %1114 = vdwg.mxu0
        %v1115 = vld [vmem:[%s905] sm:$0xff]
        %v1116 = vld [vmem:[%s905 + $0x8] sm:$0xff]
        %v1117 = vld [vmem:[%s905 + $0x10] sm:$0xff]
        %v1118 = vld [vmem:[%s905 + $0x18] sm:$0xff]
        %v1119 = vmul.f32 %v1107, 0.35355338
        %v1120 = vmul.f32 %v1112, 0.35355338
        %1123 = vrot.lane.b32.xlu0 %v1107, 96
        %v1124 = vpop.permute.xlu0 %1123
        %1125 = vrot.lane.b32.xlu0 %v1112, 96
        %v1126 = vpop.permute.xlu0 %1125
        %vm1127 = vcmask 64512
        %v1129 = vsel %vm1127, %v1119, 0
        %v1132 = vsel %vm1127, %v1120, 0
        %v1134 = vsel %vm1127, %v1124, 0
        %v1136 = vsel %vm1127, %v1126, 0
        %1138 = vmatprep.subr.mxu0 0.0
        %1139 = vmatpush1.xpose.msra.mxu0 0.0
        %1140 = vmatprep.subr.mxu0 0.0
        %1141 = vmatpush1.xpose.msra.mxu0 0.0
        %1142 = vmatprep.subr.mxu0 0.0
        %1143 = vmatpush1.xpose.msra.mxu0 0.0
        %1144 = vmatprep.subr.mxu0 0.0
        %1145 = vmatpush1.xpose.msra.mxu0 0.0
        %1146 = vmatprep.subr.mxu0 0.0
        %1147 = vmatpush1.xpose.msra.mxu0 0.0
        %1148 = vmatprep.subr.mxu0 0.0
        %1149 = vmatpush1.xpose.msra.mxu0 0.0
        %1150 = vmatprep.subr.mxu0 0.0
        %1151 = vmatpush1.xpose.msra.mxu0 0.0
        %1152 = vmatprep.subr.mxu0 0.0
        %1153 = vmatpush1.xpose.msra.mxu0 0.0
        %1154 = vmatprep.subr.mxu0 0.0
        %1155 = vmatpush1.xpose.msra.mxu0 0.0
        %1156 = vmatprep.subr.mxu0 0.0
        %1157 = vmatpush1.xpose.msra.mxu0 0.0
        %1158 = vmatprep.subr.mxu0 0.0
        %1159 = vmatpush1.xpose.msra.mxu0 0.0
        %1160 = vmatprep.subr.mxu0 0.0
        %1161 = vmatpush1.xpose.msra.mxu0 0.0
        %1162 = vmatprep.subr.mxu0 0.0
        %1163 = vmatpush1.xpose.msra.mxu0 0.0
        %1164 = vmatprep.subr.mxu0 0.0
        %1165 = vmatpush1.xpose.msra.mxu0 0.0
        %1166 = vmatprep.subr.mxu0 0.0
        %1167 = vmatpush1.xpose.msra.mxu0 %v1136
        %1168 = vmatprep.subr.mxu0 0.0
        %1169 = vmatpush1.xpose.msra.mxu0 %v1134
        %1170 = vmatprep.subr.mxu0 0.0
        %1171 = vmatpush2.xpose.msra.mxu0 0.0
        %1172 = vmatprep.subr.mxu0 0.0
        %1173 = vmatpush2.xpose.msra.mxu0 0.0
        %1174 = vmatprep.subr.mxu0 0.0
        %1175 = vmatpush2.xpose.msra.mxu0 0.0
        %1176 = vmatprep.subr.mxu0 0.0
        %1177 = vmatpush2.xpose.msra.mxu0 0.0
        %1178 = vmatprep.subr.mxu0 0.0
        %1179 = vmatpush2.xpose.msra.mxu0 0.0
        %1180 = vmatprep.subr.mxu0 0.0
        %1181 = vmatpush2.xpose.msra.mxu0 0.0
        %1182 = vmatprep.subr.mxu0 0.0
        %1183 = vmatpush2.xpose.msra.mxu0 0.0
        %1184 = vmatprep.subr.mxu0 0.0
        %1185 = vmatpush2.xpose.msra.mxu0 0.0
        %1186 = vmatprep.subr.mxu0 0.0
        %1187 = vmatpush2.xpose.msra.mxu0 0.0
        %1188 = vmatprep.subr.mxu0 0.0
        %1189 = vmatpush2.xpose.msra.mxu0 0.0
        %1190 = vmatprep.subr.mxu0 0.0
        %1191 = vmatpush2.xpose.msra.mxu0 0.0
        %1192 = vmatprep.subr.mxu0 0.0
        %1193 = vmatpush2.xpose.msra.mxu0 0.0
        %1194 = vmatprep.subr.mxu0 0.0
        %1195 = vmatpush2.xpose.msra.mxu0 0.0
        %1196 = vmatprep.subr.mxu0 0.0
        %1197 = vmatpush2.xpose.msra.mxu0 0.0
        %1198 = vmatprep.subr.mxu0 0.0
        %1199 = vmatpush2.xpose.msra.mxu0 0.0
        %1200 = vmatprep.subr.mxu0 0.0
        %1201 = vmatpush2.xpose.msra.mxu0 0.0
        %1202 = vmatprep.mubr.f32.mxu0 0.0
        %1203 = vmatmul.mubr.f32.gmra.mxu0 %v1129
        %v1204 = vpop.f32.mrf.mxu0
        %v1205 = vadd.f32 0.0, %v1204
        %v1206 = vpop.f32.mrf.mxu0
        %1207 = vmatprep.mubr.f32.mxu0 0.0
        %1208 = vmatmul.mubr.f32.gmra.mxu0 %v1132
        %v1209 = vpop.f32.mrf.mxu0
        %v1210 = vadd.f32 0.0, %v1209
        %v1211 = vpop.f32.mrf.mxu0
        %1212 = vdwg.mxu0
        %vm1213 = vcmask 72704
        %v1214 = vsel %vm1213, %v1205, -inf
        %1215 = vmax.xlane.f32.xlu0 %v1214
        %v1216 = vpop.xlane.xlu0 %1215
        %vm1217 = vcmask 65536
        %v1218 = vsel %vm1217, %v1210, -inf
        %1219 = vmax.xlane.f32.xlu0 %v1218
        %v1220 = vpop.xlane.xlu0 %1219
        %v1221 = vsub.f32 %v1205, %v1216
        %v1222 = vsub.f32 %v1210, %v1220
        %v1223 = vmul.f32 %v1221, 1.442695
        %v1224 = vpow.pop %v1223
        %v1225 = vmul.f32 %v1222, 1.442695
        %v1226 = vpow.pop %v1225
        %v1227 = vsel %vm1213, %v1224, 0.0
        %1228 = vadd.xlane.f32.xlu0 %v1227
        %v1229 = vpop.xlane.xlu0 %1228
        %v1230 = vsel %vm1217, %v1226, 0.0
        %1231 = vadd.xlane.f32.xlu0 %v1230
        %v1232 = vpop.xlane.xlu0 %1231
        %v1233 = vrcp.pop %v1229
        %v1234 = vrcp.pop %v1232
        %v1235 = vmul.f32 %v1224, %v1233
        %v1236 = vmul.f32 %v1226, %v1234
        %1237 = vrot.lane.b32.xlu0 %v1107, 64
        %v1238 = vpop.permute.xlu0 %1237
        %1239 = vrot.lane.b32.xlu0 %v1112, 64
        %v1240 = vpop.permute.xlu0 %1239
        %v1243 = vsel %vm1213, %v1235, 0
        %v1246 = vsel %vm1213, %v1236, 0
        %vm1248 = vcmask 1040384
        %v1249 = vsel %vm1248, %v1240, 0
        %1251 = vmatprep.subr.mxu0 0.0
        %1252 = vmatpush1.msra.mxu0 0.0
        %1253 = vmatprep.subr.mxu0 0.0
        %1254 = vmatpush1.msra.mxu0 0.0
        %1255 = vmatprep.subr.mxu0 0.0
        %1256 = vmatpush1.msra.mxu0 0.0
        %1257 = vmatprep.subr.mxu0 0.0
        %1258 = vmatpush1.msra.mxu0 0.0
        %1259 = vmatprep.subr.mxu0 0.0
        %1260 = vmatpush1.msra.mxu0 0.0
        %1261 = vmatprep.subr.mxu0 0.0
        %1262 = vmatpush1.msra.mxu0 0.0
        %1263 = vmatprep.subr.mxu0 0.0
        %1264 = vmatpush1.msra.mxu0 0.0
        %1265 = vmatprep.subr.mxu0 0.0
        %1266 = vmatpush1.msra.mxu0 0.0
        %1267 = vmatprep.subr.mxu0 0.0
        %1268 = vmatpush1.msra.mxu0 0.0
        %1269 = vmatprep.subr.mxu0 0.0
        %1270 = vmatpush1.msra.mxu0 0.0
        %1271 = vmatprep.subr.mxu0 0.0
        %1272 = vmatpush1.msra.mxu0 0.0
        %1273 = vmatprep.subr.mxu0 0.0
        %1274 = vmatpush1.msra.mxu0 0.0
        %1275 = vmatprep.subr.mxu0 0.0
        %1276 = vmatpush1.msra.mxu0 0.0
        %1277 = vmatprep.subr.mxu0 0.0
        %1278 = vmatpush1.msra.mxu0 0.0
        %1279 = vmatprep.subr.mxu0 0.0
        %1280 = vmatpush1.msra.mxu0 %v1249
        %1281 = vmatprep.subr.mxu0 0.0
        %1282 = vmatpush1.msra.mxu0 %v1238
        %1283 = vmatprep.subr.mxu0 0.0
        %1284 = vmatpush2.msra.mxu0 0.0
        %1285 = vmatprep.subr.mxu0 0.0
        %1286 = vmatpush2.msra.mxu0 0.0
        %1287 = vmatprep.subr.mxu0 0.0
        %1288 = vmatpush2.msra.mxu0 0.0
        %1289 = vmatprep.subr.mxu0 0.0
        %1290 = vmatpush2.msra.mxu0 0.0
        %1291 = vmatprep.subr.mxu0 0.0
        %1292 = vmatpush2.msra.mxu0 0.0
        %1293 = vmatprep.subr.mxu0 0.0
        %1294 = vmatpush2.msra.mxu0 0.0
        %1295 = vmatprep.subr.mxu0 0.0
        %1296 = vmatpush2.msra.mxu0 0.0
        %1297 = vmatprep.subr.mxu0 0.0
        %1298 = vmatpush2.msra.mxu0 0.0
        %1299 = vmatprep.subr.mxu0 0.0
        %1300 = vmatpush2.msra.mxu0 0.0
        %1301 = vmatprep.subr.mxu0 0.0
        %1302 = vmatpush2.msra.mxu0 0.0
        %1303 = vmatprep.subr.mxu0 0.0
        %1304 = vmatpush2.msra.mxu0 0.0
        %1305 = vmatprep.subr.mxu0 0.0
        %1306 = vmatpush2.msra.mxu0 0.0
        %1307 = vmatprep.subr.mxu0 0.0
        %1308 = vmatpush2.msra.mxu0 0.0
        %1309 = vmatprep.subr.mxu0 0.0
        %1310 = vmatpush2.msra.mxu0 0.0
        %1311 = vmatprep.subr.mxu0 0.0
        %1312 = vmatpush2.msra.mxu0 0.0
        %1313 = vmatprep.subr.mxu0 0.0
        %1314 = vmatpush2.msra.mxu0 0.0
        %1315 = vmatprep.mubr.f32.mxu0 0.0
        %1316 = vmatmul.mubr.f32.gmra.mxu0 %v1243
        %v1317 = vpop.f32.mrf.mxu0
        %v1318 = vadd.f32 0.0, %v1317
        %v1319 = vpop.f32.mrf.mxu0
        %1320 = vmatprep.mubr.f32.mxu0 0.0
        %1321 = vmatmul.mubr.f32.gmra.mxu0 %v1246
        %v1322 = vpop.f32.mrf.mxu0
        %v1323 = vadd.f32 0.0, %v1322
        %v1324 = vpop.f32.mrf.mxu0
        %1325 = vdwg.mxu0
        %1326 = vrot.lane.b32.xlu0 %v1119, 120
        %v1327 = vpop.permute.xlu0 %1326
        %1328 = vrot.lane.b32.xlu0 %v1120, 120
        %v1329 = vpop.permute.xlu0 %1328
        %1330 = vrot.lane.b32.xlu0 %v1107, 88
        %v1331 = vpop.permute.xlu0 %1330
        %1332 = vrot.lane.b32.xlu0 %v1112, 88
        %v1333 = vpop.permute.xlu0 %1332
        %v1334 = vsel %vm1127, %v1327, 0
        %v1336 = vsel %vm1127, %v1329, 0
        %v1338 = vsel %vm1127, %v1331, 0
        %v1340 = vsel %vm1127, %v1333, 0
        %1342 = vmatprep.subr.mxu0 0.0
        %1343 = vmatpush1.xpose.msra.mxu0 0.0
        %1344 = vmatprep.subr.mxu0 0.0
        %1345 = vmatpush1.xpose.msra.mxu0 0.0
        %1346 = vmatprep.subr.mxu0 0.0
        %1347 = vmatpush1.xpose.msra.mxu0 0.0
        %1348 = vmatprep.subr.mxu0 0.0
        %1349 = vmatpush1.xpose.msra.mxu0 0.0
        %1350 = vmatprep.subr.mxu0 0.0
        %1351 = vmatpush1.xpose.msra.mxu0 0.0
        %1352 = vmatprep.subr.mxu0 0.0
        %1353 = vmatpush1.xpose.msra.mxu0 0.0
        %1354 = vmatprep.subr.mxu0 0.0
        %1355 = vmatpush1.xpose.msra.mxu0 0.0
        %1356 = vmatprep.subr.mxu0 0.0
        %1357 = vmatpush1.xpose.msra.mxu0 0.0
        %1358 = vmatprep.subr.mxu0 0.0
        %1359 = vmatpush1.xpose.msra.mxu0 0.0
        %1360 = vmatprep.subr.mxu0 0.0
        %1361 = vmatpush1.xpose.msra.mxu0 0.0
        %1362 = vmatprep.subr.mxu0 0.0
        %1363 = vmatpush1.xpose.msra.mxu0 0.0
        %1364 = vmatprep.subr.mxu0 0.0
        %1365 = vmatpush1.xpose.msra.mxu0 0.0
        %1366 = vmatprep.subr.mxu0 0.0
        %1367 = vmatpush1.xpose.msra.mxu0 0.0
        %1368 = vmatprep.subr.mxu0 0.0
        %1369 = vmatpush1.xpose.msra.mxu0 0.0
        %1370 = vmatprep.subr.mxu0 0.0
        %1371 = vmatpush1.xpose.msra.mxu0 %v1340
        %1372 = vmatprep.subr.mxu0 0.0
        %1373 = vmatpush1.xpose.msra.mxu0 %v1338
        %1374 = vmatprep.subr.mxu0 0.0
        %1375 = vmatpush2.xpose.msra.mxu0 0.0
        %1376 = vmatprep.subr.mxu0 0.0
        %1377 = vmatpush2.xpose.msra.mxu0 0.0
        %1378 = vmatprep.subr.mxu0 0.0
        %1379 = vmatpush2.xpose.msra.mxu0 0.0
        %1380 = vmatprep.subr.mxu0 0.0
        %1381 = vmatpush2.xpose.msra.mxu0 0.0
        %1382 = vmatprep.subr.mxu0 0.0
        %1383 = vmatpush2.xpose.msra.mxu0 0.0
        %1384 = vmatprep.subr.mxu0 0.0
        %1385 = vmatpush2.xpose.msra.mxu0 0.0
        %1386 = vmatprep.subr.mxu0 0.0
        %1387 = vmatpush2.xpose.msra.mxu0 0.0
        %1388 = vmatprep.subr.mxu0 0.0
        %1389 = vmatpush2.xpose.msra.mxu0 0.0
        %1390 = vmatprep.subr.mxu0 0.0
        %1391 = vmatpush2.xpose.msra.mxu0 0.0
        %1392 = vmatprep.subr.mxu0 0.0
        %1393 = vmatpush2.xpose.msra.mxu0 0.0
        %1394 = vmatprep.subr.mxu0 0.0
        %1395 = vmatpush2.xpose.msra.mxu0 0.0
        %1396 = vmatprep.subr.mxu0 0.0
        %1397 = vmatpush2.xpose.msra.mxu0 0.0
        %1398 = vmatprep.subr.mxu0 0.0
        %1399 = vmatpush2.xpose.msra.mxu0 0.0
        %1400 = vmatprep.subr.mxu0 0.0
        %1401 = vmatpush2.xpose.msra.mxu0 0.0
        %1402 = vmatprep.subr.mxu0 0.0
        %1403 = vmatpush2.xpose.msra.mxu0 0.0
        %1404 = vmatprep.subr.mxu0 0.0
        %1405 = vmatpush2.xpose.msra.mxu0 0.0
        %1406 = vmatprep.mubr.f32.mxu0 0.0
        %1407 = vmatmul.mubr.f32.gmra.mxu0 %v1334
        %v1408 = vpop.f32.mrf.mxu0
        %v1409 = vadd.f32 0.0, %v1408
        %v1410 = vpop.f32.mrf.mxu0
        %1411 = vmatprep.mubr.f32.mxu0 0.0
        %1412 = vmatmul.mubr.f32.gmra.mxu0 %v1336
        %v1413 = vpop.f32.mrf.mxu0
        %v1414 = vadd.f32 0.0, %v1413
        %v1415 = vpop.f32.mrf.mxu0
        %1416 = vdwg.mxu0
        %v1417 = vsel %vm1213, %v1409, -inf
        %1418 = vmax.xlane.f32.xlu0 %v1417
        %v1419 = vpop.xlane.xlu0 %1418
        %v1420 = vsel %vm1217, %v1414, -inf
        %1421 = vmax.xlane.f32.xlu0 %v1420
        %v1422 = vpop.xlane.xlu0 %1421
        %v1423 = vsub.f32 %v1409, %v1419
        %v1424 = vsub.f32 %v1414, %v1422
        %v1425 = vmul.f32 %v1423, 1.442695
        %v1426 = vpow.pop %v1425
        %v1427 = vmul.f32 %v1424, 1.442695
        %v1428 = vpow.pop %v1427
        %v1429 = vsel %vm1213, %v1426, 0.0
        %1430 = vadd.xlane.f32.xlu0 %v1429
        %v1431 = vpop.xlane.xlu0 %1430
        %v1432 = vsel %vm1217, %v1428, 0.0
        %1433 = vadd.xlane.f32.xlu0 %v1432
        %v1434 = vpop.xlane.xlu0 %1433
        %v1435 = vrcp.pop %v1431
        %v1436 = vrcp.pop %v1434
        %v1437 = vmul.f32 %v1426, %v1435
        %v1438 = vmul.f32 %v1428, %v1436
        %1439 = vrot.lane.b32.xlu0 %v1107, 56
        %v1440 = vpop.permute.xlu0 %1439
        %1441 = vrot.lane.b32.xlu0 %v1112, 56
        %v1442 = vpop.permute.xlu0 %1441
        %v1445 = vsel %vm1213, %v1437, 0
        %v1448 = vsel %vm1213, %v1438, 0
        %v1450 = vsel %vm1248, %v1442, 0
        %1452 = vmatprep.subr.mxu0 0.0
        %1453 = vmatpush1.msra.mxu0 0.0
        %1454 = vmatprep.subr.mxu0 0.0
        %1455 = vmatpush1.msra.mxu0 0.0
        %1456 = vmatprep.subr.mxu0 0.0
        %1457 = vmatpush1.msra.mxu0 0.0
        %1458 = vmatprep.subr.mxu0 0.0
        %1459 = vmatpush1.msra.mxu0 0.0
        %1460 = vmatprep.subr.mxu0 0.0
        %1461 = vmatpush1.msra.mxu0 0.0
        %1462 = vmatprep.subr.mxu0 0.0
        %1463 = vmatpush1.msra.mxu0 0.0
        %1464 = vmatprep.subr.mxu0 0.0
        %1465 = vmatpush1.msra.mxu0 0.0
        %1466 = vmatprep.subr.mxu0 0.0
        %1467 = vmatpush1.msra.mxu0 0.0
        %1468 = vmatprep.subr.mxu0 0.0
        %1469 = vmatpush1.msra.mxu0 0.0
        %1470 = vmatprep.subr.mxu0 0.0
        %1471 = vmatpush1.msra.mxu0 0.0
        %1472 = vmatprep.subr.mxu0 0.0
        %1473 = vmatpush1.msra.mxu0 0.0
        %1474 = vmatprep.subr.mxu0 0.0
        %1475 = vmatpush1.msra.mxu0 0.0
        %1476 = vmatprep.subr.mxu0 0.0
        %1477 = vmatpush1.msra.mxu0 0.0
        %1478 = vmatprep.subr.mxu0 0.0
        %1479 = vmatpush1.msra.mxu0 0.0
        %1480 = vmatprep.subr.mxu0 0.0
        %1481 = vmatpush1.msra.mxu0 %v1450
        %1482 = vmatprep.subr.mxu0 0.0
        %1483 = vmatpush1.msra.mxu0 %v1440
        %1484 = vmatprep.subr.mxu0 0.0
        %1485 = vmatpush2.msra.mxu0 0.0
        %1486 = vmatprep.subr.mxu0 0.0
        %1487 = vmatpush2.msra.mxu0 0.0
        %1488 = vmatprep.subr.mxu0 0.0
        %1489 = vmatpush2.msra.mxu0 0.0
        %1490 = vmatprep.subr.mxu0 0.0
        %1491 = vmatpush2.msra.mxu0 0.0
        %1492 = vmatprep.subr.mxu0 0.0
        %1493 = vmatpush2.msra.mxu0 0.0
        %1494 = vmatprep.subr.mxu0 0.0
        %1495 = vmatpush2.msra.mxu0 0.0
        %1496 = vmatprep.subr.mxu0 0.0
        %1497 = vmatpush2.msra.mxu0 0.0
        %1498 = vmatprep.subr.mxu0 0.0
        %1499 = vmatpush2.msra.mxu0 0.0
        %1500 = vmatprep.subr.mxu0 0.0
        %1501 = vmatpush2.msra.mxu0 0.0
        %1502 = vmatprep.subr.mxu0 0.0
        %1503 = vmatpush2.msra.mxu0 0.0
        %1504 = vmatprep.subr.mxu0 0.0
        %1505 = vmatpush2.msra.mxu0 0.0
        %1506 = vmatprep.subr.mxu0 0.0
        %1507 = vmatpush2.msra.mxu0 0.0
        %1508 = vmatprep.subr.mxu0 0.0
        %1509 = vmatpush2.msra.mxu0 0.0
        %1510 = vmatprep.subr.mxu0 0.0
        %1511 = vmatpush2.msra.mxu0 0.0
        %1512 = vmatprep.subr.mxu0 0.0
        %1513 = vmatpush2.msra.mxu0 0.0
        %1514 = vmatprep.subr.mxu0 0.0
        %1515 = vmatpush2.msra.mxu0 0.0
        %1516 = vmatprep.mubr.f32.mxu0 0.0
        %1517 = vmatmul.mubr.f32.gmra.mxu0 %v1445
        %v1518 = vpop.f32.mrf.mxu0
        %v1519 = vadd.f32 0.0, %v1518
        %v1520 = vpop.f32.mrf.mxu0
        %1521 = vmatprep.mubr.f32.mxu0 0.0
        %1522 = vmatmul.mubr.f32.gmra.mxu0 %v1448
        %v1523 = vpop.f32.mrf.mxu0
        %v1524 = vadd.f32 0.0, %v1523
        %v1525 = vpop.f32.mrf.mxu0
        %1526 = vdwg.mxu0
        %v1528 = vsel %vm1127, %v1519, 0
        %v1531 = vsel %vm1127, %v1524, 0
        %1533 = vmatprep.subr.mxu0 0.0
        %1534 = vmatpush1.msra.mxu0 0.0
        %1535 = vmatprep.subr.mxu0 0.0
        %1536 = vmatpush1.msra.mxu0 0.0
        %1537 = vmatprep.subr.mxu0 0.0
        %1538 = vmatpush1.msra.mxu0 0.0
        %1539 = vmatprep.subr.mxu0 0.0
        %1540 = vmatpush1.msra.mxu0 0.0
        %1541 = vmatprep.subr.mxu0 0.0
        %1542 = vmatpush1.msra.mxu0 0.0
        %1543 = vmatprep.subr.mxu0 0.0
        %1544 = vmatpush1.msra.mxu0 0.0
        %1545 = vmatprep.subr.mxu0 0.0
        %1546 = vmatpush1.msra.mxu0 0.0
        %1547 = vmatprep.subr.mxu0 0.0
        %1548 = vmatpush1.msra.mxu0 0.0
        %1549 = vmatprep.subr.mxu0 0.0
        %1550 = vmatpush1.msra.mxu0 0.0
        %1551 = vmatprep.subr.mxu0 0.0
        %1552 = vmatpush1.msra.mxu0 0.0
        %1553 = vmatprep.subr.mxu0 0.0
        %1554 = vmatpush1.msra.mxu0 0.0
        %1555 = vmatprep.subr.mxu0 0.0
        %1556 = vmatpush1.msra.mxu0 0.0
        %1557 = vmatprep.subr.mxu0 0.0
        %1558 = vmatpush1.msra.mxu0 0.0
        %1559 = vmatprep.subr.mxu0 0.0
        %1560 = vmatpush1.msra.mxu0 0.0
        %1561 = vmatprep.subr.mxu0 0.0
        %1562 = vmatpush1.msra.mxu0 0.0
        %1563 = vmatprep.subr.mxu0 0.0
        %1564 = vmatpush1.msra.mxu0 %v1116
        %1565 = vmatprep.subr.mxu0 0.0
        %1566 = vmatpush2.msra.mxu0 0.0
        %1567 = vmatprep.subr.mxu0 0.0
        %1568 = vmatpush2.msra.mxu0 0.0
        %1569 = vmatprep.subr.mxu0 0.0
        %1570 = vmatpush2.msra.mxu0 0.0
        %1571 = vmatprep.subr.mxu0 0.0
        %1572 = vmatpush2.msra.mxu0 0.0
        %1573 = vmatprep.subr.mxu0 0.0
        %1574 = vmatpush2.msra.mxu0 0.0
        %1575 = vmatprep.subr.mxu0 0.0
        %1576 = vmatpush2.msra.mxu0 0.0
        %1577 = vmatprep.subr.mxu0 0.0
        %1578 = vmatpush2.msra.mxu0 0.0
        %1579 = vmatprep.subr.mxu0 0.0
        %1580 = vmatpush2.msra.mxu0 0.0
        %1581 = vmatprep.subr.mxu0 0.0
        %1582 = vmatpush2.msra.mxu0 0.0
        %1583 = vmatprep.subr.mxu0 0.0
        %1584 = vmatpush2.msra.mxu0 0.0
        %1585 = vmatprep.subr.mxu0 0.0
        %1586 = vmatpush2.msra.mxu0 0.0
        %1587 = vmatprep.subr.mxu0 0.0
        %1588 = vmatpush2.msra.mxu0 0.0
        %1589 = vmatprep.subr.mxu0 0.0
        %1590 = vmatpush2.msra.mxu0 0.0
        %1591 = vmatprep.subr.mxu0 0.0
        %1592 = vmatpush2.msra.mxu0 0.0
        %1593 = vmatprep.subr.mxu0 0.0
        %1594 = vmatpush2.msra.mxu0 0.0
        %1595 = vmatprep.subr.mxu0 0.0
        %1596 = vmatpush2.msra.mxu0 0.0
        %1597 = vmatprep.mubr.f32.mxu0 0.0
        %1598 = vmatmul.mubr.f32.gmra.mxu0 %v1528
        %v1599 = vpop.f32.mrf.mxu0
        %v1600 = vadd.f32 0.0, %v1599
        %v1601 = vpop.f32.mrf.mxu0
        %1602 = vmatprep.mubr.f32.mxu0 0.0
        %1603 = vmatmul.mubr.f32.gmra.mxu0 %v1531
        %v1604 = vpop.f32.mrf.mxu0
        %v1605 = vadd.f32 0.0, %v1604
        %v1606 = vpop.f32.mrf.mxu0
        %1607 = vdwg.mxu0
        %v1609 = vsel %vm1127, %v1318, 0
        %v1612 = vsel %vm1127, %v1323, 0
        %1614 = vmatprep.subr.mxu0 0.0
        %1615 = vmatpush1.msra.mxu0 0.0
        %1616 = vmatprep.subr.mxu0 0.0
        %1617 = vmatpush1.msra.mxu0 0.0
        %1618 = vmatprep.subr.mxu0 0.0
        %1619 = vmatpush1.msra.mxu0 0.0
        %1620 = vmatprep.subr.mxu0 0.0
        %1621 = vmatpush1.msra.mxu0 0.0
        %1622 = vmatprep.subr.mxu0 0.0
        %1623 = vmatpush1.msra.mxu0 0.0
        %1624 = vmatprep.subr.mxu0 0.0
        %1625 = vmatpush1.msra.mxu0 0.0
        %1626 = vmatprep.subr.mxu0 0.0
        %1627 = vmatpush1.msra.mxu0 0.0
        %1628 = vmatprep.subr.mxu0 0.0
        %1629 = vmatpush1.msra.mxu0 0.0
        %1630 = vmatprep.subr.mxu0 0.0
        %1631 = vmatpush1.msra.mxu0 0.0
        %1632 = vmatprep.subr.mxu0 0.0
        %1633 = vmatpush1.msra.mxu0 0.0
        %1634 = vmatprep.subr.mxu0 0.0
        %1635 = vmatpush1.msra.mxu0 0.0
        %1636 = vmatprep.subr.mxu0 0.0
        %1637 = vmatpush1.msra.mxu0 0.0
        %1638 = vmatprep.subr.mxu0 0.0
        %1639 = vmatpush1.msra.mxu0 0.0
        %1640 = vmatprep.subr.mxu0 0.0
        %1641 = vmatpush1.msra.mxu0 0.0
        %1642 = vmatprep.subr.mxu0 0.0
        %1643 = vmatpush1.msra.mxu0 0.0
        %1644 = vmatprep.subr.mxu0 0.0
        %1645 = vmatpush1.msra.mxu0 %v1115
        %1646 = vmatprep.subr.mxu0 0.0
        %1647 = vmatpush2.msra.mxu0 0.0
        %1648 = vmatprep.subr.mxu0 0.0
        %1649 = vmatpush2.msra.mxu0 0.0
        %1650 = vmatprep.subr.mxu0 0.0
        %1651 = vmatpush2.msra.mxu0 0.0
        %1652 = vmatprep.subr.mxu0 0.0
        %1653 = vmatpush2.msra.mxu0 0.0
        %1654 = vmatprep.subr.mxu0 0.0
        %1655 = vmatpush2.msra.mxu0 0.0
        %1656 = vmatprep.subr.mxu0 0.0
        %1657 = vmatpush2.msra.mxu0 0.0
        %1658 = vmatprep.subr.mxu0 0.0
        %1659 = vmatpush2.msra.mxu0 0.0
        %1660 = vmatprep.subr.mxu0 0.0
        %1661 = vmatpush2.msra.mxu0 0.0
        %1662 = vmatprep.subr.mxu0 0.0
        %1663 = vmatpush2.msra.mxu0 0.0
        %1664 = vmatprep.subr.mxu0 0.0
        %1665 = vmatpush2.msra.mxu0 0.0
        %1666 = vmatprep.subr.mxu0 0.0
        %1667 = vmatpush2.msra.mxu0 0.0
        %1668 = vmatprep.subr.mxu0 0.0
        %1669 = vmatpush2.msra.mxu0 0.0
        %1670 = vmatprep.subr.mxu0 0.0
        %1671 = vmatpush2.msra.mxu0 0.0
        %1672 = vmatprep.subr.mxu0 0.0
        %1673 = vmatpush2.msra.mxu0 0.0
        %1674 = vmatprep.subr.mxu0 0.0
        %1675 = vmatpush2.msra.mxu0 0.0
        %1676 = vmatprep.subr.mxu0 0.0
        %1677 = vmatpush2.msra.mxu0 0.0
        %1678 = vmatprep.mubr.f32.mxu0 0.0
        %1679 = vmatmul.mubr.f32.gmra.mxu0 %v1609
        %v1680 = vpop.f32.mrf.mxu0
        %v1681 = vadd.f32 %v1600, %v1680
        %v1682 = vpop.f32.mrf.mxu0
        %1683 = vmatprep.mubr.f32.mxu0 0.0
        %1684 = vmatmul.mubr.f32.gmra.mxu0 %v1612
        %v1685 = vpop.f32.mrf.mxu0
        %v1686 = vadd.f32 %v1605, %v1685
        %v1687 = vpop.f32.mrf.mxu0
        %1688 = vdwg.mxu0
        %1689 = vrot.lane.b32.xlu0 %v1119, 112
        %v1690 = vpop.permute.xlu0 %1689
        %1691 = vrot.lane.b32.xlu0 %v1120, 112
        %v1692 = vpop.permute.xlu0 %1691
        %1693 = vrot.lane.b32.xlu0 %v1107, 80
        %v1694 = vpop.permute.xlu0 %1693
        %1695 = vrot.lane.b32.xlu0 %v1112, 80
        %v1696 = vpop.permute.xlu0 %1695
        %v1697 = vsel %vm1127, %v1690, 0
        %v1699 = vsel %vm1127, %v1692, 0
        %v1701 = vsel %vm1127, %v1694, 0
        %v1703 = vsel %vm1127, %v1696, 0
        %1705 = vmatprep.subr.mxu0 0.0
        %1706 = vmatpush1.xpose.msra.mxu0 0.0
        %1707 = vmatprep.subr.mxu0 0.0
        %1708 = vmatpush1.xpose.msra.mxu0 0.0
        %1709 = vmatprep.subr.mxu0 0.0
        %1710 = vmatpush1.xpose.msra.mxu0 0.0
        %1711 = vmatprep.subr.mxu0 0.0
        %1712 = vmatpush1.xpose.msra.mxu0 0.0
        %1713 = vmatprep.subr.mxu0 0.0
        %1714 = vmatpush1.xpose.msra.mxu0 0.0
        %1715 = vmatprep.subr.mxu0 0.0
        %1716 = vmatpush1.xpose.msra.mxu0 0.0
        %1717 = vmatprep.subr.mxu0 0.0
        %1718 = vmatpush1.xpose.msra.mxu0 0.0
        %1719 = vmatprep.subr.mxu0 0.0
        %1720 = vmatpush1.xpose.msra.mxu0 0.0
        %1721 = vmatprep.subr.mxu0 0.0
        %1722 = vmatpush1.xpose.msra.mxu0 0.0
        %1723 = vmatprep.subr.mxu0 0.0
        %1724 = vmatpush1.xpose.msra.mxu0 0.0
        %1725 = vmatprep.subr.mxu0 0.0
        %1726 = vmatpush1.xpose.msra.mxu0 0.0
        %1727 = vmatprep.subr.mxu0 0.0
        %1728 = vmatpush1.xpose.msra.mxu0 0.0
        %1729 = vmatprep.subr.mxu0 0.0
        %1730 = vmatpush1.xpose.msra.mxu0 0.0
        %1731 = vmatprep.subr.mxu0 0.0
        %1732 = vmatpush1.xpose.msra.mxu0 0.0
        %1733 = vmatprep.subr.mxu0 0.0
        %1734 = vmatpush1.xpose.msra.mxu0 %v1703
        %1735 = vmatprep.subr.mxu0 0.0
        %1736 = vmatpush1.xpose.msra.mxu0 %v1701
        %1737 = vmatprep.subr.mxu0 0.0
        %1738 = vmatpush2.xpose.msra.mxu0 0.0
        %1739 = vmatprep.subr.mxu0 0.0
        %1740 = vmatpush2.xpose.msra.mxu0 0.0
        %1741 = vmatprep.subr.mxu0 0.0
        %1742 = vmatpush2.xpose.msra.mxu0 0.0
        %1743 = vmatprep.subr.mxu0 0.0
        %1744 = vmatpush2.xpose.msra.mxu0 0.0
        %1745 = vmatprep.subr.mxu0 0.0
        %1746 = vmatpush2.xpose.msra.mxu0 0.0
        %1747 = vmatprep.subr.mxu0 0.0
        %1748 = vmatpush2.xpose.msra.mxu0 0.0
        %1749 = vmatprep.subr.mxu0 0.0
        %1750 = vmatpush2.xpose.msra.mxu0 0.0
        %1751 = vmatprep.subr.mxu0 0.0
        %1752 = vmatpush2.xpose.msra.mxu0 0.0
        %1753 = vmatprep.subr.mxu0 0.0
        %1754 = vmatpush2.xpose.msra.mxu0 0.0
        %1755 = vmatprep.subr.mxu0 0.0
        %1756 = vmatpush2.xpose.msra.mxu0 0.0
        %1757 = vmatprep.subr.mxu0 0.0
        %1758 = vmatpush2.xpose.msra.mxu0 0.0
        %1759 = vmatprep.subr.mxu0 0.0
        %1760 = vmatpush2.xpose.msra.mxu0 0.0
        %1761 = vmatprep.subr.mxu0 0.0
        %1762 = vmatpush2.xpose.msra.mxu0 0.0
        %1763 = vmatprep.subr.mxu0 0.0
        %1764 = vmatpush2.xpose.msra.mxu0 0.0
        %1765 = vmatprep.subr.mxu0 0.0
        %1766 = vmatpush2.xpose.msra.mxu0 0.0
        %1767 = vmatprep.subr.mxu0 0.0
        %1768 = vmatpush2.xpose.msra.mxu0 0.0
        %1769 = vmatprep.mubr.f32.mxu0 0.0
        %1770 = vmatmul.mubr.f32.gmra.mxu0 %v1697
        %v1771 = vpop.f32.mrf.mxu0
        %v1772 = vadd.f32 0.0, %v1771
        %v1773 = vpop.f32.mrf.mxu0
        %1774 = vmatprep.mubr.f32.mxu0 0.0
        %1775 = vmatmul.mubr.f32.gmra.mxu0 %v1699
        %v1776 = vpop.f32.mrf.mxu0
        %v1777 = vadd.f32 0.0, %v1776
        %v1778 = vpop.f32.mrf.mxu0
        %1779 = vdwg.mxu0
        %v1780 = vsel %vm1213, %v1772, -inf
        %1781 = vmax.xlane.f32.xlu0 %v1780
        %v1782 = vpop.xlane.xlu0 %1781
        %v1783 = vsel %vm1217, %v1777, -inf
        %1784 = vmax.xlane.f32.xlu0 %v1783
        %v1785 = vpop.xlane.xlu0 %1784
        %v1786 = vsub.f32 %v1772, %v1782
        %v1787 = vsub.f32 %v1777, %v1785
        %v1788 = vmul.f32 %v1786, 1.442695
        %v1789 = vpow.pop %v1788
        %v1790 = vmul.f32 %v1787, 1.442695
        %v1791 = vpow.pop %v1790
        %v1792 = vsel %vm1213, %v1789, 0.0
        %1793 = vadd.xlane.f32.xlu0 %v1792
        %v1794 = vpop.xlane.xlu0 %1793
        %v1795 = vsel %vm1217, %v1791, 0.0
        %1796 = vadd.xlane.f32.xlu0 %v1795
        %v1797 = vpop.xlane.xlu0 %1796
        %v1798 = vrcp.pop %v1794
        %v1799 = vrcp.pop %v1797
        %v1800 = vmul.f32 %v1789, %v1798
        %v1801 = vmul.f32 %v1791, %v1799
        %1802 = vrot.lane.b32.xlu0 %v1107, 48
        %v1803 = vpop.permute.xlu0 %1802
        %1804 = vrot.lane.b32.xlu0 %v1112, 48
        %v1805 = vpop.permute.xlu0 %1804
        %v1808 = vsel %vm1213, %v1800, 0
        %v1811 = vsel %vm1213, %v1801, 0
        %v1813 = vsel %vm1248, %v1805, 0
        %1815 = vmatprep.subr.mxu0 0.0
        %1816 = vmatpush1.msra.mxu0 0.0
        %1817 = vmatprep.subr.mxu0 0.0
        %1818 = vmatpush1.msra.mxu0 0.0
        %1819 = vmatprep.subr.mxu0 0.0
        %1820 = vmatpush1.msra.mxu0 0.0
        %1821 = vmatprep.subr.mxu0 0.0
        %1822 = vmatpush1.msra.mxu0 0.0
        %1823 = vmatprep.subr.mxu0 0.0
        %1824 = vmatpush1.msra.mxu0 0.0
        %1825 = vmatprep.subr.mxu0 0.0
        %1826 = vmatpush1.msra.mxu0 0.0
        %1827 = vmatprep.subr.mxu0 0.0
        %1828 = vmatpush1.msra.mxu0 0.0
        %1829 = vmatprep.subr.mxu0 0.0
        %1830 = vmatpush1.msra.mxu0 0.0
        %1831 = vmatprep.subr.mxu0 0.0
        %1832 = vmatpush1.msra.mxu0 0.0
        %1833 = vmatprep.subr.mxu0 0.0
        %1834 = vmatpush1.msra.mxu0 0.0
        %1835 = vmatprep.subr.mxu0 0.0
        %1836 = vmatpush1.msra.mxu0 0.0
        %1837 = vmatprep.subr.mxu0 0.0
        %1838 = vmatpush1.msra.mxu0 0.0
        %1839 = vmatprep.subr.mxu0 0.0
        %1840 = vmatpush1.msra.mxu0 0.0
        %1841 = vmatprep.subr.mxu0 0.0
        %1842 = vmatpush1.msra.mxu0 0.0
        %1843 = vmatprep.subr.mxu0 0.0
        %1844 = vmatpush1.msra.mxu0 %v1813
        %1845 = vmatprep.subr.mxu0 0.0
        %1846 = vmatpush1.msra.mxu0 %v1803
        %1847 = vmatprep.subr.mxu0 0.0
        %1848 = vmatpush2.msra.mxu0 0.0
        %1849 = vmatprep.subr.mxu0 0.0
        %1850 = vmatpush2.msra.mxu0 0.0
        %1851 = vmatprep.subr.mxu0 0.0
        %1852 = vmatpush2.msra.mxu0 0.0
        %1853 = vmatprep.subr.mxu0 0.0
        %1854 = vmatpush2.msra.mxu0 0.0
        %1855 = vmatprep.subr.mxu0 0.0
        %1856 = vmatpush2.msra.mxu0 0.0
        %1857 = vmatprep.subr.mxu0 0.0
        %1858 = vmatpush2.msra.mxu0 0.0
        %1859 = vmatprep.subr.mxu0 0.0
        %1860 = vmatpush2.msra.mxu0 0.0
        %1861 = vmatprep.subr.mxu0 0.0
        %1862 = vmatpush2.msra.mxu0 0.0
        %1863 = vmatprep.subr.mxu0 0.0
        %1864 = vmatpush2.msra.mxu0 0.0
        %1865 = vmatprep.subr.mxu0 0.0
        %1866 = vmatpush2.msra.mxu0 0.0
        %1867 = vmatprep.subr.mxu0 0.0
        %1868 = vmatpush2.msra.mxu0 0.0
        %1869 = vmatprep.subr.mxu0 0.0
        %1870 = vmatpush2.msra.mxu0 0.0
        %1871 = vmatprep.subr.mxu0 0.0
        %1872 = vmatpush2.msra.mxu0 0.0
        %1873 = vmatprep.subr.mxu0 0.0
        %1874 = vmatpush2.msra.mxu0 0.0
        %1875 = vmatprep.subr.mxu0 0.0
        %1876 = vmatpush2.msra.mxu0 0.0
        %1877 = vmatprep.subr.mxu0 0.0
        %1878 = vmatpush2.msra.mxu0 0.0
        %1879 = vmatprep.mubr.f32.mxu0 0.0
        %1880 = vmatmul.mubr.f32.gmra.mxu0 %v1808
        %v1881 = vpop.f32.mrf.mxu0
        %v1882 = vadd.f32 0.0, %v1881
        %v1883 = vpop.f32.mrf.mxu0
        %1884 = vmatprep.mubr.f32.mxu0 0.0
        %1885 = vmatmul.mubr.f32.gmra.mxu0 %v1811
        %v1886 = vpop.f32.mrf.mxu0
        %v1887 = vadd.f32 0.0, %v1886
        %v1888 = vpop.f32.mrf.mxu0
        %1889 = vdwg.mxu0
        %v1891 = vsel %vm1127, %v1882, 0
        %v1894 = vsel %vm1127, %v1887, 0
        %1896 = vmatprep.subr.mxu0 0.0
        %1897 = vmatpush1.msra.mxu0 0.0
        %1898 = vmatprep.subr.mxu0 0.0
        %1899 = vmatpush1.msra.mxu0 0.0
        %1900 = vmatprep.subr.mxu0 0.0
        %1901 = vmatpush1.msra.mxu0 0.0
        %1902 = vmatprep.subr.mxu0 0.0
        %1903 = vmatpush1.msra.mxu0 0.0
        %1904 = vmatprep.subr.mxu0 0.0
        %1905 = vmatpush1.msra.mxu0 0.0
        %1906 = vmatprep.subr.mxu0 0.0
        %1907 = vmatpush1.msra.mxu0 0.0
        %1908 = vmatprep.subr.mxu0 0.0
        %1909 = vmatpush1.msra.mxu0 0.0
        %1910 = vmatprep.subr.mxu0 0.0
        %1911 = vmatpush1.msra.mxu0 0.0
        %1912 = vmatprep.subr.mxu0 0.0
        %1913 = vmatpush1.msra.mxu0 0.0
        %1914 = vmatprep.subr.mxu0 0.0
        %1915 = vmatpush1.msra.mxu0 0.0
        %1916 = vmatprep.subr.mxu0 0.0
        %1917 = vmatpush1.msra.mxu0 0.0
        %1918 = vmatprep.subr.mxu0 0.0
        %1919 = vmatpush1.msra.mxu0 0.0
        %1920 = vmatprep.subr.mxu0 0.0
        %1921 = vmatpush1.msra.mxu0 0.0
        %1922 = vmatprep.subr.mxu0 0.0
        %1923 = vmatpush1.msra.mxu0 0.0
        %1924 = vmatprep.subr.mxu0 0.0
        %1925 = vmatpush1.msra.mxu0 0.0
        %1926 = vmatprep.subr.mxu0 0.0
        %1927 = vmatpush1.msra.mxu0 %v1117
        %1928 = vmatprep.subr.mxu0 0.0
        %1929 = vmatpush2.msra.mxu0 0.0
        %1930 = vmatprep.subr.mxu0 0.0
        %1931 = vmatpush2.msra.mxu0 0.0
        %1932 = vmatprep.subr.mxu0 0.0
        %1933 = vmatpush2.msra.mxu0 0.0
        %1934 = vmatprep.subr.mxu0 0.0
        %1935 = vmatpush2.msra.mxu0 0.0
        %1936 = vmatprep.subr.mxu0 0.0
        %1937 = vmatpush2.msra.mxu0 0.0
        %1938 = vmatprep.subr.mxu0 0.0
        %1939 = vmatpush2.msra.mxu0 0.0
        %1940 = vmatprep.subr.mxu0 0.0
        %1941 = vmatpush2.msra.mxu0 0.0
        %1942 = vmatprep.subr.mxu0 0.0
        %1943 = vmatpush2.msra.mxu0 0.0
        %1944 = vmatprep.subr.mxu0 0.0
        %1945 = vmatpush2.msra.mxu0 0.0
        %1946 = vmatprep.subr.mxu0 0.0
        %1947 = vmatpush2.msra.mxu0 0.0
        %1948 = vmatprep.subr.mxu0 0.0
        %1949 = vmatpush2.msra.mxu0 0.0
        %1950 = vmatprep.subr.mxu0 0.0
        %1951 = vmatpush2.msra.mxu0 0.0
        %1952 = vmatprep.subr.mxu0 0.0
        %1953 = vmatpush2.msra.mxu0 0.0
        %1954 = vmatprep.subr.mxu0 0.0
        %1955 = vmatpush2.msra.mxu0 0.0
        %1956 = vmatprep.subr.mxu0 0.0
        %1957 = vmatpush2.msra.mxu0 0.0
        %1958 = vmatprep.subr.mxu0 0.0
        %1959 = vmatpush2.msra.mxu0 0.0
        %1960 = vmatprep.mubr.f32.mxu0 0.0
        %1961 = vmatmul.mubr.f32.gmra.mxu0 %v1891
        %v1962 = vpop.f32.mrf.mxu0
        %v1963 = vadd.f32 0.0, %v1962
        %v1964 = vpop.f32.mrf.mxu0
        %1965 = vmatprep.mubr.f32.mxu0 0.0
        %1966 = vmatmul.mubr.f32.gmra.mxu0 %v1894
        %v1967 = vpop.f32.mrf.mxu0
        %v1968 = vadd.f32 0.0, %v1967
        %v1969 = vpop.f32.mrf.mxu0
        %1970 = vdwg.mxu0
        %v1971 = vadd.f32 %v1681, %v1963
        %v1972 = vadd.f32 %v1686, %v1968
        %1973 = vrot.lane.b32.xlu0 %v1119, 104
        %v1974 = vpop.permute.xlu0 %1973
        %1975 = vrot.lane.b32.xlu0 %v1120, 104
        %v1976 = vpop.permute.xlu0 %1975
        %1977 = vrot.lane.b32.xlu0 %v1107, 72
        %v1978 = vpop.permute.xlu0 %1977
        %1979 = vrot.lane.b32.xlu0 %v1112, 72
        %v1980 = vpop.permute.xlu0 %1979
        %v1981 = vsel %vm1127, %v1974, 0
        %v1983 = vsel %vm1127, %v1976, 0
        %v1985 = vsel %vm1127, %v1978, 0
        %v1987 = vsel %vm1127, %v1980, 0
        %1989 = vmatprep.subr.mxu0 0.0
        %1990 = vmatpush1.xpose.msra.mxu0 0.0
        %1991 = vmatprep.subr.mxu0 0.0
        %1992 = vmatpush1.xpose.msra.mxu0 0.0
        %1993 = vmatprep.subr.mxu0 0.0
        %1994 = vmatpush1.xpose.msra.mxu0 0.0
        %1995 = vmatprep.subr.mxu0 0.0
        %1996 = vmatpush1.xpose.msra.mxu0 0.0
        %1997 = vmatprep.subr.mxu0 0.0
        %1998 = vmatpush1.xpose.msra.mxu0 0.0
        %1999 = vmatprep.subr.mxu0 0.0
        %2000 = vmatpush1.xpose.msra.mxu0 0.0
        %2001 = vmatprep.subr.mxu0 0.0
        %2002 = vmatpush1.xpose.msra.mxu0 0.0
        %2003 = vmatprep.subr.mxu0 0.0
        %2004 = vmatpush1.xpose.msra.mxu0 0.0
        %2005 = vmatprep.subr.mxu0 0.0
        %2006 = vmatpush1.xpose.msra.mxu0 0.0
        %2007 = vmatprep.subr.mxu0 0.0
        %2008 = vmatpush1.xpose.msra.mxu0 0.0
        %2009 = vmatprep.subr.mxu0 0.0
        %2010 = vmatpush1.xpose.msra.mxu0 0.0
        %2011 = vmatprep.subr.mxu0 0.0
        %2012 = vmatpush1.xpose.msra.mxu0 0.0
        %2013 = vmatprep.subr.mxu0 0.0
        %2014 = vmatpush1.xpose.msra.mxu0 0.0
        %2015 = vmatprep.subr.mxu0 0.0
        %2016 = vmatpush1.xpose.msra.mxu0 0.0
        %2017 = vmatprep.subr.mxu0 0.0
        %2018 = vmatpush1.xpose.msra.mxu0 %v1987
        %2019 = vmatprep.subr.mxu0 0.0
        %2020 = vmatpush1.xpose.msra.mxu0 %v1985
        %2021 = vmatprep.subr.mxu0 0.0
        %2022 = vmatpush2.xpose.msra.mxu0 0.0
        %2023 = vmatprep.subr.mxu0 0.0
        %2024 = vmatpush2.xpose.msra.mxu0 0.0
        %2025 = vmatprep.subr.mxu0 0.0
        %2026 = vmatpush2.xpose.msra.mxu0 0.0
        %2027 = vmatprep.subr.mxu0 0.0
        %2028 = vmatpush2.xpose.msra.mxu0 0.0
        %2029 = vmatprep.subr.mxu0 0.0
        %2030 = vmatpush2.xpose.msra.mxu0 0.0
        %2031 = vmatprep.subr.mxu0 0.0
        %2032 = vmatpush2.xpose.msra.mxu0 0.0
        %2033 = vmatprep.subr.mxu0 0.0
        %2034 = vmatpush2.xpose.msra.mxu0 0.0
        %2035 = vmatprep.subr.mxu0 0.0
        %2036 = vmatpush2.xpose.msra.mxu0 0.0
        %2037 = vmatprep.subr.mxu0 0.0
        %2038 = vmatpush2.xpose.msra.mxu0 0.0
        %2039 = vmatprep.subr.mxu0 0.0
        %2040 = vmatpush2.xpose.msra.mxu0 0.0
        %2041 = vmatprep.subr.mxu0 0.0
        %2042 = vmatpush2.xpose.msra.mxu0 0.0
        %2043 = vmatprep.subr.mxu0 0.0
        %2044 = vmatpush2.xpose.msra.mxu0 0.0
        %2045 = vmatprep.subr.mxu0 0.0
        %2046 = vmatpush2.xpose.msra.mxu0 0.0
        %2047 = vmatprep.subr.mxu0 0.0
        %2048 = vmatpush2.xpose.msra.mxu0 0.0
        %2049 = vmatprep.subr.mxu0 0.0
        %2050 = vmatpush2.xpose.msra.mxu0 0.0
        %2051 = vmatprep.subr.mxu0 0.0
        %2052 = vmatpush2.xpose.msra.mxu0 0.0
        %2053 = vmatprep.mubr.f32.mxu0 0.0
        %2054 = vmatmul.mubr.f32.gmra.mxu0 %v1981
        %v2055 = vpop.f32.mrf.mxu0
        %v2056 = vadd.f32 0.0, %v2055
        %v2057 = vpop.f32.mrf.mxu0
        %2058 = vmatprep.mubr.f32.mxu0 0.0
        %2059 = vmatmul.mubr.f32.gmra.mxu0 %v1983
        %v2060 = vpop.f32.mrf.mxu0
        %v2061 = vadd.f32 0.0, %v2060
        %v2062 = vpop.f32.mrf.mxu0
        %2063 = vdwg.mxu0
        %v2064 = vsel %vm1213, %v2056, -inf
        %2065 = vmax.xlane.f32.xlu0 %v2064
        %v2066 = vpop.xlane.xlu0 %2065
        %v2067 = vsel %vm1217, %v2061, -inf
        %2068 = vmax.xlane.f32.xlu0 %v2067
        %v2069 = vpop.xlane.xlu0 %2068
        %v2070 = vsub.f32 %v2056, %v2066
        %v2071 = vsub.f32 %v2061, %v2069
        %v2072 = vmul.f32 %v2070, 1.442695
        %v2073 = vpow.pop %v2072
        %v2074 = vmul.f32 %v2071, 1.442695
        %v2075 = vpow.pop %v2074
        %v2076 = vsel %vm1213, %v2073, 0.0
        %2077 = vadd.xlane.f32.xlu0 %v2076
        %v2078 = vpop.xlane.xlu0 %2077
        %v2079 = vsel %vm1217, %v2075, 0.0
        %2080 = vadd.xlane.f32.xlu0 %v2079
        %v2081 = vpop.xlane.xlu0 %2080
        %v2082 = vrcp.pop %v2078
        %v2083 = vrcp.pop %v2081
        %v2084 = vmul.f32 %v2073, %v2082
        %v2085 = vmul.f32 %v2075, %v2083
        %2086 = vrot.lane.b32.xlu0 %v1107, 40
        %v2087 = vpop.permute.xlu0 %2086
        %2088 = vrot.lane.b32.xlu0 %v1112, 40
        %v2089 = vpop.permute.xlu0 %2088
        %v2092 = vsel %vm1213, %v2084, 0
        %v2095 = vsel %vm1213, %v2085, 0
        %v2097 = vsel %vm1248, %v2089, 0
        %2099 = vmatprep.subr.mxu0 0.0
        %2100 = vmatpush1.msra.mxu0 0.0
        %2101 = vmatprep.subr.mxu0 0.0
        %2102 = vmatpush1.msra.mxu0 0.0
        %2103 = vmatprep.subr.mxu0 0.0
        %2104 = vmatpush1.msra.mxu0 0.0
        %2105 = vmatprep.subr.mxu0 0.0
        %2106 = vmatpush1.msra.mxu0 0.0
        %2107 = vmatprep.subr.mxu0 0.0
        %2108 = vmatpush1.msra.mxu0 0.0
        %2109 = vmatprep.subr.mxu0 0.0
        %2110 = vmatpush1.msra.mxu0 0.0
        %2111 = vmatprep.subr.mxu0 0.0
        %2112 = vmatpush1.msra.mxu0 0.0
        %2113 = vmatprep.subr.mxu0 0.0
        %2114 = vmatpush1.msra.mxu0 0.0
        %2115 = vmatprep.subr.mxu0 0.0
        %2116 = vmatpush1.msra.mxu0 0.0
        %2117 = vmatprep.subr.mxu0 0.0
        %2118 = vmatpush1.msra.mxu0 0.0
        %2119 = vmatprep.subr.mxu0 0.0
        %2120 = vmatpush1.msra.mxu0 0.0
        %2121 = vmatprep.subr.mxu0 0.0
        %2122 = vmatpush1.msra.mxu0 0.0
        %2123 = vmatprep.subr.mxu0 0.0
        %2124 = vmatpush1.msra.mxu0 0.0
        %2125 = vmatprep.subr.mxu0 0.0
        %2126 = vmatpush1.msra.mxu0 0.0
        %2127 = vmatprep.subr.mxu0 0.0
        %2128 = vmatpush1.msra.mxu0 %v2097
        %2129 = vmatprep.subr.mxu0 0.0
        %2130 = vmatpush1.msra.mxu0 %v2087
        %2131 = vmatprep.subr.mxu0 0.0
        %2132 = vmatpush2.msra.mxu0 0.0
        %2133 = vmatprep.subr.mxu0 0.0
        %2134 = vmatpush2.msra.mxu0 0.0
        %2135 = vmatprep.subr.mxu0 0.0
        %2136 = vmatpush2.msra.mxu0 0.0
        %2137 = vmatprep.subr.mxu0 0.0
        %2138 = vmatpush2.msra.mxu0 0.0
        %2139 = vmatprep.subr.mxu0 0.0
        %2140 = vmatpush2.msra.mxu0 0.0
        %2141 = vmatprep.subr.mxu0 0.0
        %2142 = vmatpush2.msra.mxu0 0.0
        %2143 = vmatprep.subr.mxu0 0.0
        %2144 = vmatpush2.msra.mxu0 0.0
        %2145 = vmatprep.subr.mxu0 0.0
        %2146 = vmatpush2.msra.mxu0 0.0
        %2147 = vmatprep.subr.mxu0 0.0
        %2148 = vmatpush2.msra.mxu0 0.0
        %2149 = vmatprep.subr.mxu0 0.0
        %2150 = vmatpush2.msra.mxu0 0.0
        %2151 = vmatprep.subr.mxu0 0.0
        %2152 = vmatpush2.msra.mxu0 0.0
        %2153 = vmatprep.subr.mxu0 0.0
        %2154 = vmatpush2.msra.mxu0 0.0
        %2155 = vmatprep.subr.mxu0 0.0
        %2156 = vmatpush2.msra.mxu0 0.0
        %2157 = vmatprep.subr.mxu0 0.0
        %2158 = vmatpush2.msra.mxu0 0.0
        %2159 = vmatprep.subr.mxu0 0.0
        %2160 = vmatpush2.msra.mxu0 0.0
        %2161 = vmatprep.subr.mxu0 0.0
        %2162 = vmatpush2.msra.mxu0 0.0
        %2163 = vmatprep.mubr.f32.mxu0 0.0
        %2164 = vmatmul.mubr.f32.gmra.mxu0 %v2092
        %v2165 = vpop.f32.mrf.mxu0
        %v2166 = vadd.f32 0.0, %v2165
        %v2167 = vpop.f32.mrf.mxu0
        %2168 = vmatprep.mubr.f32.mxu0 0.0
        %2169 = vmatmul.mubr.f32.gmra.mxu0 %v2095
        %v2170 = vpop.f32.mrf.mxu0
        %v2171 = vadd.f32 0.0, %v2170
        %v2172 = vpop.f32.mrf.mxu0
        %2173 = vdwg.mxu0
        %v2175 = vsel %vm1127, %v2166, 0
        %v2178 = vsel %vm1127, %v2171, 0
        %2180 = vmatprep.subr.mxu0 0.0
        %2181 = vmatpush1.msra.mxu0 0.0
        %2182 = vmatprep.subr.mxu0 0.0
        %2183 = vmatpush1.msra.mxu0 0.0
        %2184 = vmatprep.subr.mxu0 0.0
        %2185 = vmatpush1.msra.mxu0 0.0
        %2186 = vmatprep.subr.mxu0 0.0
        %2187 = vmatpush1.msra.mxu0 0.0
        %2188 = vmatprep.subr.mxu0 0.0
        %2189 = vmatpush1.msra.mxu0 0.0
        %2190 = vmatprep.subr.mxu0 0.0
        %2191 = vmatpush1.msra.mxu0 0.0
        %2192 = vmatprep.subr.mxu0 0.0
        %2193 = vmatpush1.msra.mxu0 0.0
        %2194 = vmatprep.subr.mxu0 0.0
        %2195 = vmatpush1.msra.mxu0 0.0
        %2196 = vmatprep.subr.mxu0 0.0
        %2197 = vmatpush1.msra.mxu0 0.0
        %2198 = vmatprep.subr.mxu0 0.0
        %2199 = vmatpush1.msra.mxu0 0.0
        %2200 = vmatprep.subr.mxu0 0.0
        %2201 = vmatpush1.msra.mxu0 0.0
        %2202 = vmatprep.subr.mxu0 0.0
        %2203 = vmatpush1.msra.mxu0 0.0
        %2204 = vmatprep.subr.mxu0 0.0
        %2205 = vmatpush1.msra.mxu0 0.0
        %2206 = vmatprep.subr.mxu0 0.0
        %2207 = vmatpush1.msra.mxu0 0.0
        %2208 = vmatprep.subr.mxu0 0.0
        %2209 = vmatpush1.msra.mxu0 0.0
        %2210 = vmatprep.subr.mxu0 0.0
        %2211 = vmatpush1.msra.mxu0 %v1118
        %2212 = vmatprep.subr.mxu0 0.0
        %2213 = vmatpush2.msra.mxu0 0.0
        %2214 = vmatprep.subr.mxu0 0.0
        %2215 = vmatpush2.msra.mxu0 0.0
        %2216 = vmatprep.subr.mxu0 0.0
        %2217 = vmatpush2.msra.mxu0 0.0
        %2218 = vmatprep.subr.mxu0 0.0
        %2219 = vmatpush2.msra.mxu0 0.0
        %2220 = vmatprep.subr.mxu0 0.0
        %2221 = vmatpush2.msra.mxu0 0.0
        %2222 = vmatprep.subr.mxu0 0.0
        %2223 = vmatpush2.msra.mxu0 0.0
        %2224 = vmatprep.subr.mxu0 0.0
        %2225 = vmatpush2.msra.mxu0 0.0
        %2226 = vmatprep.subr.mxu0 0.0
        %2227 = vmatpush2.msra.mxu0 0.0
        %2228 = vmatprep.subr.mxu0 0.0
        %2229 = vmatpush2.msra.mxu0 0.0
        %2230 = vmatprep.subr.mxu0 0.0
        %2231 = vmatpush2.msra.mxu0 0.0
        %2232 = vmatprep.subr.mxu0 0.0
        %2233 = vmatpush2.msra.mxu0 0.0
        %2234 = vmatprep.subr.mxu0 0.0
        %2235 = vmatpush2.msra.mxu0 0.0
        %2236 = vmatprep.subr.mxu0 0.0
        %2237 = vmatpush2.msra.mxu0 0.0
        %2238 = vmatprep.subr.mxu0 0.0
        %2239 = vmatpush2.msra.mxu0 0.0
        %2240 = vmatprep.subr.mxu0 0.0
        %2241 = vmatpush2.msra.mxu0 0.0
        %2242 = vmatprep.subr.mxu0 0.0
        %2243 = vmatpush2.msra.mxu0 0.0
        %2244 = vmatprep.mubr.f32.mxu0 0.0
        %2245 = vmatmul.mubr.f32.gmra.mxu0 %v2175
        %v2246 = vpop.f32.mrf.mxu0
        %v2247 = vadd.f32 0.0, %v2246
        %v2248 = vpop.f32.mrf.mxu0
        %2249 = vmatprep.mubr.f32.mxu0 0.0
        %2250 = vmatmul.mubr.f32.gmra.mxu0 %v2178
        %v2251 = vpop.f32.mrf.mxu0
        %v2252 = vadd.f32 0.0, %v2251
        %v2253 = vpop.f32.mrf.mxu0
        %2254 = vdwg.mxu0
        %v2255 = vadd.f32 %v1971, %v2247
        %v2256 = vadd.f32 %v1972, %v2252
        %v2257 = vld [vmem:[%s746] sm:$0x1]
        %v2259 = vlaneseq
        %v2260 = vshrl.u32 %v2259, 7
        %v2261 = vsub.s32 0, %v2260
        %v2262 = vrot.slane %v2257, %v2261
        %v2264 = vadd.f32 %v2255, %v2262
        %v2265 = vadd.f32 %v2256, %v2262
        %v2266 = vadd.f32 %v1020, %v2264
        %v2267 = vadd.f32 %v1021, %v2265
        %v2268 = vld [vmem:[%s754] sm:$0x1]
        %v2269 = vld [vmem:[%s762] sm:$0x1]
        %v2270 = vsel %vm1033, %v2266, 0.0
        %2271 = vadd.xlane.f32.xlu0 %v2270
        %v2272 = vpop.xlane.xlu0 %2271
        %vm2273 = vcmask 253952
        %v2274 = vsel %vm2273, %v2267, 0.0
        %2275 = vadd.xlane.f32.xlu0 %v2274
        %v2276 = vpop.xlane.xlu0 %2275
        %v2277 = vrcp.pop 32.0
        %v2278 = vmul.f32 %v2272, %v2277
        %v2279 = vmul.f32 %v2276, %v2277
        %v2280 = vsub.f32 %v2266, %v2278
        %v2281 = vsub.f32 %v2267, %v2279
        %v2282 = vmul.f32 %v2280, %v2280
        %v2283 = vmul.f32 %v2281, %v2281
        %v2284 = vsel %vm1033, %v2282, 0.0
        %2285 = vadd.xlane.f32.xlu0 %v2284
        %v2286 = vpop.xlane.xlu0 %2285
        %v2287 = vsel %vm2273, %v2283, 0.0
        %2288 = vadd.xlane.f32.xlu0 %v2287
        %v2289 = vpop.xlane.xlu0 %2288
        %v2290 = vmul.f32 %v2286, %v2277
        %v2291 = vmul.f32 %v2289, %v2277
        %v2292 = vadd.f32 %v2290, 1e-05
        %v2293 = vadd.f32 %v2291, 1e-05
        %v2294 = vrsqrt.pop %v2292
        %v2295 = vrsqrt.pop %v2293
        %v2296 = vmul.f32 %v2280, %v2294
        %v2297 = vmul.f32 %v2281, %v2295
        %v2299 = vlaneseq
        %v2300 = vshrl.u32 %v2299, 7
        %v2301 = vsub.s32 0, %v2300
        %v2302 = vrot.slane %v2268, %v2301
        %v2304 = vmul.f32 %v2296, %v2302
        %v2305 = vmul.f32 %v2297, %v2302
        %v2307 = vlaneseq
        %v2308 = vshrl.u32 %v2307, 7
        %v2309 = vsub.s32 0, %v2308
        %v2310 = vrot.slane %v2269, %v2309
        %v2312 = vadd.f32 %v2304, %v2310
        %v2313 = vadd.f32 %v2305, %v2310
        %v2314 = vld [vmem:[%s910] sm:$0xff]
        %v2315 = vld [vmem:[%s910 + $0x8] sm:$0xff]
        %v2316 = vld [vmem:[%s910 + $0x10] sm:$0xff]
        %v2317 = vld [vmem:[%s910 + $0x18] sm:$0xff]
        %v2318 = vld [vmem:[%s770] sm:$0x1]
        %v2320 = vlaneseq
        %v2321 = vshrl.u32 %v2320, 7
        %v2322 = vsub.s32 0, %v2321
        %v2323 = vrot.slane %v2318, %v2322
        %v2326 = vsel %vm1033, %v2312, 0
        %v2329 = vsel %vm1033, %v2313, 0
        %2331 = vmatprep.subr.mxu0 0.0
        %2332 = vmatpush1.msra.mxu0 0.0
        %2333 = vmatprep.subr.mxu0 0.0
        %2334 = vmatpush1.msra.mxu0 0.0
        %2335 = vmatprep.subr.mxu0 0.0
        %2336 = vmatpush1.msra.mxu0 0.0
        %2337 = vmatprep.subr.mxu0 0.0
        %2338 = vmatpush1.msra.mxu0 0.0
        %2339 = vmatprep.subr.mxu0 0.0
        %2340 = vmatpush1.msra.mxu0 0.0
        %2341 = vmatprep.subr.mxu0 0.0
        %2342 = vmatpush1.msra.mxu0 0.0
        %2343 = vmatprep.subr.mxu0 0.0
        %2344 = vmatpush1.msra.mxu0 0.0
        %2345 = vmatprep.subr.mxu0 0.0
        %2346 = vmatpush1.msra.mxu0 0.0
        %2347 = vmatprep.subr.mxu0 0.0
        %2348 = vmatpush1.msra.mxu0 0.0
        %2349 = vmatprep.subr.mxu0 0.0
        %2350 = vmatpush1.msra.mxu0 0.0
        %2351 = vmatprep.subr.mxu0 0.0
        %2352 = vmatpush1.msra.mxu0 0.0
        %2353 = vmatprep.subr.mxu0 0.0
        %2354 = vmatpush1.msra.mxu0 0.0
        %2355 = vmatprep.subr.mxu0 0.0
        %2356 = vmatpush1.msra.mxu0 %v2317
        %2357 = vmatprep.subr.mxu0 0.0
        %2358 = vmatpush1.msra.mxu0 %v2316
        %2359 = vmatprep.subr.mxu0 0.0
        %2360 = vmatpush1.msra.mxu0 %v2315
        %2361 = vmatprep.subr.mxu0 0.0
        %2362 = vmatpush1.msra.mxu0 %v2314
        %2363 = vmatprep.subr.mxu0 0.0
        %2364 = vmatpush2.msra.mxu0 0.0
        %2365 = vmatprep.subr.mxu0 0.0
        %2366 = vmatpush2.msra.mxu0 0.0
        %2367 = vmatprep.subr.mxu0 0.0
        %2368 = vmatpush2.msra.mxu0 0.0
        %2369 = vmatprep.subr.mxu0 0.0
        %2370 = vmatpush2.msra.mxu0 0.0
        %2371 = vmatprep.subr.mxu0 0.0
        %2372 = vmatpush2.msra.mxu0 0.0
        %2373 = vmatprep.subr.mxu0 0.0
        %2374 = vmatpush2.msra.mxu0 0.0
        %2375 = vmatprep.subr.mxu0 0.0
        %2376 = vmatpush2.msra.mxu0 0.0
        %2377 = vmatprep.subr.mxu0 0.0
        %2378 = vmatpush2.msra.mxu0 0.0
        %2379 = vmatprep.subr.mxu0 0.0
        %2380 = vmatpush2.msra.mxu0 0.0
        %2381 = vmatprep.subr.mxu0 0.0
        %2382 = vmatpush2.msra.mxu0 0.0
        %2383 = vmatprep.subr.mxu0 0.0
        %2384 = vmatpush2.msra.mxu0 0.0
        %2385 = vmatprep.subr.mxu0 0.0
        %2386 = vmatpush2.msra.mxu0 0.0
        %2387 = vmatprep.subr.mxu0 0.0
        %2388 = vmatpush2.msra.mxu0 0.0
        %2389 = vmatprep.subr.mxu0 0.0
        %2390 = vmatpush2.msra.mxu0 0.0
        %2391 = vmatprep.subr.mxu0 0.0
        %2392 = vmatpush2.msra.mxu0 0.0
        %2393 = vmatprep.subr.mxu0 0.0
        %2394 = vmatpush2.msra.mxu0 0.0
        %2395 = vmatprep.mubr.f32.mxu0 0.0
        %2396 = vmatmul.mubr.f32.gmra.mxu0 %v2326
        %v2397 = vpop.f32.mrf.mxu0
        %v2398 = vadd.f32 %v2323, %v2397
        %v2399 = vpop.f32.mrf.mxu0
        %2400 = vmatprep.mubr.f32.mxu0 0.0
        %2401 = vmatmul.mubr.f32.gmra.mxu0 %v2329
        %v2402 = vpop.f32.mrf.mxu0
        %v2403 = vadd.f32 %v2323, %v2402
        %v2404 = vpop.f32.mrf.mxu0
        %2405 = vdwg.mxu0
        %v2406 = vmax.f32 %v2398, 0.0
        %v2407 = vmax.f32 %v2403, 0.0
        %v2408 = vld [vmem:[%s915] sm:$0xff]
        %v2409 = vld [vmem:[%s915 + $0x8] sm:$0xff]
        %v2410 = vld [vmem:[%s915 + $0x10] sm:$0xff]
        %v2411 = vld [vmem:[%s915 + $0x18] sm:$0xff]
        %v2412 = vld [vmem:[%s915 + $0x20] sm:$0xff]
        %v2413 = vld [vmem:[%s915 + $0x28] sm:$0xff]
        %v2414 = vld [vmem:[%s915 + $0x30] sm:$0xff]
        %v2415 = vld [vmem:[%s915 + $0x38] sm:$0xff]
        %v2416 = vld [vmem:[%s778] sm:$0x1]
        %v2418 = vlaneseq
        %v2419 = vshrl.u32 %v2418, 7
        %v2420 = vsub.s32 0, %v2419
        %v2421 = vrot.slane %v2416, %v2420
        %vm2423 = vcmask 523264
        %v2425 = vsel %vm2423, %v2406, 0
        %v2428 = vsel %vm2423, %v2407, 0
        %2430 = vmatprep.subr.mxu0 0.0
        %2431 = vmatpush1.msra.mxu0 0.0
        %2432 = vmatprep.subr.mxu0 0.0
        %2433 = vmatpush1.msra.mxu0 0.0
        %2434 = vmatprep.subr.mxu0 0.0
        %2435 = vmatpush1.msra.mxu0 0.0
        %2436 = vmatprep.subr.mxu0 0.0
        %2437 = vmatpush1.msra.mxu0 0.0
        %2438 = vmatprep.subr.mxu0 0.0
        %2439 = vmatpush1.msra.mxu0 0.0
        %2440 = vmatprep.subr.mxu0 0.0
        %2441 = vmatpush1.msra.mxu0 0.0
        %2442 = vmatprep.subr.mxu0 0.0
        %2443 = vmatpush1.msra.mxu0 0.0
        %2444 = vmatprep.subr.mxu0 0.0
        %2445 = vmatpush1.msra.mxu0 0.0
        %2446 = vmatprep.subr.mxu0 0.0
        %2447 = vmatpush1.msra.mxu0 %v2415
        %2448 = vmatprep.subr.mxu0 0.0
        %2449 = vmatpush1.msra.mxu0 %v2414
        %2450 = vmatprep.subr.mxu0 0.0
        %2451 = vmatpush1.msra.mxu0 %v2413
        %2452 = vmatprep.subr.mxu0 0.0
        %2453 = vmatpush1.msra.mxu0 %v2412
        %2454 = vmatprep.subr.mxu0 0.0
        %2455 = vmatpush1.msra.mxu0 %v2411
        %2456 = vmatprep.subr.mxu0 0.0
        %2457 = vmatpush1.msra.mxu0 %v2410
        %2458 = vmatprep.subr.mxu0 0.0
        %2459 = vmatpush1.msra.mxu0 %v2409
        %2460 = vmatprep.subr.mxu0 0.0
        %2461 = vmatpush1.msra.mxu0 %v2408
        %2462 = vmatprep.subr.mxu0 0.0
        %2463 = vmatpush2.msra.mxu0 0.0
        %2464 = vmatprep.subr.mxu0 0.0
        %2465 = vmatpush2.msra.mxu0 0.0
        %2466 = vmatprep.subr.mxu0 0.0
        %2467 = vmatpush2.msra.mxu0 0.0
        %2468 = vmatprep.subr.mxu0 0.0
        %2469 = vmatpush2.msra.mxu0 0.0
        %2470 = vmatprep.subr.mxu0 0.0
        %2471 = vmatpush2.msra.mxu0 0.0
        %2472 = vmatprep.subr.mxu0 0.0
        %2473 = vmatpush2.msra.mxu0 0.0
        %2474 = vmatprep.subr.mxu0 0.0
        %2475 = vmatpush2.msra.mxu0 0.0
        %2476 = vmatprep.subr.mxu0 0.0
        %2477 = vmatpush2.msra.mxu0 0.0
        %2478 = vmatprep.subr.mxu0 0.0
        %2479 = vmatpush2.msra.mxu0 0.0
        %2480 = vmatprep.subr.mxu0 0.0
        %2481 = vmatpush2.msra.mxu0 0.0
        %2482 = vmatprep.subr.mxu0 0.0
        %2483 = vmatpush2.msra.mxu0 0.0
        %2484 = vmatprep.subr.mxu0 0.0
        %2485 = vmatpush2.msra.mxu0 0.0
        %2486 = vmatprep.subr.mxu0 0.0
        %2487 = vmatpush2.msra.mxu0 0.0
        %2488 = vmatprep.subr.mxu0 0.0
        %2489 = vmatpush2.msra.mxu0 0.0
        %2490 = vmatprep.subr.mxu0 0.0
        %2491 = vmatpush2.msra.mxu0 0.0
        %2492 = vmatprep.subr.mxu0 0.0
        %2493 = vmatpush2.msra.mxu0 0.0
        %2494 = vmatprep.mubr.f32.mxu0 0.0
        %2495 = vmatmul.mubr.f32.gmra.mxu0 %v2425
        %v2496 = vpop.f32.mrf.mxu0
        %v2497 = vadd.f32 %v2421, %v2496
        %v2498 = vpop.f32.mrf.mxu0
        %2499 = vmatprep.mubr.f32.mxu0 0.0
        %2500 = vmatmul.mubr.f32.gmra.mxu0 %v2428
        %v2501 = vpop.f32.mrf.mxu0
        %v2502 = vadd.f32 %v2421, %v2501
        %v2503 = vpop.f32.mrf.mxu0
        %2504 = vdwg.mxu0
        %v2505 = vadd.f32 %v2312, %v2497
        %v2506 = vadd.f32 %v2313, %v2502
        %v2507 = vld [vmem:[%s786] sm:$0x1]
        %v2508 = vld [vmem:[%s794] sm:$0x1]
        %v2509 = vsel %vm1033, %v2505, 0.0
        %2510 = vadd.xlane.f32.xlu0 %v2509
        %v2511 = vpop.xlane.xlu0 %2510
        %v2512 = vsel %vm2273, %v2506, 0.0
        %2513 = vadd.xlane.f32.xlu0 %v2512
        %v2514 = vpop.xlane.xlu0 %2513
        %v2515 = vmul.f32 %v2511, %v2277
        %v2516 = vmul.f32 %v2514, %v2277
        %v2517 = vsub.f32 %v2505, %v2515
        %v2518 = vsub.f32 %v2506, %v2516
        %v2519 = vmul.f32 %v2517, %v2517
        %v2520 = vmul.f32 %v2518, %v2518
        %v2521 = vsel %vm1033, %v2519, 0.0
        %2522 = vadd.xlane.f32.xlu0 %v2521
        %v2523 = vpop.xlane.xlu0 %2522
        %v2524 = vsel %vm2273, %v2520, 0.0
        %2525 = vadd.xlane.f32.xlu0 %v2524
        %v2526 = vpop.xlane.xlu0 %2525
        %v2527 = vmul.f32 %v2523, %v2277
        %v2528 = vmul.f32 %v2526, %v2277
        %v2529 = vadd.f32 %v2527, 1e-05
        %v2530 = vadd.f32 %v2528, 1e-05
        %v2531 = vrsqrt.pop %v2529
        %v2532 = vrsqrt.pop %v2530
        %v2533 = vmul.f32 %v2517, %v2531
        %v2534 = vmul.f32 %v2518, %v2532
        %v2536 = vlaneseq
        %v2537 = vshrl.u32 %v2536, 7
        %v2538 = vsub.s32 0, %v2537
        %v2539 = vrot.slane %v2507, %v2538
        %v2541 = vmul.f32 %v2533, %v2539
        %v2542 = vmul.f32 %v2534, %v2539
        %v2544 = vlaneseq
        %v2545 = vshrl.u32 %v2544, 7
        %v2546 = vsub.s32 0, %v2545
        %v2547 = vrot.slane %v2508, %v2546
        %v2549 = vadd.f32 %v2541, %v2547
        %v2550 = vadd.f32 %v2542, %v2547
        %2551 = vst.msk [vmem:[#allocation2] sm:$0xff] %vm1033, %v2549
        %2552 = vst.msk [vmem:[#allocation2 + $0x8] sm:$0x1] %vm2273, %v2550
        %p2553 = scmp.eq.s32.totalorder %s40, 1
        // Predicated region
        $region133: #{pose_vit_forward.1} parent=87 // pred_check
          %p2554 = pneg %p2553
        $region134: #{pose_vit_forward.1} parent=87 // pred_check_branch
          %2556 = sbr.rel (%p2554) target = $region136
        $region135: #{pose_vit_forward.1} parent=87 // pred_region
          %2557 = vst.msk [vmem:[%s895] sm:$0x1] %vm2273, %v2549
        $region136: #{pose_vit_forward.1} parent=87 // pred_fallthru
          _
        %s2558 = sand.u32 %s477, 1
        %s2559 = scalar_lea.sflag [#allocation5], %s2558
        %s2560 = sand.u32 %s477, 1
        %s2561 = scalar_lea.vmem [#allocation16], %s2560
        // Predicated region
        $region137: #{pose_vit_forward.1} parent=87 // pred_check
          %p2562 = pneg %p487
        $region138: #{pose_vit_forward.1} parent=87 // pred_check_branch
          %2564 = sbr.rel (%p2562) target = $region140
        $region139: #{pose_vit_forward.1} parent=87 // pred_region
          %s2566 = ssub.s32 16, 16
          %2567 = vsyncadd %s2559, %s2566
          %s2568 = smul.addr %s39, 16
          %s2569 = scalar_lea.hbm %s17, %s2568
          %s2571 = sshll.u32 %s2561, 4
          %s2572 = int_to_ptr.vmem [resolvable:$true] %s2571
          %2574 = dma.vmem_to_hbm [thread:$0]  %s2572, 16, %s2569, %s2559
        $region140: #{pose_vit_forward.1} parent=87 // pred_fallthru
          _
      $region88: #{pose_vit_forward.1} parent=5 // pred_fallthru
        _
      %p2575 = scmp.le.s32.totalorder 2, %s30
      // Predicated region
      $region141: #{pose_vit_forward.1} parent=5 // pred_check
        %p2576 = pneg %p2575
      $region142: #{pose_vit_forward.1} parent=5 // pred_check_branch
        %2578 = sbr.rel (%p2576) target = $region144
      $region143: #{pose_vit_forward.1} parent=5 // pred_region
        %s2579 = ssub.s32 %s30, 2
        // Predicated region
        $region145: #{pose_vit_forward.1} parent=143 // pred_check
          %p2580 = pneg %p493
        $region146: #{pose_vit_forward.1} parent=143 // pred_check_branch
          %2582 = sbr.rel (%p2580) target = $region148
        $region147: #{pose_vit_forward.1} parent=143 // pred_region
          %s2583 = sand.u32 %s478, 1
          %s2584 = scalar_lea.sflag [#allocation5], %s2583
          %s2585 = sand.u32 %s478, 1
          %s2586 = scalar_lea.vmem [#allocation16], %s2585
          %2587 = dma.done %s2584, 16
        $region148: #{pose_vit_forward.1} parent=143 // pred_fallthru
          _
      $region144: #{pose_vit_forward.1} parent=5 // pred_fallthru
        _
    $region6: #{pose_vit_forward.1} parent=1 // loop_footer
      %s34 = sadd.s32 1, %s30
    $region7: #{pose_vit_forward.1} parent=1 // loop_footer_branch
      %29 = sbr.rel target = $region3
    $region8: #{pose_vit_forward.1} parent=1 // loop_exit
      _
    %2588 = vsyncpa [#allocation4], 1
    %s2589 = scalar_lea.sflag [#allocation4], 1
    %2590 = vsyncpa %s2589, 1
    %2591 = vsyncpa [#allocation7], 1
    %2592 = vsyncpa [#allocation5], 1
    %s2593 = scalar_lea.sflag [#allocation5], 1
    %2594 = vsyncpa %s2593, 1

</llo_original>
